<compile_context>
chip_gen: v6e
topology: v6e:2x2x1
jax: 0.10.0
libtpu: 0.0.40
codegen_flags: <defaults>
</compile_context>

<pallas_src>
import math

import jax
import jax.numpy as jnp
from jax.experimental import pallas as pl
from jax.experimental.pallas import tpu as pltpu

SEQ = 32          # must equal HIDDEN (elementwise attention_weights * value broadcast)
HIDDEN = 32
OUT_DIM = 16
NUM_HEADS = 4     # unused by the reference forward; kept for parity
BATCH = 16        # total sequences per call
BLOCK_B = 16      # sequences per grid step; == BATCH -> single grid step (per review)

# Lane-aligned (128-boundary) column offsets for each parameter segment in the packed slab.
COL_Q1 = 0 * 128   # wq1 * 1/sqrt(H)
COL_K1 = 1 * 128
COL_V1 = 2 * 128
COL_Q2 = 3 * 128   # wq2 * 1/sqrt(H)
COL_K2 = 4 * 128
COL_V2 = 5 * 128
COL_FF = 6 * 128
W_COLS = 7 * 128   # 896


def decoder_layer_kernel(tgt_ref, src_ref, w_ref, b_ref, out_ref):
    BB, S, H, O = BLOCK_B, SEQ, HIDDEN, OUT_DIM

    # (BB, S, H) -> (BB*S, H): merging leading dims is tile-aligned (S % 8 == 0) -> free.
    tgt2d = tgt_ref[...].reshape(BB * S, H)
    src2d = src_ref[...].reshape(BB * S, H)

    # bf16 MXU operands, f32 accumulation; all elementwise / softmax math stays f32.
    tgt_bf = tgt2d.astype(jnp.bfloat16)
    src_bf = src2d.astype(jnp.bfloat16)

    def project(x_bf16, col, n):
        # `col` is a multiple of 128 -> weight/bias slices start on a vreg boundary (no relayout).
        w = w_ref[:, col:col + n]                       # (H, n) bf16
        b = b_ref[:, col:col + n]                       # (1, n) f32
        return jnp.dot(x_bf16, w, preferred_element_type=jnp.float32) + b

    def softmax_rows(logits):
        m = jnp.max(logits, axis=-1, keepdims=True)
        e = jnp.exp(logits - m)
        # approximate reciprocal runs on the EUP slot instead of a VALU divide
        return e * pl.reciprocal(jnp.sum(e, axis=-1, keepdims=True), approx=True)

    def attention(q2d_bf, kv2d_bf, col_q, col_k, col_v):
        q = project(q2d_bf, col_q, H).reshape(BB, S, H)    # 1/sqrt(H) pre-folded into Wq/bq
        k = project(kv2d_bf, col_k, H).reshape(BB, S, H)
        v = project(kv2d_bf, col_v, H).reshape(BB, S, H)
        # contraction on the last dim of both operands: no k.T materialized
        logits = jnp.einsum('bqh,bkh->bqk',
                            q.astype(jnp.bfloat16), k.astype(jnp.bfloat16),
                            preferred_element_type=jnp.float32)
        # TODO(synk): nn.Dropout(0.1) on the attention weights is stochastic; eval-mode identity.
        return softmax_rows(logits) * v    # elementwise, exactly as the torch code (S == H)

    # ---- self-attention, then encoder attention, then feed-forward + ReLU ----
    t1 = attention(tgt_bf, tgt_bf, COL_Q1, COL_K1, COL_V1)                  # (BB, S, H) f32
    t2 = attention(t1.reshape(BB * S, H).astype(jnp.bfloat16), src_bf,
                   COL_Q2, COL_K2, COL_V2)                                  # (BB, S, H) f32
    y = jnp.maximum(project(t2.reshape(BB * S, H).astype(jnp.bfloat16), COL_FF, O), 0.0)

    # ONE store in the natural matmul layout; the wrapper reshape is a free metadata split.
    out_ref[...] = y                                                        # (BB*S, O)


def transformer_decoder_layer(tgt, src, w_slab, b_slab):
    """tgt/src: (BATCH, SEQ, HIDDEN) f32. Returns (BATCH, SEQ, OUT_DIM) f32."""
    batch = tgt.shape[0]
    nb = batch // BLOCK_B   # == 1 at these shapes: single grid step, no pipeline bubble

    out2d = pl.pallas_call(
        decoder_layer_kernel,
        out_shape=jax.ShapeDtypeStruct((batch * SEQ, OUT_DIM), jnp.float32),
        grid=(nb,),
        in_specs=[
            pl.BlockSpec((BLOCK_B, SEQ, HIDDEN), lambda i: (i, 0, 0)),   # tgt block
            pl.BlockSpec((BLOCK_B, SEQ, HIDDEN), lambda i: (i, 0, 0)),   # src block
            pl.BlockSpec((HIDDEN, W_COLS), lambda i: (0, 0)),            # bf16 weight slab (resident)
            pl.BlockSpec((1, W_COLS), lambda i: (0, 0)),                 # f32 bias slab (resident)
        ],
        out_specs=pl.BlockSpec((BLOCK_B * SEQ, OUT_DIM), lambda i: (i, 0)),
        compiler_params=pltpu.CompilerParams(
            # Single step -> nothing to shard.  For v7x 2-TC sharding, set BLOCK_B = BATCH // 2
            # and use core-parallel semantics once verified in a trace.
            dimension_semantics=("arbitrary",)),
    )(tgt, src, w_slab, b_slab)

    # (BATCH*SEQ, OUT_DIM) -> (BATCH, SEQ, OUT_DIM): row-major split of the leading dim only,
    # i.e. a free metadata reshape (no standalone transpose op, unlike the previous version).
    return out2d.reshape(batch, SEQ, OUT_DIM)


def init_raw_params(key):
    """PyTorch nn.Linear-style init; weights kept in torch (out, in) layout."""
    keys = jax.random.split(key, 14)

    def linear(kw, kb, in_dim, out_dim):
        bound = 1.0 / math.sqrt(in_dim)
        w = jax.random.uniform(kw, (out_dim, in_dim), jnp.float32, -bound, bound)
        b = jax.random.uniform(kb, (out_dim,), jnp.float32, -bound, bound)
        return w, b

    wq1 = linear(keys[0], keys[1], HIDDEN, HIDDEN)
    wk1 = linear(keys[2], keys[3], HIDDEN, HIDDEN)
    wv1 = linear(keys[4], keys[5], HIDDEN, HIDDEN)
    wq2 = linear(keys[6], keys[7], HIDDEN, HIDDEN)
    wk2 = linear(keys[8], keys[9], HIDDEN, HIDDEN)
    wv2 = linear(keys[10], keys[11], HIDDEN, HIDDEN)
    wf = linear(keys[12], keys[13], HIDDEN, OUT_DIM)
    return (wq1, wk1, wv1, wq2, wk2, wv2, wf)


def pack_params(raw):
    """Pack all params into one (HIDDEN, 896) bf16 weight slab + one (1, 896) f32 bias slab.

    Every segment starts on a 128-lane boundary; the 1/sqrt(HIDDEN) attention scale is folded
    into the Q projections (weight AND bias).  Scaling is done in f32, then weights cast to bf16.
    """
    ((wq1, bq1), (wk1, bk1), (wv1, bv1),
     (wq2, bq2), (wk2, bk2), (wv2, bv2), (wf, bf)) = raw
    inv = 1.0 / math.sqrt(HIDDEN)

    w_slab = jnp.zeros((HIDDEN, W_COLS), jnp.float32)
    b_slab = jnp.zeros((1, W_COLS), jnp.float32)

    def put(ws, bs, col, w, b, scale=1.0):
        n = w.shape[0]
        ws = ws.at[:, col:col + n].set(w.T * scale)
        bs = bs.at[:, col:col + n].set(b.reshape(1, n) * scale)
        return ws, bs

    w_slab, b_slab = put(w_slab, b_slab, COL_Q1, wq1, bq1, inv)
    w_slab, b_slab = put(w_slab, b_slab, COL_K1, wk1, bk1)
    w_slab, b_slab = put(w_slab, b_slab, COL_V1, wv1, bv1)
    w_slab, b_slab = put(w_slab, b_slab, COL_Q2, wq2, bq2, inv)
    w_slab, b_slab = put(w_slab, b_slab, COL_K2, wk2, bk2)
    w_slab, b_slab = put(w_slab, b_slab, COL_V2, wv2, bv2)
    w_slab, b_slab = put(w_slab, b_slab, COL_FF, wf, bf)
    return w_slab.astype(jnp.bfloat16), b_slab


def reference_forward(tgt, src, raw):
    """Pure-JAX f32 reference mirroring the torch module (eval mode), per batch item."""
    ((wq1, bq1), (wk1, bk1), (wv1, bv1),
     (wq2, bq2), (wk2, bk2), (wv2, bv2), (wf, bf)) = raw

    def attn(q_in, k_in, v_in, wq, bq, wk, bk, wv, bv):
        q = q_in @ wq.T + bq
        k = k_in @ wk.T + bk
        v = v_in @ wv.T + bv
        logits = (q @ k.T) / math.sqrt(HIDDEN)
        w = jax.nn.softmax(logits, axis=-1)
        return w * v   # elementwise, exactly as in the torch code (requires SEQ == HIDDEN)

    def one(t, s):
        t1 = attn(t, t, t, wq1, bq1, wk1, bk1, wv1, bv1)
        t2 = attn(t1, s, s, wq2, bq2, wk2, bk2, wv2, bv2)
        return jnp.maximum(t2 @ wf.T + bf, 0.0)

    return jax.vmap(one)(tgt, src)


if __name__ == "__main__":
    key = jax.random.PRNGKey(0)
    k_tgt, k_src, k_par = jax.random.split(key, 3)

    tgt = jax.random.normal(k_tgt, (BATCH, SEQ, HIDDEN), jnp.float32)
    src = jax.random.normal(k_src, (BATCH, SEQ, HIDDEN), jnp.float32)

    raw = init_raw_params(k_par)
    w_slab, b_slab = pack_params(raw)

    out = transformer_decoder_layer(tgt, src, w_slab, b_slab)
    out = jax.block_until_ready(out)

    ref = reference_forward(tgt, src, raw)
    assert out.shape == (BATCH, SEQ, OUT_DIM)
    max_err = float(jnp.max(jnp.abs(out - ref)))
    # tolerance covers bf16 MXU operands + pl.reciprocal(approx=True) in the softmax norm
    assert jnp.allclose(out, ref, rtol=1e-2, atol=1e-2), (
        f"mismatch vs JAX reference (max abs err {max_err})")

    print("KERNEL_OK")
</pallas_src>

<mosaic_0001>
module attributes {stable_mosaic.version = 11 : i64} {
  func.func @decoder_layer_kernel(%arg0: i32, %arg1: memref<16x32x32xf32, #tpu.memory_space<vmem>>, %arg2: memref<16x32x32xf32, #tpu.memory_space<vmem>>, %arg3: memref<32x896xbf16, #tpu.memory_space<vmem>>, %arg4: memref<1x896xf32, #tpu.memory_space<vmem>>, %arg5: memref<512x16xf32, #tpu.memory_space<vmem>>) attributes {dimension_semantics = [#tpu.dimension_semantics<arbitrary>], iteration_bounds = array<i64: 1>, scalar_prefetch = 0 : i64, scratch_operands = 0 : i64, tpu.core_type = #tpu.core_type<tc>, window_params = [{transform_indices = @transform_0, window_bounds = array<i64: 16, 32, 32>}, {transform_indices = @transform_1, window_bounds = array<i64: 16, 32, 32>}, {pipeline_mode = #tpu.pipeline_mode<synchronous>, transform_indices = @transform_2, window_bounds = array<i64: 32, 896>}, {pipeline_mode = #tpu.pipeline_mode<synchronous>, transform_indices = @transform_3, window_bounds = array<i64: 1, 896>}, {transform_indices = @transform_4, window_bounds = array<i64: 512, 16>}]} {
    %c0 = arith.constant 0 : index
    %c0_0 = arith.constant 0 : index
    %c0_1 = arith.constant 0 : index
    %0 = vector.load %arg1[%c0, %c0_0, %c0_1] : memref<16x32x32xf32, #tpu.memory_space<vmem>>, vector<16x32x32xf32>
    %1 = vector.shape_cast %0 : vector<16x32x32xf32> to vector<512x32xf32>
    %c0_2 = arith.constant 0 : index
    %c0_3 = arith.constant 0 : index
    %c0_4 = arith.constant 0 : index
    %2 = vector.load %arg2[%c0_2, %c0_3, %c0_4] : memref<16x32x32xf32, #tpu.memory_space<vmem>>, vector<16x32x32xf32>
    %3 = vector.shape_cast %2 : vector<16x32x32xf32> to vector<512x32xf32>
    %4 = arith.truncf %1 : vector<512x32xf32> to vector<512x32xbf16>
    %5 = arith.truncf %3 : vector<512x32xf32> to vector<512x32xbf16>
    %c0_5 = arith.constant 0 : index
    %c0_6 = arith.constant 0 : index
    %6 = vector.load %arg3[%c0_5, %c0_6] : memref<32x896xbf16, #tpu.memory_space<vmem>>, vector<32x32xbf16>
    %c0_7 = arith.constant 0 : index
    %c0_8 = arith.constant 0 : index
    %7 = vector.load %arg4[%c0_7, %c0_8] : memref<1x896xf32, #tpu.memory_space<vmem>>, vector<1x32xf32>
    %cst = arith.constant dense<0.000000e+00> : vector<512x32xf32>
    %8 = tpu.matmul %4, %6, %cst {dimension_numbers = #tpu.dot_dimension_numbers<[1], [0], [0], [1], [0, 0, 1, 1], [], []>} : vector<512x32xbf16>, vector<32x32xbf16>, vector<512x32xf32> -> vector<512x32xf32>
    %9 = vector.broadcast %7 : vector<1x32xf32> to vector<512x32xf32>
    %10 = arith.addf %8, %9 : vector<512x32xf32>
    %11 = vector.shape_cast %10 : vector<512x32xf32> to vector<16x32x32xf32>
    %c0_9 = arith.constant 0 : index
    %c128 = arith.constant 128 : index
    %12 = vector.load %arg3[%c0_9, %c128] : memref<32x896xbf16, #tpu.memory_space<vmem>>, vector<32x32xbf16>
    %c0_10 = arith.constant 0 : index
    %c128_11 = arith.constant 128 : index
    %13 = vector.load %arg4[%c0_10, %c128_11] : memref<1x896xf32, #tpu.memory_space<vmem>>, vector<1x32xf32>
    %cst_12 = arith.constant dense<0.000000e+00> : vector<512x32xf32>
    %14 = tpu.matmul %4, %12, %cst_12 {dimension_numbers = #tpu.dot_dimension_numbers<[1], [0], [0], [1], [0, 0, 1, 1], [], []>} : vector<512x32xbf16>, vector<32x32xbf16>, vector<512x32xf32> -> vector<512x32xf32>
    %15 = vector.broadcast %13 : vector<1x32xf32> to vector<512x32xf32>
    %16 = arith.addf %14, %15 : vector<512x32xf32>
    %17 = vector.shape_cast %16 : vector<512x32xf32> to vector<16x32x32xf32>
    %c0_13 = arith.constant 0 : index
    %c256 = arith.constant 256 : index
    %18 = vector.load %arg3[%c0_13, %c256] : memref<32x896xbf16, #tpu.memory_space<vmem>>, vector<32x32xbf16>
    %c0_14 = arith.constant 0 : index
    %c256_15 = arith.constant 256 : index
    %19 = vector.load %arg4[%c0_14, %c256_15] : memref<1x896xf32, #tpu.memory_space<vmem>>, vector<1x32xf32>
    %cst_16 = arith.constant dense<0.000000e+00> : vector<512x32xf32>
    %20 = tpu.matmul %4, %18, %cst_16 {dimension_numbers = #tpu.dot_dimension_numbers<[1], [0], [0], [1], [0, 0, 1, 1], [], []>} : vector<512x32xbf16>, vector<32x32xbf16>, vector<512x32xf32> -> vector<512x32xf32>
    %21 = vector.broadcast %19 : vector<1x32xf32> to vector<512x32xf32>
    %22 = arith.addf %20, %21 : vector<512x32xf32>
    %23 = vector.shape_cast %22 : vector<512x32xf32> to vector<16x32x32xf32>
    %24 = arith.truncf %11 : vector<16x32x32xf32> to vector<16x32x32xbf16>
    %25 = arith.truncf %17 : vector<16x32x32xf32> to vector<16x32x32xbf16>
    "tpu.trace_start"() <{level = 10 : i32, message = "bqh,bkh->bqk"}> : () -> ()
    %cst_17 = arith.constant dense<0.000000e+00> : vector<16x32x32xf32>
    %26 = tpu.matmul %24, %25, %cst_17 {dimension_numbers = #tpu.dot_dimension_numbers<[2], [2], [1], [1], [0, 0, 0, 1, 1, 1], [0], [0]>} : vector<16x32x32xbf16>, vector<16x32x32xbf16>, vector<16x32x32xf32> -> vector<16x32x32xf32>
    "tpu.trace_stop"() : () -> ()
    %cst_18 = arith.constant dense<0xFF800000> : vector<16x32xf32>
    %27 = vector.multi_reduction <maximumf>, %26, %cst_18 [2] : vector<16x32x32xf32> to vector<16x32xf32>
    %28 = vector.shape_cast %27 : vector<16x32xf32> to vector<16x32x1xf32>
    %29 = vector.broadcast %28 : vector<16x32x1xf32> to vector<16x32x32xf32>
    %30 = arith.subf %26, %29 : vector<16x32x32xf32>
    %31 = math.exp %30 : vector<16x32x32xf32>
    %cst_19 = arith.constant dense<0.000000e+00> : vector<16x32xf32>
    %32 = vector.multi_reduction <add>, %31, %cst_19 [2] : vector<16x32x32xf32> to vector<16x32xf32>
    %33 = vector.shape_cast %32 : vector<16x32xf32> to vector<16x32x1xf32>
    %34 = tpu.reciprocal %33 {approx = true} : vector<16x32x1xf32> -> vector<16x32x1xf32>
    %35 = vector.broadcast %34 : vector<16x32x1xf32> to vector<16x32x32xf32>
    %36 = arith.mulf %31, %35 : vector<16x32x32xf32>
    %37 = arith.mulf %36, %23 : vector<16x32x32xf32>
    %38 = vector.shape_cast %37 : vector<16x32x32xf32> to vector<512x32xf32>
    %39 = arith.truncf %38 : vector<512x32xf32> to vector<512x32xbf16>
    %c0_20 = arith.constant 0 : index
    %c384 = arith.constant 384 : index
    %40 = vector.load %arg3[%c0_20, %c384] : memref<32x896xbf16, #tpu.memory_space<vmem>>, vector<32x32xbf16>
    %c0_21 = arith.constant 0 : index
    %c384_22 = arith.constant 384 : index
    %41 = vector.load %arg4[%c0_21, %c384_22] : memref<1x896xf32, #tpu.memory_space<vmem>>, vector<1x32xf32>
    %cst_23 = arith.constant dense<0.000000e+00> : vector<512x32xf32>
    %42 = tpu.matmul %39, %40, %cst_23 {dimension_numbers = #tpu.dot_dimension_numbers<[1], [0], [0], [1], [0, 0, 1, 1], [], []>} : vector<512x32xbf16>, vector<32x32xbf16>, vector<512x32xf32> -> vector<512x32xf32>
    %43 = vector.broadcast %41 : vector<1x32xf32> to vector<512x32xf32>
    %44 = arith.addf %42, %43 : vector<512x32xf32>
    %45 = vector.shape_cast %44 : vector<512x32xf32> to vector<16x32x32xf32>
    %c0_24 = arith.constant 0 : index
    %c512 = arith.constant 512 : index
    %46 = vector.load %arg3[%c0_24, %c512] : memref<32x896xbf16, #tpu.memory_space<vmem>>, vector<32x32xbf16>
    %c0_25 = arith.constant 0 : index
    %c512_26 = arith.constant 512 : index
    %47 = vector.load %arg4[%c0_25, %c512_26] : memref<1x896xf32, #tpu.memory_space<vmem>>, vector<1x32xf32>
    %cst_27 = arith.constant dense<0.000000e+00> : vector<512x32xf32>
    %48 = tpu.matmul %5, %46, %cst_27 {dimension_numbers = #tpu.dot_dimension_numbers<[1], [0], [0], [1], [0, 0, 1, 1], [], []>} : vector<512x32xbf16>, vector<32x32xbf16>, vector<512x32xf32> -> vector<512x32xf32>
    %49 = vector.broadcast %47 : vector<1x32xf32> to vector<512x32xf32>
    %50 = arith.addf %48, %49 : vector<512x32xf32>
    %51 = vector.shape_cast %50 : vector<512x32xf32> to vector<16x32x32xf32>
    %c0_28 = arith.constant 0 : index
    %c640 = arith.constant 640 : index
    %52 = vector.load %arg3[%c0_28, %c640] : memref<32x896xbf16, #tpu.memory_space<vmem>>, vector<32x32xbf16>
    %c0_29 = arith.constant 0 : index
    %c640_30 = arith.constant 640 : index
    %53 = vector.load %arg4[%c0_29, %c640_30] : memref<1x896xf32, #tpu.memory_space<vmem>>, vector<1x32xf32>
    %cst_31 = arith.constant dense<0.000000e+00> : vector<512x32xf32>
    %54 = tpu.matmul %5, %52, %cst_31 {dimension_numbers = #tpu.dot_dimension_numbers<[1], [0], [0], [1], [0, 0, 1, 1], [], []>} : vector<512x32xbf16>, vector<32x32xbf16>, vector<512x32xf32> -> vector<512x32xf32>
    %55 = vector.broadcast %53 : vector<1x32xf32> to vector<512x32xf32>
    %56 = arith.addf %54, %55 : vector<512x32xf32>
    %57 = vector.shape_cast %56 : vector<512x32xf32> to vector<16x32x32xf32>
    %58 = arith.truncf %45 : vector<16x32x32xf32> to vector<16x32x32xbf16>
    %59 = arith.truncf %51 : vector<16x32x32xf32> to vector<16x32x32xbf16>
    "tpu.trace_start"() <{level = 10 : i32, message = "bqh,bkh->bqk"}> : () -> ()
    %cst_32 = arith.constant dense<0.000000e+00> : vector<16x32x32xf32>
    %60 = tpu.matmul %58, %59, %cst_32 {dimension_numbers = #tpu.dot_dimension_numbers<[2], [2], [1], [1], [0, 0, 0, 1, 1, 1], [0], [0]>} : vector<16x32x32xbf16>, vector<16x32x32xbf16>, vector<16x32x32xf32> -> vector<16x32x32xf32>
    "tpu.trace_stop"() : () -> ()
    %cst_33 = arith.constant dense<0xFF800000> : vector<16x32xf32>
    %61 = vector.multi_reduction <maximumf>, %60, %cst_33 [2] : vector<16x32x32xf32> to vector<16x32xf32>
    %62 = vector.shape_cast %61 : vector<16x32xf32> to vector<16x32x1xf32>
    %63 = vector.broadcast %62 : vector<16x32x1xf32> to vector<16x32x32xf32>
    %64 = arith.subf %60, %63 : vector<16x32x32xf32>
    %65 = math.exp %64 : vector<16x32x32xf32>
    %cst_34 = arith.constant dense<0.000000e+00> : vector<16x32xf32>
    %66 = vector.multi_reduction <add>, %65, %cst_34 [2] : vector<16x32x32xf32> to vector<16x32xf32>
    %67 = vector.shape_cast %66 : vector<16x32xf32> to vector<16x32x1xf32>
    %68 = tpu.reciprocal %67 {approx = true} : vector<16x32x1xf32> -> vector<16x32x1xf32>
    %69 = vector.broadcast %68 : vector<16x32x1xf32> to vector<16x32x32xf32>
    %70 = arith.mulf %65, %69 : vector<16x32x32xf32>
    %71 = arith.mulf %70, %57 : vector<16x32x32xf32>
    %72 = vector.shape_cast %71 : vector<16x32x32xf32> to vector<512x32xf32>
    %73 = arith.truncf %72 : vector<512x32xf32> to vector<512x32xbf16>
    %c0_35 = arith.constant 0 : index
    %c768 = arith.constant 768 : index
    %74 = vector.load %arg3[%c0_35, %c768] : memref<32x896xbf16, #tpu.memory_space<vmem>>, vector<32x16xbf16>
    %c0_36 = arith.constant 0 : index
    %c768_37 = arith.constant 768 : index
    %75 = vector.load %arg4[%c0_36, %c768_37] : memref<1x896xf32, #tpu.memory_space<vmem>>, vector<1x16xf32>
    %cst_38 = arith.constant dense<0.000000e+00> : vector<512x16xf32>
    %76 = tpu.matmul %73, %74, %cst_38 {dimension_numbers = #tpu.dot_dimension_numbers<[1], [0], [0], [1], [0, 0, 1, 1], [], []>} : vector<512x32xbf16>, vector<32x16xbf16>, vector<512x16xf32> -> vector<512x16xf32>
    %77 = vector.broadcast %75 : vector<1x16xf32> to vector<512x16xf32>
    %78 = arith.addf %76, %77 : vector<512x16xf32>
    %cst_39 = arith.constant 0.000000e+00 : f32
    %79 = vector.broadcast %cst_39 : f32 to vector<512x16xf32>
    %80 = arith.maximumf %78, %79 : vector<512x16xf32>
    %c0_40 = arith.constant 0 : index
    %c0_41 = arith.constant 0 : index
    %81 = vector.load %arg5[%c0_40, %c0_41] : memref<512x16xf32, #tpu.memory_space<vmem>>, vector<512x16xf32>
    tpu.vector_store %arg5[%c0_40, %c0_41], %80 {strides = array<i32>} : memref<512x16xf32, #tpu.memory_space<vmem>>, vector<512x16xf32>,
    return
  }
  func.func @transform_0(%arg0: i32) -> (i32, i32, i32) {
    %c0_i32 = arith.constant 0 : i32
    %c0_i32_0 = arith.constant 0 : i32
    %c0_i32_1 = arith.constant 0 : i32
    return %arg0, %c0_i32, %c0_i32_0 : i32, i32, i32
  }
  func.func @transform_1(%arg0: i32) -> (i32, i32, i32) {
    %c0_i32 = arith.constant 0 : i32
    %c0_i32_0 = arith.constant 0 : i32
    %c0_i32_1 = arith.constant 0 : i32
    return %arg0, %c0_i32, %c0_i32_0 : i32, i32, i32
  }
  func.func @transform_2(%arg0: i32) -> (i32, i32) {
    %c0_i32 = arith.constant 0 : i32
    %c0_i32_0 = arith.constant 0 : i32
    %c0_i32_1 = arith.constant 0 : i32
    return %c0_i32, %c0_i32_0 : i32, i32
  }
  func.func @transform_3(%arg0: i32) -> (i32, i32) {
    %c0_i32 = arith.constant 0 : i32
    %c0_i32_0 = arith.constant 0 : i32
    %c0_i32_1 = arith.constant 0 : i32
    return %c0_i32, %c0_i32_0 : i32, i32
  }
  func.func @transform_4(%arg0: i32) -> (i32, i32) {
    %c0_i32 = arith.constant 0 : i32
    %c0_i32_0 = arith.constant 0 : i32
    return %arg0, %c0_i32 : i32, i32
  }
}

</mosaic_0001>

<llo_original>
// kernel: tpu_custom_call.1
$region0: #{tpu_custom_call.1}
  #allocation0 [shape = 'u32[]', space=smem, size = 0x4, offset = 0x4, fixed_abs, tag = 'smem constant byte address 0x4 - core index']
  #allocation1 [shape = 'u32[144,128]{1,0:T(1,128)}', space=vmem, size = 0x12000, scoped, tag = 'internal scratch']
  %s0 = inlined_call_operand.hbm [shape: f32[16,32,32], index: 0, kind: input, shape index: {}]
  %s1 = inlined_call_operand.hbm [shape: f32[16,32,32], index: 1, kind: input, shape index: {}]
  %s2 = inlined_call_operand.hbm [shape: bf16[32,896], index: 2, kind: input, shape index: {}]
  %s3 = inlined_call_operand.hbm [shape: f32[1,896], index: 3, kind: input, shape index: {}]
  %s4 = inlined_call_operand.vmem [shape: f32[512,16], index: 4, kind: output, shape index: {}]
  %s5 = sld [smem:[#allocation0]]
  $region42: #{tpu_custom_call.1} parent=0
    _
  %s7 = ssub.s32 1, %s5
  %s8 = scalar_select 0, %s7, %s5
  $region1: #{tpu_custom_call.1} parent=0
    #allocation2 [shape = 'u8[262144]{0}', space=vmem, size = 0x40000, scoped, tag = 'input window, operand 0, single buffered']
    #allocation3 [shape = 's32[1]{0}', space=sflag, size = 0x4, scoped, tag = 'scoped memory for tpu_custom_call.1']
    #allocation4 [shape = 'u8[262144]{0}', space=vmem, size = 0x40000, scoped, tag = 'input window, operand 1, single buffered']
    #allocation5 [shape = 's32[1]{0}', space=sflag, size = 0x4, scoped, tag = 'scoped memory for tpu_custom_call.1']
    #allocation6 [shape = 'u8[57344]{0}', space=vmem, size = 0xe000, scoped, tag = 'input window, operand 2, single buffered']
    #allocation7 [shape = 'u8[3584]{0}', space=vmem, size = 0x1000, scoped, tag = 'input window, operand 3, single buffered']
    #allocation8 [shape = 's32[1]{0}', space=sflag, size = 0x4, scoped, tag = 'scoped memory for tpu_custom_call.1']
    %9 = vsyncpa [#allocation3], 0
    %10 = vsyncpa [#allocation5], 0
    %11 = vsyncpa [#allocation8], 0
    // Predicated region
    $region2: #{tpu_custom_call.1} parent=1 // pred_check
      _
    $region3: #{tpu_custom_call.1} parent=1 // pred_check_branch
      %13 = sbr.rel (0) target = $region5
    $region4: #{tpu_custom_call.1} parent=1 // pred_region
      %s15 = ssub.s32 8192, 8192
      %16 = vsyncadd [#allocation3], %s15
      %s17 = sshll.u32 [#allocation2], 4
      %s18 = int_to_ptr.vmem [resolvable:$true] %s17
      %23 = dma.hbm_to_vmem [thread:$0]  %s0, 8192, %s18, [#allocation3], 128, 128, 8
    $region5: #{tpu_custom_call.1} parent=1 // pred_fallthru
      _
    // Predicated region
    $region6: #{tpu_custom_call.1} parent=1 // pred_check
      _
    $region7: #{tpu_custom_call.1} parent=1 // pred_check_branch
      %25 = sbr.rel (0) target = $region9
    $region8: #{tpu_custom_call.1} parent=1 // pred_region
      %s27 = ssub.s32 8192, 8192
      %28 = vsyncadd [#allocation5], %s27
      %s29 = sshll.u32 [#allocation4], 4
      %s30 = int_to_ptr.vmem [resolvable:$true] %s29
      %35 = dma.hbm_to_vmem [thread:$0]  %s1, 8192, %s30, [#allocation5], 128, 128, 8
    $region9: #{tpu_custom_call.1} parent=1 // pred_fallthru
      _
    // Predicated region
    $region10: #{tpu_custom_call.1} parent=1 // pred_check
      _
    $region11: #{tpu_custom_call.1} parent=1 // pred_check_branch
      %37 = sbr.rel (0) target = $region13
    $region12: #{tpu_custom_call.1} parent=1 // pred_region
      %s39 = ssub.s32 1792, 1792
      %40 = vsyncadd [#allocation5], %s39
      %s41 = sshll.u32 [#allocation6], 4
      %s42 = int_to_ptr.vmem [resolvable:$true] %s41
      %47 = dma.hbm_to_vmem [thread:$0]  %s2, 1792, %s42, [#allocation5], 448, 448, 28
    $region13: #{tpu_custom_call.1} parent=1 // pred_fallthru
      _
    // Predicated region
    $region14: #{tpu_custom_call.1} parent=1 // pred_check
      _
    $region15: #{tpu_custom_call.1} parent=1 // pred_check_branch
      %49 = sbr.rel (0) target = $region17
    $region16: #{tpu_custom_call.1} parent=1 // pred_region
      %s51 = ssub.s32 112, 112
      %52 = vsyncadd [#allocation8], %s51
      %s54 = sshll.u32 [#allocation7], 4
      %s55 = int_to_ptr.vmem [resolvable:$true] %s54
      %57 = dma.hbm_to_vmem [thread:$0]  %s3, 112, %s55, [#allocation8]
    $region17: #{tpu_custom_call.1} parent=1 // pred_fallthru
      _
    // Predicated region
    $region18: #{tpu_custom_call.1} parent=1 // pred_check
      _
    $region19: #{tpu_custom_call.1} parent=1 // pred_check_branch
      %59 = sbr.rel (0) target = $region21
    $region20: #{tpu_custom_call.1} parent=1 // pred_region
      %60 = dma.done [#allocation3], 8192
    $region21: #{tpu_custom_call.1} parent=1 // pred_fallthru
      _
    // Predicated region
    $region22: #{tpu_custom_call.1} parent=1 // pred_check
      _
    $region23: #{tpu_custom_call.1} parent=1 // pred_check_branch
      %62 = sbr.rel (0) target = $region25
    $region24: #{tpu_custom_call.1} parent=1 // pred_region
      %63 = dma.done [#allocation5], 8192
    $region25: #{tpu_custom_call.1} parent=1 // pred_fallthru
      _
    // Predicated region
    $region26: #{tpu_custom_call.1} parent=1 // pred_check
      _
    $region27: #{tpu_custom_call.1} parent=1 // pred_check_branch
      %65 = sbr.rel (0) target = $region29
    $region28: #{tpu_custom_call.1} parent=1 // pred_region
      %66 = dma.done [#allocation5], 1792
    $region29: #{tpu_custom_call.1} parent=1 // pred_fallthru
      _
    // Predicated region
    $region30: #{tpu_custom_call.1} parent=1 // pred_check
      _
    $region31: #{tpu_custom_call.1} parent=1 // pred_check_branch
      %68 = sbr.rel (0) target = $region33
    $region32: #{tpu_custom_call.1} parent=1 // pred_region
      %69 = dma.done [#allocation8], 112
    $region33: #{tpu_custom_call.1} parent=1 // pred_fallthru
      _
    %v71 = vld [vmem:[#allocation2] sm:$0xff]
    %v72 = vld [vmem:[#allocation2 + $0x8] sm:$0xff]
    %v73 = vld [vmem:[#allocation2 + $0x10] sm:$0xff]
    %v74 = vld [vmem:[#allocation2 + $0x18] sm:$0xff]
    %v75 = vld [vmem:[#allocation2 + $0x20] sm:$0xff]
    %v76 = vld [vmem:[#allocation2 + $0x28] sm:$0xff]
    %v77 = vld [vmem:[#allocation2 + $0x30] sm:$0xff]
    %v78 = vld [vmem:[#allocation2 + $0x38] sm:$0xff]
    %v79 = vld [vmem:[#allocation2 + $0x40] sm:$0xff]
    %v80 = vld [vmem:[#allocation2 + $0x48] sm:$0xff]
    %v81 = vld [vmem:[#allocation2 + $0x50] sm:$0xff]
    %v82 = vld [vmem:[#allocation2 + $0x58] sm:$0xff]
    %v83 = vld [vmem:[#allocation2 + $0x60] sm:$0xff]
    %v84 = vld [vmem:[#allocation2 + $0x68] sm:$0xff]
    %v85 = vld [vmem:[#allocation2 + $0x70] sm:$0xff]
    %v86 = vld [vmem:[#allocation2 + $0x78] sm:$0xff]
    %v87 = vld [vmem:[#allocation2 + $0x80] sm:$0xff]
    %v88 = vld [vmem:[#allocation2 + $0x88] sm:$0xff]
    %v89 = vld [vmem:[#allocation2 + $0x90] sm:$0xff]
    %v90 = vld [vmem:[#allocation2 + $0x98] sm:$0xff]
    %v91 = vld [vmem:[#allocation2 + $0xa0] sm:$0xff]
    %v92 = vld [vmem:[#allocation2 + $0xa8] sm:$0xff]
    %v93 = vld [vmem:[#allocation2 + $0xb0] sm:$0xff]
    %v94 = vld [vmem:[#allocation2 + $0xb8] sm:$0xff]
    %v95 = vld [vmem:[#allocation2 + $0xc0] sm:$0xff]
    %v96 = vld [vmem:[#allocation2 + $0xc8] sm:$0xff]
    %v97 = vld [vmem:[#allocation2 + $0xd0] sm:$0xff]
    %v98 = vld [vmem:[#allocation2 + $0xd8] sm:$0xff]
    %v99 = vld [vmem:[#allocation2 + $0xe0] sm:$0xff]
    %v100 = vld [vmem:[#allocation2 + $0xe8] sm:$0xff]
    %v101 = vld [vmem:[#allocation2 + $0xf0] sm:$0xff]
    %v102 = vld [vmem:[#allocation2 + $0xf8] sm:$0xff]
    %v103 = vld [vmem:[#allocation2 + $0x100] sm:$0xff]
    %v104 = vld [vmem:[#allocation2 + $0x108] sm:$0xff]
    %v105 = vld [vmem:[#allocation2 + $0x110] sm:$0xff]
    %v106 = vld [vmem:[#allocation2 + $0x118] sm:$0xff]
    %v107 = vld [vmem:[#allocation2 + $0x120] sm:$0xff]
    %v108 = vld [vmem:[#allocation2 + $0x128] sm:$0xff]
    %v109 = vld [vmem:[#allocation2 + $0x130] sm:$0xff]
    %v110 = vld [vmem:[#allocation2 + $0x138] sm:$0xff]
    %v111 = vld [vmem:[#allocation2 + $0x140] sm:$0xff]
    %v112 = vld [vmem:[#allocation2 + $0x148] sm:$0xff]
    %v113 = vld [vmem:[#allocation2 + $0x150] sm:$0xff]
    %v114 = vld [vmem:[#allocation2 + $0x158] sm:$0xff]
    %v115 = vld [vmem:[#allocation2 + $0x160] sm:$0xff]
    %v116 = vld [vmem:[#allocation2 + $0x168] sm:$0xff]
    %v117 = vld [vmem:[#allocation2 + $0x170] sm:$0xff]
    %v118 = vld [vmem:[#allocation2 + $0x178] sm:$0xff]
    %v119 = vld [vmem:[#allocation2 + $0x180] sm:$0xff]
    %v120 = vld [vmem:[#allocation2 + $0x188] sm:$0xff]
    %v121 = vld [vmem:[#allocation2 + $0x190] sm:$0xff]
    %v122 = vld [vmem:[#allocation2 + $0x198] sm:$0xff]
    %v123 = vld [vmem:[#allocation2 + $0x1a0] sm:$0xff]
    %v124 = vld [vmem:[#allocation2 + $0x1a8] sm:$0xff]
    %v125 = vld [vmem:[#allocation2 + $0x1b0] sm:$0xff]
    %v126 = vld [vmem:[#allocation2 + $0x1b8] sm:$0xff]
    %v127 = vld [vmem:[#allocation2 + $0x1c0] sm:$0xff]
    %v128 = vld [vmem:[#allocation2 + $0x1c8] sm:$0xff]
    %v129 = vld [vmem:[#allocation2 + $0x1d0] sm:$0xff]
    %v130 = vld [vmem:[#allocation2 + $0x1d8] sm:$0xff]
    %v131 = vld [vmem:[#allocation2 + $0x1e0] sm:$0xff]
    %v132 = vld [vmem:[#allocation2 + $0x1e8] sm:$0xff]
    %v133 = vld [vmem:[#allocation2 + $0x1f0] sm:$0xff]
    %v134 = vld [vmem:[#allocation2 + $0x1f8] sm:$0xff]
    %v135 = vld [vmem:[#allocation4] sm:$0xff]
    %v136 = vld [vmem:[#allocation4 + $0x8] sm:$0xff]
    %v137 = vld [vmem:[#allocation4 + $0x10] sm:$0xff]
    %v138 = vld [vmem:[#allocation4 + $0x18] sm:$0xff]
    %v139 = vld [vmem:[#allocation4 + $0x20] sm:$0xff]
    %v140 = vld [vmem:[#allocation4 + $0x28] sm:$0xff]
    %v141 = vld [vmem:[#allocation4 + $0x30] sm:$0xff]
    %v142 = vld [vmem:[#allocation4 + $0x38] sm:$0xff]
    %v143 = vld [vmem:[#allocation4 + $0x40] sm:$0xff]
    %v144 = vld [vmem:[#allocation4 + $0x48] sm:$0xff]
    %v145 = vld [vmem:[#allocation4 + $0x50] sm:$0xff]
    %v146 = vld [vmem:[#allocation4 + $0x58] sm:$0xff]
    %v147 = vld [vmem:[#allocation4 + $0x60] sm:$0xff]
    %v148 = vld [vmem:[#allocation4 + $0x68] sm:$0xff]
    %v149 = vld [vmem:[#allocation4 + $0x70] sm:$0xff]
    %v150 = vld [vmem:[#allocation4 + $0x78] sm:$0xff]
    %v151 = vld [vmem:[#allocation4 + $0x80] sm:$0xff]
    %v152 = vld [vmem:[#allocation4 + $0x88] sm:$0xff]
    %v153 = vld [vmem:[#allocation4 + $0x90] sm:$0xff]
    %v154 = vld [vmem:[#allocation4 + $0x98] sm:$0xff]
    %v155 = vld [vmem:[#allocation4 + $0xa0] sm:$0xff]
    %v156 = vld [vmem:[#allocation4 + $0xa8] sm:$0xff]
    %v157 = vld [vmem:[#allocation4 + $0xb0] sm:$0xff]
    %v158 = vld [vmem:[#allocation4 + $0xb8] sm:$0xff]
    %v159 = vld [vmem:[#allocation4 + $0xc0] sm:$0xff]
    %v160 = vld [vmem:[#allocation4 + $0xc8] sm:$0xff]
    %v161 = vld [vmem:[#allocation4 + $0xd0] sm:$0xff]
    %v162 = vld [vmem:[#allocation4 + $0xd8] sm:$0xff]
    %v163 = vld [vmem:[#allocation4 + $0xe0] sm:$0xff]
    %v164 = vld [vmem:[#allocation4 + $0xe8] sm:$0xff]
    %v165 = vld [vmem:[#allocation4 + $0xf0] sm:$0xff]
    %v166 = vld [vmem:[#allocation4 + $0xf8] sm:$0xff]
    %v167 = vld [vmem:[#allocation4 + $0x100] sm:$0xff]
    %v168 = vld [vmem:[#allocation4 + $0x108] sm:$0xff]
    %v169 = vld [vmem:[#allocation4 + $0x110] sm:$0xff]
    %v170 = vld [vmem:[#allocation4 + $0x118] sm:$0xff]
    %v171 = vld [vmem:[#allocation4 + $0x120] sm:$0xff]
    %v172 = vld [vmem:[#allocation4 + $0x128] sm:$0xff]
    %v173 = vld [vmem:[#allocation4 + $0x130] sm:$0xff]
    %v174 = vld [vmem:[#allocation4 + $0x138] sm:$0xff]
    %v175 = vld [vmem:[#allocation4 + $0x140] sm:$0xff]
    %v176 = vld [vmem:[#allocation4 + $0x148] sm:$0xff]
    %v177 = vld [vmem:[#allocation4 + $0x150] sm:$0xff]
    %v178 = vld [vmem:[#allocation4 + $0x158] sm:$0xff]
    %v179 = vld [vmem:[#allocation4 + $0x160] sm:$0xff]
    %v180 = vld [vmem:[#allocation4 + $0x168] sm:$0xff]
    %v181 = vld [vmem:[#allocation4 + $0x170] sm:$0xff]
    %v182 = vld [vmem:[#allocation4 + $0x178] sm:$0xff]
    %v183 = vld [vmem:[#allocation4 + $0x180] sm:$0xff]
    %v184 = vld [vmem:[#allocation4 + $0x188] sm:$0xff]
    %v185 = vld [vmem:[#allocation4 + $0x190] sm:$0xff]
    %v186 = vld [vmem:[#allocation4 + $0x198] sm:$0xff]
    %v187 = vld [vmem:[#allocation4 + $0x1a0] sm:$0xff]
    %v188 = vld [vmem:[#allocation4 + $0x1a8] sm:$0xff]
    %v189 = vld [vmem:[#allocation4 + $0x1b0] sm:$0xff]
    %v190 = vld [vmem:[#allocation4 + $0x1b8] sm:$0xff]
    %v191 = vld [vmem:[#allocation4 + $0x1c0] sm:$0xff]
    %v192 = vld [vmem:[#allocation4 + $0x1c8] sm:$0xff]
    %v193 = vld [vmem:[#allocation4 + $0x1d0] sm:$0xff]
    %v194 = vld [vmem:[#allocation4 + $0x1d8] sm:$0xff]
    %v195 = vld [vmem:[#allocation4 + $0x1e0] sm:$0xff]
    %v196 = vld [vmem:[#allocation4 + $0x1e8] sm:$0xff]
    %v197 = vld [vmem:[#allocation4 + $0x1f0] sm:$0xff]
    %v198 = vld [vmem:[#allocation4 + $0x1f8] sm:$0xff]
    %v199 = vpack.c.bf16 %v72, %v71
    %v200 = vpack.c.bf16 %v74, %v73
    %v201 = vpack.c.bf16 %v76, %v75
    %v202 = vpack.c.bf16 %v78, %v77
    %v203 = vpack.c.bf16 %v80, %v79
    %v204 = vpack.c.bf16 %v82, %v81
    %v205 = vpack.c.bf16 %v84, %v83
    %v206 = vpack.c.bf16 %v86, %v85
    %v207 = vpack.c.bf16 %v88, %v87
    %v208 = vpack.c.bf16 %v90, %v89
    %v209 = vpack.c.bf16 %v92, %v91
    %v210 = vpack.c.bf16 %v94, %v93
    %v211 = vpack.c.bf16 %v96, %v95
    %v212 = vpack.c.bf16 %v98, %v97
    %v213 = vpack.c.bf16 %v100, %v99
    %v214 = vpack.c.bf16 %v102, %v101
    %v215 = vpack.c.bf16 %v104, %v103
    %v216 = vpack.c.bf16 %v106, %v105
    %v217 = vpack.c.bf16 %v108, %v107
    %v218 = vpack.c.bf16 %v110, %v109
    %v219 = vpack.c.bf16 %v112, %v111
    %v220 = vpack.c.bf16 %v114, %v113
    %v221 = vpack.c.bf16 %v116, %v115
    %v222 = vpack.c.bf16 %v118, %v117
    %v223 = vpack.c.bf16 %v120, %v119
    %v224 = vpack.c.bf16 %v122, %v121
    %v225 = vpack.c.bf16 %v124, %v123
    %v226 = vpack.c.bf16 %v126, %v125
    %v227 = vpack.c.bf16 %v128, %v127
    %v228 = vpack.c.bf16 %v130, %v129
    %v229 = vpack.c.bf16 %v132, %v131
    %v230 = vpack.c.bf16 %v134, %v133
    %v231 = vpack.c.bf16 %v136, %v135
    %v232 = vpack.c.bf16 %v138, %v137
    %v233 = vpack.c.bf16 %v140, %v139
    %v234 = vpack.c.bf16 %v142, %v141
    %v235 = vpack.c.bf16 %v144, %v143
    %v236 = vpack.c.bf16 %v146, %v145
    %v237 = vpack.c.bf16 %v148, %v147
    %v238 = vpack.c.bf16 %v150, %v149
    %v239 = vpack.c.bf16 %v152, %v151
    %v240 = vpack.c.bf16 %v154, %v153
    %v241 = vpack.c.bf16 %v156, %v155
    %v242 = vpack.c.bf16 %v158, %v157
    %v243 = vpack.c.bf16 %v160, %v159
    %v244 = vpack.c.bf16 %v162, %v161
    %v245 = vpack.c.bf16 %v164, %v163
    %v246 = vpack.c.bf16 %v166, %v165
    %v247 = vpack.c.bf16 %v168, %v167
    %v248 = vpack.c.bf16 %v170, %v169
    %v249 = vpack.c.bf16 %v172, %v171
    %v250 = vpack.c.bf16 %v174, %v173
    %v251 = vpack.c.bf16 %v176, %v175
    %v252 = vpack.c.bf16 %v178, %v177
    %v253 = vpack.c.bf16 %v180, %v179
    %v254 = vpack.c.bf16 %v182, %v181
    %v255 = vpack.c.bf16 %v184, %v183
    %v256 = vpack.c.bf16 %v186, %v185
    %v257 = vpack.c.bf16 %v188, %v187
    %v258 = vpack.c.bf16 %v190, %v189
    %v259 = vpack.c.bf16 %v192, %v191
    %v260 = vpack.c.bf16 %v194, %v193
    %v261 = vpack.c.bf16 %v196, %v195
    %v262 = vpack.c.bf16 %v198, %v197
    %v263 = vld [vmem:[#allocation6] sm:$0xf]
    %v264 = vld [vmem:[#allocation6 + $0x1c] sm:$0xf]
    %v265 = vld [vmem:[#allocation6 + $0x38] sm:$0xf]
    %v266 = vld [vmem:[#allocation6 + $0x54] sm:$0xf]
    %v267 = vld [vmem:[#allocation7] sm:$0x1]
    %v269 = vlaneseq
    %v270 = vshrl.u32 %v269, 7
    %v271 = vsub.s32 0, %v270
    %v272 = vrot.slane %v267, %v271
    %v278 = vunpack.c.l.b16 %v263
    %v279 = vunpack.c.l.b16 %v264
    %v280 = vunpack.c.l.b16 %v265
    %v281 = vunpack.c.l.b16 %v266
    %v282 = vpack.c.b16 %v279, %v278
    %v283 = vpack.c.b16 %v281, %v280
    %vm286 = vcmask 261120
    %v288 = vsel %vm286, %v199, 0
    %v291 = vsel %vm286, %v200, 0
    %v294 = vsel %vm286, %v201, 0
    %v297 = vsel %vm286, %v202, 0
    %v300 = vsel %vm286, %v203, 0
    %v303 = vsel %vm286, %v204, 0
    %v306 = vsel %vm286, %v205, 0
    %v309 = vsel %vm286, %v206, 0
    %v312 = vsel %vm286, %v207, 0
    %v315 = vsel %vm286, %v208, 0
    %v318 = vsel %vm286, %v209, 0
    %v321 = vsel %vm286, %v210, 0
    %v324 = vsel %vm286, %v211, 0
    %v327 = vsel %vm286, %v212, 0
    %v330 = vsel %vm286, %v213, 0
    %v333 = vsel %vm286, %v214, 0
    %v336 = vsel %vm286, %v215, 0
    %v339 = vsel %vm286, %v216, 0
    %v342 = vsel %vm286, %v217, 0
    %v345 = vsel %vm286, %v218, 0
    %v348 = vsel %vm286, %v219, 0
    %v351 = vsel %vm286, %v220, 0
    %v354 = vsel %vm286, %v221, 0
    %v357 = vsel %vm286, %v222, 0
    %v360 = vsel %vm286, %v223, 0
    %v363 = vsel %vm286, %v224, 0
    %v366 = vsel %vm286, %v225, 0
    %v369 = vsel %vm286, %v226, 0
    %v372 = vsel %vm286, %v227, 0
    %v375 = vsel %vm286, %v228, 0
    %v378 = vsel %vm286, %v229, 0
    %v381 = vsel %vm286, %v230, 0
    %383 = vmatprep.subr.bf16.mxu0 0
    %384 = vmatpush1.bf16.msra.mxu0 0
    %385 = vmatprep.subr.bf16.mxu0 0
    %386 = vmatpush1.bf16.msra.mxu0 0
    %387 = vmatprep.subr.bf16.mxu0 0
    %388 = vmatpush1.bf16.msra.mxu0 0
    %389 = vmatprep.subr.bf16.mxu0 0
    %390 = vmatpush1.bf16.msra.mxu0 0
    %391 = vmatprep.subr.bf16.mxu0 0
    %392 = vmatpush1.bf16.msra.mxu0 0
    %393 = vmatprep.subr.bf16.mxu0 0
    %394 = vmatpush1.bf16.msra.mxu0 0
    %395 = vmatprep.subr.bf16.mxu0 0
    %396 = vmatpush1.bf16.msra.mxu0 %v283
    %397 = vmatprep.subr.bf16.mxu0 0
    %398 = vmatpush1.bf16.msra.mxu0 %v282
    %399 = vmatprep.subr.bf16.mxu0 0
    %400 = vmatpush2.bf16.msra.mxu0 0
    %401 = vmatprep.subr.bf16.mxu0 0
    %402 = vmatpush2.bf16.msra.mxu0 0
    %403 = vmatprep.subr.bf16.mxu0 0
    %404 = vmatpush2.bf16.msra.mxu0 0
    %405 = vmatprep.subr.bf16.mxu0 0
    %406 = vmatpush2.bf16.msra.mxu0 0
    %407 = vmatprep.subr.bf16.mxu0 0
    %408 = vmatpush2.bf16.msra.mxu0 0
    %409 = vmatprep.subr.bf16.mxu0 0
    %410 = vmatpush2.bf16.msra.mxu0 0
    %411 = vmatprep.subr.bf16.mxu0 0
    %412 = vmatpush2.bf16.msra.mxu0 0
    %413 = vmatprep.subr.bf16.mxu0 0
    %414 = vmatpush2.bf16.msra.mxu0 0
    %415 = vmatprep.mubr.bf16.mxu0 0
    %416 = vmatmul.mubr.bf16.gmra.mxu0 %v288
    %v417 = vpop.f32.mrf.mxu0
    %v418 = vadd.f32 %v272, %v417
    %v419 = vpop.f32.mrf.mxu0
    %v420 = vpop.f32.mrf.mxu0
    %v421 = vadd.f32 %v272, %v420
    %v422 = vpop.f32.mrf.mxu0
    %423 = vmatprep.mubr.bf16.mxu0 0
    %424 = vmatmul.mubr.bf16.gmra.mxu0 %v291
    %v425 = vpop.f32.mrf.mxu0
    %v426 = vadd.f32 %v272, %v425
    %v427 = vpop.f32.mrf.mxu0
    %v428 = vpop.f32.mrf.mxu0
    %v429 = vadd.f32 %v272, %v428
    %v430 = vpop.f32.mrf.mxu0
    %431 = vmatprep.mubr.bf16.mxu0 0
    %432 = vmatmul.mubr.bf16.gmra.mxu0 %v294
    %v433 = vpop.f32.mrf.mxu0
    %v434 = vadd.f32 %v272, %v433
    %v435 = vpop.f32.mrf.mxu0
    %v436 = vpop.f32.mrf.mxu0
    %v437 = vadd.f32 %v272, %v436
    %v438 = vpop.f32.mrf.mxu0
    %439 = vmatprep.mubr.bf16.mxu0 0
    %440 = vmatmul.mubr.bf16.gmra.mxu0 %v297
    %v441 = vpop.f32.mrf.mxu0
    %v442 = vadd.f32 %v272, %v441
    %v443 = vpop.f32.mrf.mxu0
    %v444 = vpop.f32.mrf.mxu0
    %v445 = vadd.f32 %v272, %v444
    %v446 = vpop.f32.mrf.mxu0
    %447 = vmatprep.mubr.bf16.mxu0 0
    %448 = vmatmul.mubr.bf16.gmra.mxu0 %v300
    %v449 = vpop.f32.mrf.mxu0
    %v450 = vadd.f32 %v272, %v449
    %v451 = vpop.f32.mrf.mxu0
    %v452 = vpop.f32.mrf.mxu0
    %v453 = vadd.f32 %v272, %v452
    %v454 = vpop.f32.mrf.mxu0
    %455 = vmatprep.mubr.bf16.mxu0 0
    %456 = vmatmul.mubr.bf16.gmra.mxu0 %v303
    %v457 = vpop.f32.mrf.mxu0
    %v458 = vadd.f32 %v272, %v457
    %v459 = vpop.f32.mrf.mxu0
    %v460 = vpop.f32.mrf.mxu0
    %v461 = vadd.f32 %v272, %v460
    %v462 = vpop.f32.mrf.mxu0
    %463 = vmatprep.mubr.bf16.mxu0 0
    %464 = vmatmul.mubr.bf16.gmra.mxu0 %v306
    %v465 = vpop.f32.mrf.mxu0
    %v466 = vadd.f32 %v272, %v465
    %v467 = vpop.f32.mrf.mxu0
    %v468 = vpop.f32.mrf.mxu0
    %v469 = vadd.f32 %v272, %v468
    %v470 = vpop.f32.mrf.mxu0
    %471 = vmatprep.mubr.bf16.mxu0 0
    %472 = vmatmul.mubr.bf16.gmra.mxu0 %v309
    %v473 = vpop.f32.mrf.mxu0
    %v474 = vadd.f32 %v272, %v473
    %v475 = vpop.f32.mrf.mxu0
    %v476 = vpop.f32.mrf.mxu0
    %v477 = vadd.f32 %v272, %v476
    %v478 = vpop.f32.mrf.mxu0
    %479 = vmatprep.mubr.bf16.mxu0 0
    %480 = vmatmul.mubr.bf16.gmra.mxu0 %v312
    %v481 = vpop.f32.mrf.mxu0
    %v482 = vadd.f32 %v272, %v481
    %v483 = vpop.f32.mrf.mxu0
    %v484 = vpop.f32.mrf.mxu0
    %v485 = vadd.f32 %v272, %v484
    %v486 = vpop.f32.mrf.mxu0
    %487 = vmatprep.mubr.bf16.mxu0 0
    %488 = vmatmul.mubr.bf16.gmra.mxu0 %v315
    %v489 = vpop.f32.mrf.mxu0
    %v490 = vadd.f32 %v272, %v489
    %v491 = vpop.f32.mrf.mxu0
    %v492 = vpop.f32.mrf.mxu0
    %v493 = vadd.f32 %v272, %v492
    %v494 = vpop.f32.mrf.mxu0
    %495 = vmatprep.mubr.bf16.mxu0 0
    %496 = vmatmul.mubr.bf16.gmra.mxu0 %v318
    %v497 = vpop.f32.mrf.mxu0
    %v498 = vadd.f32 %v272, %v497
    %v499 = vpop.f32.mrf.mxu0
    %v500 = vpop.f32.mrf.mxu0
    %v501 = vadd.f32 %v272, %v500
    %v502 = vpop.f32.mrf.mxu0
    %503 = vmatprep.mubr.bf16.mxu0 0
    %504 = vmatmul.mubr.bf16.gmra.mxu0 %v321
    %v505 = vpop.f32.mrf.mxu0
    %v506 = vadd.f32 %v272, %v505
    %v507 = vpop.f32.mrf.mxu0
    %v508 = vpop.f32.mrf.mxu0
    %v509 = vadd.f32 %v272, %v508
    %v510 = vpop.f32.mrf.mxu0
    %511 = vmatprep.mubr.bf16.mxu0 0
    %512 = vmatmul.mubr.bf16.gmra.mxu0 %v324
    %v513 = vpop.f32.mrf.mxu0
    %v514 = vadd.f32 %v272, %v513
    %v515 = vpop.f32.mrf.mxu0
    %v516 = vpop.f32.mrf.mxu0
    %v517 = vadd.f32 %v272, %v516
    %v518 = vpop.f32.mrf.mxu0
    %519 = vmatprep.mubr.bf16.mxu0 0
    %520 = vmatmul.mubr.bf16.gmra.mxu0 %v327
    %v521 = vpop.f32.mrf.mxu0
    %v522 = vadd.f32 %v272, %v521
    %v523 = vpop.f32.mrf.mxu0
    %v524 = vpop.f32.mrf.mxu0
    %v525 = vadd.f32 %v272, %v524
    %v526 = vpop.f32.mrf.mxu0
    %527 = vmatprep.mubr.bf16.mxu0 0
    %528 = vmatmul.mubr.bf16.gmra.mxu0 %v330
    %v529 = vpop.f32.mrf.mxu0
    %v530 = vadd.f32 %v272, %v529
    %v531 = vpop.f32.mrf.mxu0
    %v532 = vpop.f32.mrf.mxu0
    %v533 = vadd.f32 %v272, %v532
    %v534 = vpop.f32.mrf.mxu0
    %535 = vmatprep.mubr.bf16.mxu0 0
    %536 = vmatmul.mubr.bf16.gmra.mxu0 %v333
    %v537 = vpop.f32.mrf.mxu0
    %v538 = vadd.f32 %v272, %v537
    %v539 = vpop.f32.mrf.mxu0
    %v540 = vpop.f32.mrf.mxu0
    %v541 = vadd.f32 %v272, %v540
    %v542 = vpop.f32.mrf.mxu0
    %543 = vmatprep.mubr.bf16.mxu0 0
    %544 = vmatmul.mubr.bf16.gmra.mxu0 %v336
    %v545 = vpop.f32.mrf.mxu0
    %v546 = vadd.f32 %v272, %v545
    %v547 = vpop.f32.mrf.mxu0
    %v548 = vpop.f32.mrf.mxu0
    %v549 = vadd.f32 %v272, %v548
    %v550 = vpop.f32.mrf.mxu0
    %551 = vmatprep.mubr.bf16.mxu0 0
    %552 = vmatmul.mubr.bf16.gmra.mxu0 %v339
    %v553 = vpop.f32.mrf.mxu0
    %v554 = vadd.f32 %v272, %v553
    %v555 = vpop.f32.mrf.mxu0
    %v556 = vpop.f32.mrf.mxu0
    %v557 = vadd.f32 %v272, %v556
    %v558 = vpop.f32.mrf.mxu0
    %559 = vmatprep.mubr.bf16.mxu0 0
    %560 = vmatmul.mubr.bf16.gmra.mxu0 %v342
    %v561 = vpop.f32.mrf.mxu0
    %v562 = vadd.f32 %v272, %v561
    %v563 = vpop.f32.mrf.mxu0
    %v564 = vpop.f32.mrf.mxu0
    %v565 = vadd.f32 %v272, %v564
    %v566 = vpop.f32.mrf.mxu0
    %567 = vmatprep.mubr.bf16.mxu0 0
    %568 = vmatmul.mubr.bf16.gmra.mxu0 %v345
    %v569 = vpop.f32.mrf.mxu0
    %v570 = vadd.f32 %v272, %v569
    %v571 = vpop.f32.mrf.mxu0
    %v572 = vpop.f32.mrf.mxu0
    %v573 = vadd.f32 %v272, %v572
    %v574 = vpop.f32.mrf.mxu0
    %575 = vmatprep.mubr.bf16.mxu0 0
    %576 = vmatmul.mubr.bf16.gmra.mxu0 %v348
    %v577 = vpop.f32.mrf.mxu0
    %v578 = vadd.f32 %v272, %v577
    %v579 = vpop.f32.mrf.mxu0
    %v580 = vpop.f32.mrf.mxu0
    %v581 = vadd.f32 %v272, %v580
    %v582 = vpop.f32.mrf.mxu0
    %583 = vmatprep.mubr.bf16.mxu0 0
    %584 = vmatmul.mubr.bf16.gmra.mxu0 %v351
    %v585 = vpop.f32.mrf.mxu0
    %v586 = vadd.f32 %v272, %v585
    %v587 = vpop.f32.mrf.mxu0
    %v588 = vpop.f32.mrf.mxu0
    %v589 = vadd.f32 %v272, %v588
    %v590 = vpop.f32.mrf.mxu0
    %591 = vmatprep.mubr.bf16.mxu0 0
    %592 = vmatmul.mubr.bf16.gmra.mxu0 %v354
    %v593 = vpop.f32.mrf.mxu0
    %v594 = vadd.f32 %v272, %v593
    %v595 = vpop.f32.mrf.mxu0
    %v596 = vpop.f32.mrf.mxu0
    %v597 = vadd.f32 %v272, %v596
    %v598 = vpop.f32.mrf.mxu0
    %599 = vmatprep.mubr.bf16.mxu0 0
    %600 = vmatmul.mubr.bf16.gmra.mxu0 %v357
    %v601 = vpop.f32.mrf.mxu0
    %v602 = vadd.f32 %v272, %v601
    %v603 = vpop.f32.mrf.mxu0
    %v604 = vpop.f32.mrf.mxu0
    %v605 = vadd.f32 %v272, %v604
    %v606 = vpop.f32.mrf.mxu0
    %607 = vmatprep.mubr.bf16.mxu0 0
    %608 = vmatmul.mubr.bf16.gmra.mxu0 %v360
    %v609 = vpop.f32.mrf.mxu0
    %v610 = vadd.f32 %v272, %v609
    %v611 = vpop.f32.mrf.mxu0
    %v612 = vpop.f32.mrf.mxu0
    %v613 = vadd.f32 %v272, %v612
    %v614 = vpop.f32.mrf.mxu0
    %615 = vmatprep.mubr.bf16.mxu0 0
    %616 = vmatmul.mubr.bf16.gmra.mxu0 %v363
    %v617 = vpop.f32.mrf.mxu0
    %v618 = vadd.f32 %v272, %v617
    %v619 = vpop.f32.mrf.mxu0
    %v620 = vpop.f32.mrf.mxu0
    %v621 = vadd.f32 %v272, %v620
    %v622 = vpop.f32.mrf.mxu0
    %623 = vmatprep.mubr.bf16.mxu0 0
    %624 = vmatmul.mubr.bf16.gmra.mxu0 %v366
    %v625 = vpop.f32.mrf.mxu0
    %v626 = vadd.f32 %v272, %v625
    %v627 = vpop.f32.mrf.mxu0
    %v628 = vpop.f32.mrf.mxu0
    %v629 = vadd.f32 %v272, %v628
    %v630 = vpop.f32.mrf.mxu0
    %631 = vmatprep.mubr.bf16.mxu0 0
    %632 = vmatmul.mubr.bf16.gmra.mxu0 %v369
    %v633 = vpop.f32.mrf.mxu0
    %v634 = vadd.f32 %v272, %v633
    %v635 = vpop.f32.mrf.mxu0
    %v636 = vpop.f32.mrf.mxu0
    %v637 = vadd.f32 %v272, %v636
    %v638 = vpop.f32.mrf.mxu0
    %639 = vmatprep.mubr.bf16.mxu0 0
    %640 = vmatmul.mubr.bf16.gmra.mxu0 %v372
    %v641 = vpop.f32.mrf.mxu0
    %v642 = vadd.f32 %v272, %v641
    %v643 = vpop.f32.mrf.mxu0
    %v644 = vpop.f32.mrf.mxu0
    %v645 = vadd.f32 %v272, %v644
    %v646 = vpop.f32.mrf.mxu0
    %647 = vmatprep.mubr.bf16.mxu0 0
    %648 = vmatmul.mubr.bf16.gmra.mxu0 %v375
    %v649 = vpop.f32.mrf.mxu0
    %v650 = vadd.f32 %v272, %v649
    %v651 = vpop.f32.mrf.mxu0
    %v652 = vpop.f32.mrf.mxu0
    %v653 = vadd.f32 %v272, %v652
    %v654 = vpop.f32.mrf.mxu0
    %655 = vmatprep.mubr.bf16.mxu0 0
    %656 = vmatmul.mubr.bf16.gmra.mxu0 %v378
    %v657 = vpop.f32.mrf.mxu0
    %v658 = vadd.f32 %v272, %v657
    %v659 = vpop.f32.mrf.mxu0
    %v660 = vpop.f32.mrf.mxu0
    %v661 = vadd.f32 %v272, %v660
    %v662 = vpop.f32.mrf.mxu0
    %663 = vmatprep.mubr.bf16.mxu0 0
    %664 = vmatmul.mubr.bf16.gmra.mxu0 %v381
    %v665 = vpop.f32.mrf.mxu0
    %v666 = vadd.f32 %v272, %v665
    %v667 = vpop.f32.mrf.mxu0
    %v668 = vpop.f32.mrf.mxu0
    %v669 = vadd.f32 %v272, %v668
    %v670 = vpop.f32.mrf.mxu0
    %671 = vdwg.mxu0
    %v672 = vld [vmem:[#allocation6 + $0x4] sm:$0xf]
    %v673 = vld [vmem:[#allocation6 + $0x20] sm:$0xf]
    %v674 = vld [vmem:[#allocation6 + $0x3c] sm:$0xf]
    %v675 = vld [vmem:[#allocation6 + $0x58] sm:$0xf]
    %v676 = vld [vmem:[#allocation7 + $0x1] sm:$0x1]
    %v678 = vlaneseq
    %v679 = vshrl.u32 %v678, 7
    %v680 = vsub.s32 0, %v679
    %v681 = vrot.slane %v676, %v680
    %v687 = vunpack.c.l.b16 %v672
    %v688 = vunpack.c.l.b16 %v673
    %v689 = vunpack.c.l.b16 %v674
    %v690 = vunpack.c.l.b16 %v675
    %v691 = vpack.c.b16 %v688, %v687
    %v692 = vpack.c.b16 %v690, %v689
    %695 = vmatprep.subr.bf16.mxu0 0
    %696 = vmatpush1.bf16.msra.mxu0 0
    %697 = vmatprep.subr.bf16.mxu0 0
    %698 = vmatpush1.bf16.msra.mxu0 0
    %699 = vmatprep.subr.bf16.mxu0 0
    %700 = vmatpush1.bf16.msra.mxu0 0
    %701 = vmatprep.subr.bf16.mxu0 0
    %702 = vmatpush1.bf16.msra.mxu0 0
    %703 = vmatprep.subr.bf16.mxu0 0
    %704 = vmatpush1.bf16.msra.mxu0 0
    %705 = vmatprep.subr.bf16.mxu0 0
    %706 = vmatpush1.bf16.msra.mxu0 0
    %707 = vmatprep.subr.bf16.mxu0 0
    %708 = vmatpush1.bf16.msra.mxu0 %v692
    %709 = vmatprep.subr.bf16.mxu0 0
    %710 = vmatpush1.bf16.msra.mxu0 %v691
    %711 = vmatprep.subr.bf16.mxu0 0
    %712 = vmatpush2.bf16.msra.mxu0 0
    %713 = vmatprep.subr.bf16.mxu0 0
    %714 = vmatpush2.bf16.msra.mxu0 0
    %715 = vmatprep.subr.bf16.mxu0 0
    %716 = vmatpush2.bf16.msra.mxu0 0
    %717 = vmatprep.subr.bf16.mxu0 0
    %718 = vmatpush2.bf16.msra.mxu0 0
    %719 = vmatprep.subr.bf16.mxu0 0
    %720 = vmatpush2.bf16.msra.mxu0 0
    %721 = vmatprep.subr.bf16.mxu0 0
    %722 = vmatpush2.bf16.msra.mxu0 0
    %723 = vmatprep.subr.bf16.mxu0 0
    %724 = vmatpush2.bf16.msra.mxu0 0
    %725 = vmatprep.subr.bf16.mxu0 0
    %726 = vmatpush2.bf16.msra.mxu0 0
    %727 = vmatprep.mubr.bf16.mxu0 0
    %728 = vmatmul.mubr.bf16.gmra.mxu0 %v288
    %v729 = vpop.f32.mrf.mxu0
    %v730 = vadd.f32 %v681, %v729
    %v731 = vpop.f32.mrf.mxu0
    %v732 = vpop.f32.mrf.mxu0
    %v733 = vadd.f32 %v681, %v732
    %v734 = vpop.f32.mrf.mxu0
    %735 = vmatprep.mubr.bf16.mxu0 0
    %736 = vmatmul.mubr.bf16.gmra.mxu0 %v291
    %v737 = vpop.f32.mrf.mxu0
    %v738 = vadd.f32 %v681, %v737
    %v739 = vpop.f32.mrf.mxu0
    %v740 = vpop.f32.mrf.mxu0
    %v741 = vadd.f32 %v681, %v740
    %v742 = vpop.f32.mrf.mxu0
    %743 = vmatprep.mubr.bf16.mxu0 0
    %744 = vmatmul.mubr.bf16.gmra.mxu0 %v294
    %v745 = vpop.f32.mrf.mxu0
    %v746 = vadd.f32 %v681, %v745
    %v747 = vpop.f32.mrf.mxu0
    %v748 = vpop.f32.mrf.mxu0
    %v749 = vadd.f32 %v681, %v748
    %v750 = vpop.f32.mrf.mxu0
    %751 = vmatprep.mubr.bf16.mxu0 0
    %752 = vmatmul.mubr.bf16.gmra.mxu0 %v297
    %v753 = vpop.f32.mrf.mxu0
    %v754 = vadd.f32 %v681, %v753
    %v755 = vpop.f32.mrf.mxu0
    %v756 = vpop.f32.mrf.mxu0
    %v757 = vadd.f32 %v681, %v756
    %v758 = vpop.f32.mrf.mxu0
    %759 = vmatprep.mubr.bf16.mxu0 0
    %760 = vmatmul.mubr.bf16.gmra.mxu0 %v300
    %v761 = vpop.f32.mrf.mxu0
    %v762 = vadd.f32 %v681, %v761
    %v763 = vpop.f32.mrf.mxu0
    %v764 = vpop.f32.mrf.mxu0
    %v765 = vadd.f32 %v681, %v764
    %v766 = vpop.f32.mrf.mxu0
    %767 = vmatprep.mubr.bf16.mxu0 0
    %768 = vmatmul.mubr.bf16.gmra.mxu0 %v303
    %v769 = vpop.f32.mrf.mxu0
    %v770 = vadd.f32 %v681, %v769
    %v771 = vpop.f32.mrf.mxu0
    %v772 = vpop.f32.mrf.mxu0
    %v773 = vadd.f32 %v681, %v772
    %v774 = vpop.f32.mrf.mxu0
    %775 = vmatprep.mubr.bf16.mxu0 0
    %776 = vmatmul.mubr.bf16.gmra.mxu0 %v306
    %v777 = vpop.f32.mrf.mxu0
    %v778 = vadd.f32 %v681, %v777
    %v779 = vpop.f32.mrf.mxu0
    %v780 = vpop.f32.mrf.mxu0
    %v781 = vadd.f32 %v681, %v780
    %v782 = vpop.f32.mrf.mxu0
    %783 = vmatprep.mubr.bf16.mxu0 0
    %784 = vmatmul.mubr.bf16.gmra.mxu0 %v309
    %v785 = vpop.f32.mrf.mxu0
    %v786 = vadd.f32 %v681, %v785
    %v787 = vpop.f32.mrf.mxu0
    %v788 = vpop.f32.mrf.mxu0
    %v789 = vadd.f32 %v681, %v788
    %v790 = vpop.f32.mrf.mxu0
    %791 = vmatprep.mubr.bf16.mxu0 0
    %792 = vmatmul.mubr.bf16.gmra.mxu0 %v312
    %v793 = vpop.f32.mrf.mxu0
    %v794 = vadd.f32 %v681, %v793
    %v795 = vpop.f32.mrf.mxu0
    %v796 = vpop.f32.mrf.mxu0
    %v797 = vadd.f32 %v681, %v796
    %v798 = vpop.f32.mrf.mxu0
    %799 = vmatprep.mubr.bf16.mxu0 0
    %800 = vmatmul.mubr.bf16.gmra.mxu0 %v315
    %v801 = vpop.f32.mrf.mxu0
    %v802 = vadd.f32 %v681, %v801
    %v803 = vpop.f32.mrf.mxu0
    %v804 = vpop.f32.mrf.mxu0
    %v805 = vadd.f32 %v681, %v804
    %v806 = vpop.f32.mrf.mxu0
    %807 = vmatprep.mubr.bf16.mxu0 0
    %808 = vmatmul.mubr.bf16.gmra.mxu0 %v318
    %v809 = vpop.f32.mrf.mxu0
    %v810 = vadd.f32 %v681, %v809
    %v811 = vpop.f32.mrf.mxu0
    %v812 = vpop.f32.mrf.mxu0
    %v813 = vadd.f32 %v681, %v812
    %v814 = vpop.f32.mrf.mxu0
    %815 = vmatprep.mubr.bf16.mxu0 0
    %816 = vmatmul.mubr.bf16.gmra.mxu0 %v321
    %v817 = vpop.f32.mrf.mxu0
    %v818 = vadd.f32 %v681, %v817
    %v819 = vpop.f32.mrf.mxu0
    %v820 = vpop.f32.mrf.mxu0
    %v821 = vadd.f32 %v681, %v820
    %v822 = vpop.f32.mrf.mxu0
    %823 = vmatprep.mubr.bf16.mxu0 0
    %824 = vmatmul.mubr.bf16.gmra.mxu0 %v324
    %v825 = vpop.f32.mrf.mxu0
    %v826 = vadd.f32 %v681, %v825
    %v827 = vpop.f32.mrf.mxu0
    %v828 = vpop.f32.mrf.mxu0
    %v829 = vadd.f32 %v681, %v828
    %v830 = vpop.f32.mrf.mxu0
    %831 = vmatprep.mubr.bf16.mxu0 0
    %832 = vmatmul.mubr.bf16.gmra.mxu0 %v327
    %v833 = vpop.f32.mrf.mxu0
    %v834 = vadd.f32 %v681, %v833
    %v835 = vpop.f32.mrf.mxu0
    %v836 = vpop.f32.mrf.mxu0
    %v837 = vadd.f32 %v681, %v836
    %v838 = vpop.f32.mrf.mxu0
    %839 = vmatprep.mubr.bf16.mxu0 0
    %840 = vmatmul.mubr.bf16.gmra.mxu0 %v330
    %v841 = vpop.f32.mrf.mxu0
    %v842 = vadd.f32 %v681, %v841
    %v843 = vpop.f32.mrf.mxu0
    %v844 = vpop.f32.mrf.mxu0
    %v845 = vadd.f32 %v681, %v844
    %v846 = vpop.f32.mrf.mxu0
    %847 = vmatprep.mubr.bf16.mxu0 0
    %848 = vmatmul.mubr.bf16.gmra.mxu0 %v333
    %v849 = vpop.f32.mrf.mxu0
    %v850 = vadd.f32 %v681, %v849
    %v851 = vpop.f32.mrf.mxu0
    %v852 = vpop.f32.mrf.mxu0
    %v853 = vadd.f32 %v681, %v852
    %v854 = vpop.f32.mrf.mxu0
    %855 = vmatprep.mubr.bf16.mxu0 0
    %856 = vmatmul.mubr.bf16.gmra.mxu0 %v336
    %v857 = vpop.f32.mrf.mxu0
    %v858 = vadd.f32 %v681, %v857
    %v859 = vpop.f32.mrf.mxu0
    %v860 = vpop.f32.mrf.mxu0
    %v861 = vadd.f32 %v681, %v860
    %v862 = vpop.f32.mrf.mxu0
    %863 = vmatprep.mubr.bf16.mxu0 0
    %864 = vmatmul.mubr.bf16.gmra.mxu0 %v339
    %v865 = vpop.f32.mrf.mxu0
    %v866 = vadd.f32 %v681, %v865
    %v867 = vpop.f32.mrf.mxu0
    %v868 = vpop.f32.mrf.mxu0
    %v869 = vadd.f32 %v681, %v868
    %v870 = vpop.f32.mrf.mxu0
    %871 = vmatprep.mubr.bf16.mxu0 0
    %872 = vmatmul.mubr.bf16.gmra.mxu0 %v342
    %v873 = vpop.f32.mrf.mxu0
    %v874 = vadd.f32 %v681, %v873
    %v875 = vpop.f32.mrf.mxu0
    %v876 = vpop.f32.mrf.mxu0
    %v877 = vadd.f32 %v681, %v876
    %v878 = vpop.f32.mrf.mxu0
    %879 = vmatprep.mubr.bf16.mxu0 0
    %880 = vmatmul.mubr.bf16.gmra.mxu0 %v345
    %v881 = vpop.f32.mrf.mxu0
    %v882 = vadd.f32 %v681, %v881
    %v883 = vpop.f32.mrf.mxu0
    %v884 = vpop.f32.mrf.mxu0
    %v885 = vadd.f32 %v681, %v884
    %v886 = vpop.f32.mrf.mxu0
    %887 = vmatprep.mubr.bf16.mxu0 0
    %888 = vmatmul.mubr.bf16.gmra.mxu0 %v348
    %v889 = vpop.f32.mrf.mxu0
    %v890 = vadd.f32 %v681, %v889
    %v891 = vpop.f32.mrf.mxu0
    %v892 = vpop.f32.mrf.mxu0
    %v893 = vadd.f32 %v681, %v892
    %v894 = vpop.f32.mrf.mxu0
    %895 = vmatprep.mubr.bf16.mxu0 0
    %896 = vmatmul.mubr.bf16.gmra.mxu0 %v351
    %v897 = vpop.f32.mrf.mxu0
    %v898 = vadd.f32 %v681, %v897
    %v899 = vpop.f32.mrf.mxu0
    %v900 = vpop.f32.mrf.mxu0
    %v901 = vadd.f32 %v681, %v900
    %v902 = vpop.f32.mrf.mxu0
    %903 = vmatprep.mubr.bf16.mxu0 0
    %904 = vmatmul.mubr.bf16.gmra.mxu0 %v354
    %v905 = vpop.f32.mrf.mxu0
    %v906 = vadd.f32 %v681, %v905
    %v907 = vpop.f32.mrf.mxu0
    %v908 = vpop.f32.mrf.mxu0
    %v909 = vadd.f32 %v681, %v908
    %v910 = vpop.f32.mrf.mxu0
    %911 = vmatprep.mubr.bf16.mxu0 0
    %912 = vmatmul.mubr.bf16.gmra.mxu0 %v357
    %v913 = vpop.f32.mrf.mxu0
    %v914 = vadd.f32 %v681, %v913
    %v915 = vpop.f32.mrf.mxu0
    %v916 = vpop.f32.mrf.mxu0
    %v917 = vadd.f32 %v681, %v916
    %v918 = vpop.f32.mrf.mxu0
    %919 = vmatprep.mubr.bf16.mxu0 0
    %920 = vmatmul.mubr.bf16.gmra.mxu0 %v360
    %v921 = vpop.f32.mrf.mxu0
    %v922 = vadd.f32 %v681, %v921
    %v923 = vpop.f32.mrf.mxu0
    %v924 = vpop.f32.mrf.mxu0
    %v925 = vadd.f32 %v681, %v924
    %v926 = vpop.f32.mrf.mxu0
    %927 = vmatprep.mubr.bf16.mxu0 0
    %928 = vmatmul.mubr.bf16.gmra.mxu0 %v363
    %v929 = vpop.f32.mrf.mxu0
    %v930 = vadd.f32 %v681, %v929
    %v931 = vpop.f32.mrf.mxu0
    %v932 = vpop.f32.mrf.mxu0
    %v933 = vadd.f32 %v681, %v932
    %v934 = vpop.f32.mrf.mxu0
    %935 = vmatprep.mubr.bf16.mxu0 0
    %936 = vmatmul.mubr.bf16.gmra.mxu0 %v366
    %v937 = vpop.f32.mrf.mxu0
    %v938 = vadd.f32 %v681, %v937
    %v939 = vpop.f32.mrf.mxu0
    %v940 = vpop.f32.mrf.mxu0
    %v941 = vadd.f32 %v681, %v940
    %v942 = vpop.f32.mrf.mxu0
    %943 = vmatprep.mubr.bf16.mxu0 0
    %944 = vmatmul.mubr.bf16.gmra.mxu0 %v369
    %v945 = vpop.f32.mrf.mxu0
    %v946 = vadd.f32 %v681, %v945
    %v947 = vpop.f32.mrf.mxu0
    %v948 = vpop.f32.mrf.mxu0
    %v949 = vadd.f32 %v681, %v948
    %v950 = vpop.f32.mrf.mxu0
    %951 = vmatprep.mubr.bf16.mxu0 0
    %952 = vmatmul.mubr.bf16.gmra.mxu0 %v372
    %v953 = vpop.f32.mrf.mxu0
    %v954 = vadd.f32 %v681, %v953
    %v955 = vpop.f32.mrf.mxu0
    %v956 = vpop.f32.mrf.mxu0
    %v957 = vadd.f32 %v681, %v956
    %v958 = vpop.f32.mrf.mxu0
    %959 = vmatprep.mubr.bf16.mxu0 0
    %960 = vmatmul.mubr.bf16.gmra.mxu0 %v375
    %v961 = vpop.f32.mrf.mxu0
    %v962 = vadd.f32 %v681, %v961
    %v963 = vpop.f32.mrf.mxu0
    %v964 = vpop.f32.mrf.mxu0
    %v965 = vadd.f32 %v681, %v964
    %v966 = vpop.f32.mrf.mxu0
    %967 = vmatprep.mubr.bf16.mxu0 0
    %968 = vmatmul.mubr.bf16.gmra.mxu0 %v378
    %v969 = vpop.f32.mrf.mxu0
    %v970 = vadd.f32 %v681, %v969
    %v971 = vpop.f32.mrf.mxu0
    %v972 = vpop.f32.mrf.mxu0
    %v973 = vadd.f32 %v681, %v972
    %v974 = vpop.f32.mrf.mxu0
    %975 = vmatprep.mubr.bf16.mxu0 0
    %976 = vmatmul.mubr.bf16.gmra.mxu0 %v381
    %v977 = vpop.f32.mrf.mxu0
    %v978 = vadd.f32 %v681, %v977
    %v979 = vpop.f32.mrf.mxu0
    %v980 = vpop.f32.mrf.mxu0
    %v981 = vadd.f32 %v681, %v980
    %v982 = vpop.f32.mrf.mxu0
    %983 = vdwg.mxu0
    %v984 = vld [vmem:[#allocation6 + $0x8] sm:$0xf]
    %v985 = vld [vmem:[#allocation6 + $0x24] sm:$0xf]
    %v986 = vld [vmem:[#allocation6 + $0x40] sm:$0xf]
    %v987 = vld [vmem:[#allocation6 + $0x5c] sm:$0xf]
    %v988 = vld [vmem:[#allocation7 + $0x2] sm:$0x1]
    %v990 = vlaneseq
    %v991 = vshrl.u32 %v990, 7
    %v992 = vsub.s32 0, %v991
    %v993 = vrot.slane %v988, %v992
    %v999 = vunpack.c.l.b16 %v984
    %v1000 = vunpack.c.l.b16 %v985
    %v1001 = vunpack.c.l.b16 %v986
    %v1002 = vunpack.c.l.b16 %v987
    %v1003 = vpack.c.b16 %v1000, %v999
    %v1004 = vpack.c.b16 %v1002, %v1001
    %1007 = vmatprep.subr.bf16.mxu0 0
    %1008 = vmatpush1.bf16.msra.mxu0 0
    %1009 = vmatprep.subr.bf16.mxu0 0
    %1010 = vmatpush1.bf16.msra.mxu0 0
    %1011 = vmatprep.subr.bf16.mxu0 0
    %1012 = vmatpush1.bf16.msra.mxu0 0
    %1013 = vmatprep.subr.bf16.mxu0 0
    %1014 = vmatpush1.bf16.msra.mxu0 0
    %1015 = vmatprep.subr.bf16.mxu0 0
    %1016 = vmatpush1.bf16.msra.mxu0 0
    %1017 = vmatprep.subr.bf16.mxu0 0
    %1018 = vmatpush1.bf16.msra.mxu0 0
    %1019 = vmatprep.subr.bf16.mxu0 0
    %1020 = vmatpush1.bf16.msra.mxu0 %v1004
    %1021 = vmatprep.subr.bf16.mxu0 0
    %1022 = vmatpush1.bf16.msra.mxu0 %v1003
    %1023 = vmatprep.subr.bf16.mxu0 0
    %1024 = vmatpush2.bf16.msra.mxu0 0
    %1025 = vmatprep.subr.bf16.mxu0 0
    %1026 = vmatpush2.bf16.msra.mxu0 0
    %1027 = vmatprep.subr.bf16.mxu0 0
    %1028 = vmatpush2.bf16.msra.mxu0 0
    %1029 = vmatprep.subr.bf16.mxu0 0
    %1030 = vmatpush2.bf16.msra.mxu0 0
    %1031 = vmatprep.subr.bf16.mxu0 0
    %1032 = vmatpush2.bf16.msra.mxu0 0
    %1033 = vmatprep.subr.bf16.mxu0 0
    %1034 = vmatpush2.bf16.msra.mxu0 0
    %1035 = vmatprep.subr.bf16.mxu0 0
    %1036 = vmatpush2.bf16.msra.mxu0 0
    %1037 = vmatprep.subr.bf16.mxu0 0
    %1038 = vmatpush2.bf16.msra.mxu0 0
    %1039 = vmatprep.mubr.bf16.mxu0 0
    %1040 = vmatmul.mubr.bf16.gmra.mxu0 %v288
    %v1041 = vpop.f32.mrf.mxu0
    %v1042 = vadd.f32 %v993, %v1041
    %v1043 = vpop.f32.mrf.mxu0
    %v1044 = vpop.f32.mrf.mxu0
    %v1045 = vadd.f32 %v993, %v1044
    %v1046 = vpop.f32.mrf.mxu0
    %1047 = vmatprep.mubr.bf16.mxu0 0
    %1048 = vmatmul.mubr.bf16.gmra.mxu0 %v291
    %v1049 = vpop.f32.mrf.mxu0
    %v1050 = vadd.f32 %v993, %v1049
    %v1051 = vpop.f32.mrf.mxu0
    %v1052 = vpop.f32.mrf.mxu0
    %v1053 = vadd.f32 %v993, %v1052
    %v1054 = vpop.f32.mrf.mxu0
    %1055 = vmatprep.mubr.bf16.mxu0 0
    %1056 = vmatmul.mubr.bf16.gmra.mxu0 %v294
    %v1057 = vpop.f32.mrf.mxu0
    %v1058 = vadd.f32 %v993, %v1057
    %v1059 = vpop.f32.mrf.mxu0
    %v1060 = vpop.f32.mrf.mxu0
    %v1061 = vadd.f32 %v993, %v1060
    %v1062 = vpop.f32.mrf.mxu0
    %1063 = vmatprep.mubr.bf16.mxu0 0
    %1064 = vmatmul.mubr.bf16.gmra.mxu0 %v297
    %v1065 = vpop.f32.mrf.mxu0
    %v1066 = vadd.f32 %v993, %v1065
    %v1067 = vpop.f32.mrf.mxu0
    %v1068 = vpop.f32.mrf.mxu0
    %v1069 = vadd.f32 %v993, %v1068
    %v1070 = vpop.f32.mrf.mxu0
    %1071 = vmatprep.mubr.bf16.mxu0 0
    %1072 = vmatmul.mubr.bf16.gmra.mxu0 %v300
    %v1073 = vpop.f32.mrf.mxu0
    %v1074 = vadd.f32 %v993, %v1073
    %v1075 = vpop.f32.mrf.mxu0
    %v1076 = vpop.f32.mrf.mxu0
    %v1077 = vadd.f32 %v993, %v1076
    %v1078 = vpop.f32.mrf.mxu0
    %1079 = vmatprep.mubr.bf16.mxu0 0
    %1080 = vmatmul.mubr.bf16.gmra.mxu0 %v303
    %v1081 = vpop.f32.mrf.mxu0
    %v1082 = vadd.f32 %v993, %v1081
    %v1083 = vpop.f32.mrf.mxu0
    %v1084 = vpop.f32.mrf.mxu0
    %v1085 = vadd.f32 %v993, %v1084
    %v1086 = vpop.f32.mrf.mxu0
    %1087 = vmatprep.mubr.bf16.mxu0 0
    %1088 = vmatmul.mubr.bf16.gmra.mxu0 %v306
    %v1089 = vpop.f32.mrf.mxu0
    %v1090 = vadd.f32 %v993, %v1089
    %v1091 = vpop.f32.mrf.mxu0
    %v1092 = vpop.f32.mrf.mxu0
    %v1093 = vadd.f32 %v993, %v1092
    %v1094 = vpop.f32.mrf.mxu0
    %1095 = vmatprep.mubr.bf16.mxu0 0
    %1096 = vmatmul.mubr.bf16.gmra.mxu0 %v309
    %v1097 = vpop.f32.mrf.mxu0
    %v1098 = vadd.f32 %v993, %v1097
    %v1099 = vpop.f32.mrf.mxu0
    %v1100 = vpop.f32.mrf.mxu0
    %v1101 = vadd.f32 %v993, %v1100
    %v1102 = vpop.f32.mrf.mxu0
    %1103 = vmatprep.mubr.bf16.mxu0 0
    %1104 = vmatmul.mubr.bf16.gmra.mxu0 %v312
    %v1105 = vpop.f32.mrf.mxu0
    %v1106 = vadd.f32 %v993, %v1105
    %v1107 = vpop.f32.mrf.mxu0
    %v1108 = vpop.f32.mrf.mxu0
    %v1109 = vadd.f32 %v993, %v1108
    %v1110 = vpop.f32.mrf.mxu0
    %1111 = vmatprep.mubr.bf16.mxu0 0
    %1112 = vmatmul.mubr.bf16.gmra.mxu0 %v315
    %v1113 = vpop.f32.mrf.mxu0
    %v1114 = vadd.f32 %v993, %v1113
    %v1115 = vpop.f32.mrf.mxu0
    %v1116 = vpop.f32.mrf.mxu0
    %v1117 = vadd.f32 %v993, %v1116
    %v1118 = vpop.f32.mrf.mxu0
    %1119 = vmatprep.mubr.bf16.mxu0 0
    %1120 = vmatmul.mubr.bf16.gmra.mxu0 %v318
    %v1121 = vpop.f32.mrf.mxu0
    %v1122 = vadd.f32 %v993, %v1121
    %v1123 = vpop.f32.mrf.mxu0
    %v1124 = vpop.f32.mrf.mxu0
    %v1125 = vadd.f32 %v993, %v1124
    %v1126 = vpop.f32.mrf.mxu0
    %1127 = vmatprep.mubr.bf16.mxu0 0
    %1128 = vmatmul.mubr.bf16.gmra.mxu0 %v321
    %v1129 = vpop.f32.mrf.mxu0
    %v1130 = vadd.f32 %v993, %v1129
    %v1131 = vpop.f32.mrf.mxu0
    %v1132 = vpop.f32.mrf.mxu0
    %v1133 = vadd.f32 %v993, %v1132
    %v1134 = vpop.f32.mrf.mxu0
    %1135 = vmatprep.mubr.bf16.mxu0 0
    %1136 = vmatmul.mubr.bf16.gmra.mxu0 %v324
    %v1137 = vpop.f32.mrf.mxu0
    %v1138 = vadd.f32 %v993, %v1137
    %v1139 = vpop.f32.mrf.mxu0
    %v1140 = vpop.f32.mrf.mxu0
    %v1141 = vadd.f32 %v993, %v1140
    %v1142 = vpop.f32.mrf.mxu0
    %1143 = vmatprep.mubr.bf16.mxu0 0
    %1144 = vmatmul.mubr.bf16.gmra.mxu0 %v327
    %v1145 = vpop.f32.mrf.mxu0
    %v1146 = vadd.f32 %v993, %v1145
    %v1147 = vpop.f32.mrf.mxu0
    %v1148 = vpop.f32.mrf.mxu0
    %v1149 = vadd.f32 %v993, %v1148
    %v1150 = vpop.f32.mrf.mxu0
    %1151 = vmatprep.mubr.bf16.mxu0 0
    %1152 = vmatmul.mubr.bf16.gmra.mxu0 %v330
    %v1153 = vpop.f32.mrf.mxu0
    %v1154 = vadd.f32 %v993, %v1153
    %v1155 = vpop.f32.mrf.mxu0
    %v1156 = vpop.f32.mrf.mxu0
    %v1157 = vadd.f32 %v993, %v1156
    %v1158 = vpop.f32.mrf.mxu0
    %1159 = vmatprep.mubr.bf16.mxu0 0
    %1160 = vmatmul.mubr.bf16.gmra.mxu0 %v333
    %v1161 = vpop.f32.mrf.mxu0
    %v1162 = vadd.f32 %v993, %v1161
    %v1163 = vpop.f32.mrf.mxu0
    %v1164 = vpop.f32.mrf.mxu0
    %v1165 = vadd.f32 %v993, %v1164
    %v1166 = vpop.f32.mrf.mxu0
    %1167 = vmatprep.mubr.bf16.mxu0 0
    %1168 = vmatmul.mubr.bf16.gmra.mxu0 %v336
    %v1169 = vpop.f32.mrf.mxu0
    %v1170 = vadd.f32 %v993, %v1169
    %v1171 = vpop.f32.mrf.mxu0
    %v1172 = vpop.f32.mrf.mxu0
    %v1173 = vadd.f32 %v993, %v1172
    %v1174 = vpop.f32.mrf.mxu0
    %1175 = vmatprep.mubr.bf16.mxu0 0
    %1176 = vmatmul.mubr.bf16.gmra.mxu0 %v339
    %v1177 = vpop.f32.mrf.mxu0
    %v1178 = vadd.f32 %v993, %v1177
    %v1179 = vpop.f32.mrf.mxu0
    %v1180 = vpop.f32.mrf.mxu0
    %v1181 = vadd.f32 %v993, %v1180
    %v1182 = vpop.f32.mrf.mxu0
    %1183 = vmatprep.mubr.bf16.mxu0 0
    %1184 = vmatmul.mubr.bf16.gmra.mxu0 %v342
    %v1185 = vpop.f32.mrf.mxu0
    %v1186 = vadd.f32 %v993, %v1185
    %v1187 = vpop.f32.mrf.mxu0
    %v1188 = vpop.f32.mrf.mxu0
    %v1189 = vadd.f32 %v993, %v1188
    %v1190 = vpop.f32.mrf.mxu0
    %1191 = vmatprep.mubr.bf16.mxu0 0
    %1192 = vmatmul.mubr.bf16.gmra.mxu0 %v345
    %v1193 = vpop.f32.mrf.mxu0
    %v1194 = vadd.f32 %v993, %v1193
    %v1195 = vpop.f32.mrf.mxu0
    %v1196 = vpop.f32.mrf.mxu0
    %v1197 = vadd.f32 %v993, %v1196
    %v1198 = vpop.f32.mrf.mxu0
    %1199 = vmatprep.mubr.bf16.mxu0 0
    %1200 = vmatmul.mubr.bf16.gmra.mxu0 %v348
    %v1201 = vpop.f32.mrf.mxu0
    %v1202 = vadd.f32 %v993, %v1201
    %v1203 = vpop.f32.mrf.mxu0
    %v1204 = vpop.f32.mrf.mxu0
    %v1205 = vadd.f32 %v993, %v1204
    %v1206 = vpop.f32.mrf.mxu0
    %1207 = vmatprep.mubr.bf16.mxu0 0
    %1208 = vmatmul.mubr.bf16.gmra.mxu0 %v351
    %v1209 = vpop.f32.mrf.mxu0
    %v1210 = vadd.f32 %v993, %v1209
    %v1211 = vpop.f32.mrf.mxu0
    %v1212 = vpop.f32.mrf.mxu0
    %v1213 = vadd.f32 %v993, %v1212
    %v1214 = vpop.f32.mrf.mxu0
    %1215 = vmatprep.mubr.bf16.mxu0 0
    %1216 = vmatmul.mubr.bf16.gmra.mxu0 %v354
    %v1217 = vpop.f32.mrf.mxu0
    %v1218 = vadd.f32 %v993, %v1217
    %v1219 = vpop.f32.mrf.mxu0
    %v1220 = vpop.f32.mrf.mxu0
    %v1221 = vadd.f32 %v993, %v1220
    %v1222 = vpop.f32.mrf.mxu0
    %1223 = vmatprep.mubr.bf16.mxu0 0
    %1224 = vmatmul.mubr.bf16.gmra.mxu0 %v357
    %v1225 = vpop.f32.mrf.mxu0
    %v1226 = vadd.f32 %v993, %v1225
    %v1227 = vpop.f32.mrf.mxu0
    %v1228 = vpop.f32.mrf.mxu0
    %v1229 = vadd.f32 %v993, %v1228
    %v1230 = vpop.f32.mrf.mxu0
    %1231 = vmatprep.mubr.bf16.mxu0 0
    %1232 = vmatmul.mubr.bf16.gmra.mxu0 %v360
    %v1233 = vpop.f32.mrf.mxu0
    %v1234 = vadd.f32 %v993, %v1233
    %v1235 = vpop.f32.mrf.mxu0
    %v1236 = vpop.f32.mrf.mxu0
    %v1237 = vadd.f32 %v993, %v1236
    %v1238 = vpop.f32.mrf.mxu0
    %1239 = vmatprep.mubr.bf16.mxu0 0
    %1240 = vmatmul.mubr.bf16.gmra.mxu0 %v363
    %v1241 = vpop.f32.mrf.mxu0
    %v1242 = vadd.f32 %v993, %v1241
    %v1243 = vpop.f32.mrf.mxu0
    %v1244 = vpop.f32.mrf.mxu0
    %v1245 = vadd.f32 %v993, %v1244
    %v1246 = vpop.f32.mrf.mxu0
    %1247 = vmatprep.mubr.bf16.mxu0 0
    %1248 = vmatmul.mubr.bf16.gmra.mxu0 %v366
    %v1249 = vpop.f32.mrf.mxu0
    %v1250 = vadd.f32 %v993, %v1249
    %v1251 = vpop.f32.mrf.mxu0
    %v1252 = vpop.f32.mrf.mxu0
    %v1253 = vadd.f32 %v993, %v1252
    %v1254 = vpop.f32.mrf.mxu0
    %1255 = vmatprep.mubr.bf16.mxu0 0
    %1256 = vmatmul.mubr.bf16.gmra.mxu0 %v369
    %v1257 = vpop.f32.mrf.mxu0
    %v1258 = vadd.f32 %v993, %v1257
    %v1259 = vpop.f32.mrf.mxu0
    %v1260 = vpop.f32.mrf.mxu0
    %v1261 = vadd.f32 %v993, %v1260
    %v1262 = vpop.f32.mrf.mxu0
    %1263 = vmatprep.mubr.bf16.mxu0 0
    %1264 = vmatmul.mubr.bf16.gmra.mxu0 %v372
    %v1265 = vpop.f32.mrf.mxu0
    %v1266 = vadd.f32 %v993, %v1265
    %v1267 = vpop.f32.mrf.mxu0
    %v1268 = vpop.f32.mrf.mxu0
    %v1269 = vadd.f32 %v993, %v1268
    %v1270 = vpop.f32.mrf.mxu0
    %1271 = vmatprep.mubr.bf16.mxu0 0
    %1272 = vmatmul.mubr.bf16.gmra.mxu0 %v375
    %v1273 = vpop.f32.mrf.mxu0
    %v1274 = vadd.f32 %v993, %v1273
    %v1275 = vpop.f32.mrf.mxu0
    %v1276 = vpop.f32.mrf.mxu0
    %v1277 = vadd.f32 %v993, %v1276
    %v1278 = vpop.f32.mrf.mxu0
    %1279 = vmatprep.mubr.bf16.mxu0 0
    %1280 = vmatmul.mubr.bf16.gmra.mxu0 %v378
    %v1281 = vpop.f32.mrf.mxu0
    %v1282 = vadd.f32 %v993, %v1281
    %v1283 = vpop.f32.mrf.mxu0
    %v1284 = vpop.f32.mrf.mxu0
    %v1285 = vadd.f32 %v993, %v1284
    %v1286 = vpop.f32.mrf.mxu0
    %1287 = vmatprep.mubr.bf16.mxu0 0
    %1288 = vmatmul.mubr.bf16.gmra.mxu0 %v381
    %v1289 = vpop.f32.mrf.mxu0
    %v1290 = vadd.f32 %v993, %v1289
    %v1291 = vpop.f32.mrf.mxu0
    %v1292 = vpop.f32.mrf.mxu0
    %v1293 = vadd.f32 %v993, %v1292
    %v1294 = vpop.f32.mrf.mxu0
    %1295 = vdwg.mxu0
    %v1296 = vpack.c.bf16 %v421, %v418
    %v1297 = vpack.c.bf16 %v429, %v426
    %v1298 = vpack.c.bf16 %v437, %v434
    %v1299 = vpack.c.bf16 %v445, %v442
    %v1300 = vpack.c.bf16 %v453, %v450
    %v1301 = vpack.c.bf16 %v461, %v458
    %v1302 = vpack.c.bf16 %v469, %v466
    %v1303 = vpack.c.bf16 %v477, %v474
    %v1304 = vpack.c.bf16 %v485, %v482
    %v1305 = vpack.c.bf16 %v493, %v490
    %v1306 = vpack.c.bf16 %v501, %v498
    %v1307 = vpack.c.bf16 %v509, %v506
    %v1308 = vpack.c.bf16 %v517, %v514
    %v1309 = vpack.c.bf16 %v525, %v522
    %v1310 = vpack.c.bf16 %v533, %v530
    %v1311 = vpack.c.bf16 %v541, %v538
    %v1312 = vpack.c.bf16 %v549, %v546
    %v1313 = vpack.c.bf16 %v557, %v554
    %v1314 = vpack.c.bf16 %v565, %v562
    %v1315 = vpack.c.bf16 %v573, %v570
    %v1316 = vpack.c.bf16 %v581, %v578
    %v1317 = vpack.c.bf16 %v589, %v586
    %v1318 = vpack.c.bf16 %v597, %v594
    %v1319 = vpack.c.bf16 %v605, %v602
    %v1320 = vpack.c.bf16 %v613, %v610
    %v1321 = vpack.c.bf16 %v621, %v618
    %v1322 = vpack.c.bf16 %v629, %v626
    %v1323 = vpack.c.bf16 %v637, %v634
    %v1324 = vpack.c.bf16 %v645, %v642
    %v1325 = vpack.c.bf16 %v653, %v650
    %v1326 = vpack.c.bf16 %v661, %v658
    %v1327 = vpack.c.bf16 %v669, %v666
    %v1328 = vpack.c.bf16 %v733, %v730
    %v1329 = vpack.c.bf16 %v741, %v738
    %v1330 = vpack.c.bf16 %v749, %v746
    %v1331 = vpack.c.bf16 %v757, %v754
    %v1332 = vpack.c.bf16 %v765, %v762
    %v1333 = vpack.c.bf16 %v773, %v770
    %v1334 = vpack.c.bf16 %v781, %v778
    %v1335 = vpack.c.bf16 %v789, %v786
    %v1336 = vpack.c.bf16 %v797, %v794
    %v1337 = vpack.c.bf16 %v805, %v802
    %v1338 = vpack.c.bf16 %v813, %v810
    %v1339 = vpack.c.bf16 %v821, %v818
    %v1340 = vpack.c.bf16 %v829, %v826
    %v1341 = vpack.c.bf16 %v837, %v834
    %v1342 = vpack.c.bf16 %v845, %v842
    %v1343 = vpack.c.bf16 %v853, %v850
    %v1344 = vpack.c.bf16 %v861, %v858
    %v1345 = vpack.c.bf16 %v869, %v866
    %v1346 = vpack.c.bf16 %v877, %v874
    %v1347 = vpack.c.bf16 %v885, %v882
    %v1348 = vpack.c.bf16 %v893, %v890
    %v1349 = vpack.c.bf16 %v901, %v898
    %v1350 = vpack.c.bf16 %v909, %v906
    %v1351 = vpack.c.bf16 %v917, %v914
    %v1352 = vpack.c.bf16 %v925, %v922
    %v1353 = vpack.c.bf16 %v933, %v930
    %v1354 = vpack.c.bf16 %v941, %v938
    %v1355 = vpack.c.bf16 %v949, %v946
    %v1356 = vpack.c.bf16 %v957, %v954
    %v1357 = vpack.c.bf16 %v965, %v962
    %v1358 = vpack.c.bf16 %v973, %v970
    %v1359 = vpack.c.bf16 %v981, %v978
    %v1361 = vsel %vm286, %v1296, 0
    %v1364 = vsel %vm286, %v1297, 0
    %v1367 = vsel %vm286, %v1328, 0
    %v1370 = vsel %vm286, %v1329, 0
    %1372 = vmatprep.subr.bf16.mxu0 0
    %1373 = vmatpush1.bf16.xpose.msra.mxu0 0
    %1374 = vmatprep.subr.bf16.mxu0 0
    %1375 = vmatpush1.bf16.xpose.msra.mxu0 0
    %1376 = vmatprep.subr.bf16.mxu0 0
    %1377 = vmatpush1.bf16.xpose.msra.mxu0 0
    %1378 = vmatprep.subr.bf16.mxu0 0
    %1379 = vmatpush1.bf16.xpose.msra.mxu0 0
    %1380 = vmatprep.subr.bf16.mxu0 0
    %1381 = vmatpush1.bf16.xpose.msra.mxu0 0
    %1382 = vmatprep.subr.bf16.mxu0 0
    %1383 = vmatpush1.bf16.xpose.msra.mxu0 0
    %1384 = vmatprep.subr.bf16.mxu0 0
    %1385 = vmatpush1.bf16.xpose.msra.mxu0 %v1370
    %1386 = vmatprep.subr.bf16.mxu0 0
    %1387 = vmatpush1.bf16.xpose.msra.mxu0 %v1367
    %1388 = vmatprep.subr.bf16.mxu0 0
    %1389 = vmatpush2.bf16.xpose.msra.mxu0 0
    %1390 = vmatprep.subr.bf16.mxu0 0
    %1391 = vmatpush2.bf16.xpose.msra.mxu0 0
    %1392 = vmatprep.subr.bf16.mxu0 0
    %1393 = vmatpush2.bf16.xpose.msra.mxu0 0
    %1394 = vmatprep.subr.bf16.mxu0 0
    %1395 = vmatpush2.bf16.xpose.msra.mxu0 0
    %1396 = vmatprep.subr.bf16.mxu0 0
    %1397 = vmatpush2.bf16.xpose.msra.mxu0 0
    %1398 = vmatprep.subr.bf16.mxu0 0
    %1399 = vmatpush2.bf16.xpose.msra.mxu0 0
    %1400 = vmatprep.subr.bf16.mxu0 0
    %1401 = vmatpush2.bf16.xpose.msra.mxu0 0
    %1402 = vmatprep.subr.bf16.mxu0 0
    %1403 = vmatpush2.bf16.xpose.msra.mxu0 0
    %1404 = vmatprep.mubr.bf16.mxu0 0
    %1405 = vmatmul.mubr.bf16.gmra.mxu0 %v1361
    %v1406 = vpop.f32.mrf.mxu0
    %v1407 = vadd.f32 0.0, %v1406
    %v1408 = vpop.f32.mrf.mxu0
    %v1409 = vpop.f32.mrf.mxu0
    %v1410 = vadd.f32 0.0, %v1409
    %v1411 = vpop.f32.mrf.mxu0
    %1412 = vmatprep.mubr.bf16.mxu0 0
    %1413 = vmatmul.mubr.bf16.gmra.mxu0 %v1364
    %v1414 = vpop.f32.mrf.mxu0
    %v1415 = vadd.f32 0.0, %v1414
    %v1416 = vpop.f32.mrf.mxu0
    %v1417 = vpop.f32.mrf.mxu0
    %v1418 = vadd.f32 0.0, %v1417
    %v1419 = vpop.f32.mrf.mxu0
    %1420 = vdwg.mxu0
    %v1422 = vsel %vm286, %v1298, 0
    %v1425 = vsel %vm286, %v1299, 0
    %v1428 = vsel %vm286, %v1330, 0
    %v1431 = vsel %vm286, %v1331, 0
    %1433 = vmatprep.subr.bf16.mxu0 0
    %1434 = vmatpush1.bf16.xpose.msra.mxu0 0
    %1435 = vmatprep.subr.bf16.mxu0 0
    %1436 = vmatpush1.bf16.xpose.msra.mxu0 0
    %1437 = vmatprep.subr.bf16.mxu0 0
    %1438 = vmatpush1.bf16.xpose.msra.mxu0 0
    %1439 = vmatprep.subr.bf16.mxu0 0
    %1440 = vmatpush1.bf16.xpose.msra.mxu0 0
    %1441 = vmatprep.subr.bf16.mxu0 0
    %1442 = vmatpush1.bf16.xpose.msra.mxu0 0
    %1443 = vmatprep.subr.bf16.mxu0 0
    %1444 = vmatpush1.bf16.xpose.msra.mxu0 0
    %1445 = vmatprep.subr.bf16.mxu0 0
    %1446 = vmatpush1.bf16.xpose.msra.mxu0 %v1431
    %1447 = vmatprep.subr.bf16.mxu0 0
    %1448 = vmatpush1.bf16.xpose.msra.mxu0 %v1428
    %1449 = vmatprep.subr.bf16.mxu0 0
    %1450 = vmatpush2.bf16.xpose.msra.mxu0 0
    %1451 = vmatprep.subr.bf16.mxu0 0
    %1452 = vmatpush2.bf16.xpose.msra.mxu0 0
    %1453 = vmatprep.subr.bf16.mxu0 0
    %1454 = vmatpush2.bf16.xpose.msra.mxu0 0
    %1455 = vmatprep.subr.bf16.mxu0 0
    %1456 = vmatpush2.bf16.xpose.msra.mxu0 0
    %1457 = vmatprep.subr.bf16.mxu0 0
    %1458 = vmatpush2.bf16.xpose.msra.mxu0 0
    %1459 = vmatprep.subr.bf16.mxu0 0
    %1460 = vmatpush2.bf16.xpose.msra.mxu0 0
    %1461 = vmatprep.subr.bf16.mxu0 0
    %1462 = vmatpush2.bf16.xpose.msra.mxu0 0
    %1463 = vmatprep.subr.bf16.mxu0 0
    %1464 = vmatpush2.bf16.xpose.msra.mxu0 0
    %1465 = vmatprep.mubr.bf16.mxu0 0
    %1466 = vmatmul.mubr.bf16.gmra.mxu0 %v1422
    %v1467 = vpop.f32.mrf.mxu0
    %v1468 = vadd.f32 0.0, %v1467
    %v1469 = vpop.f32.mrf.mxu0
    %v1470 = vpop.f32.mrf.mxu0
    %v1471 = vadd.f32 0.0, %v1470
    %v1472 = vpop.f32.mrf.mxu0
    %1473 = vmatprep.mubr.bf16.mxu0 0
    %1474 = vmatmul.mubr.bf16.gmra.mxu0 %v1425
    %v1475 = vpop.f32.mrf.mxu0
    %v1476 = vadd.f32 0.0, %v1475
    %v1477 = vpop.f32.mrf.mxu0
    %v1478 = vpop.f32.mrf.mxu0
    %v1479 = vadd.f32 0.0, %v1478
    %v1480 = vpop.f32.mrf.mxu0
    %1481 = vdwg.mxu0
    %v1483 = vsel %vm286, %v1300, 0
    %v1486 = vsel %vm286, %v1301, 0
    %v1489 = vsel %vm286, %v1332, 0
    %v1492 = vsel %vm286, %v1333, 0
    %1494 = vmatprep.subr.bf16.mxu0 0
    %1495 = vmatpush1.bf16.xpose.msra.mxu0 0
    %1496 = vmatprep.subr.bf16.mxu0 0
    %1497 = vmatpush1.bf16.xpose.msra.mxu0 0
    %1498 = vmatprep.subr.bf16.mxu0 0
    %1499 = vmatpush1.bf16.xpose.msra.mxu0 0
    %1500 = vmatprep.subr.bf16.mxu0 0
    %1501 = vmatpush1.bf16.xpose.msra.mxu0 0
    %1502 = vmatprep.subr.bf16.mxu0 0
    %1503 = vmatpush1.bf16.xpose.msra.mxu0 0
    %1504 = vmatprep.subr.bf16.mxu0 0
    %1505 = vmatpush1.bf16.xpose.msra.mxu0 0
    %1506 = vmatprep.subr.bf16.mxu0 0
    %1507 = vmatpush1.bf16.xpose.msra.mxu0 %v1492
    %1508 = vmatprep.subr.bf16.mxu0 0
    %1509 = vmatpush1.bf16.xpose.msra.mxu0 %v1489
    %1510 = vmatprep.subr.bf16.mxu0 0
    %1511 = vmatpush2.bf16.xpose.msra.mxu0 0
    %1512 = vmatprep.subr.bf16.mxu0 0
    %1513 = vmatpush2.bf16.xpose.msra.mxu0 0
    %1514 = vmatprep.subr.bf16.mxu0 0
    %1515 = vmatpush2.bf16.xpose.msra.mxu0 0
    %1516 = vmatprep.subr.bf16.mxu0 0
    %1517 = vmatpush2.bf16.xpose.msra.mxu0 0
    %1518 = vmatprep.subr.bf16.mxu0 0
    %1519 = vmatpush2.bf16.xpose.msra.mxu0 0
    %1520 = vmatprep.subr.bf16.mxu0 0
    %1521 = vmatpush2.bf16.xpose.msra.mxu0 0
    %1522 = vmatprep.subr.bf16.mxu0 0
    %1523 = vmatpush2.bf16.xpose.msra.mxu0 0
    %1524 = vmatprep.subr.bf16.mxu0 0
    %1525 = vmatpush2.bf16.xpose.msra.mxu0 0
    %1526 = vmatprep.mubr.bf16.mxu0 0
    %1527 = vmatmul.mubr.bf16.gmra.mxu0 %v1483
    %v1528 = vpop.f32.mrf.mxu0
    %v1529 = vadd.f32 0.0, %v1528
    %v1530 = vpop.f32.mrf.mxu0
    %v1531 = vpop.f32.mrf.mxu0
    %v1532 = vadd.f32 0.0, %v1531
    %v1533 = vpop.f32.mrf.mxu0
    %1534 = vmatprep.mubr.bf16.mxu0 0
    %1535 = vmatmul.mubr.bf16.gmra.mxu0 %v1486
    %v1536 = vpop.f32.mrf.mxu0
    %v1537 = vadd.f32 0.0, %v1536
    %v1538 = vpop.f32.mrf.mxu0
    %v1539 = vpop.f32.mrf.mxu0
    %v1540 = vadd.f32 0.0, %v1539
    %v1541 = vpop.f32.mrf.mxu0
    %1542 = vdwg.mxu0
    %v1544 = vsel %vm286, %v1302, 0
    %v1547 = vsel %vm286, %v1303, 0
    %v1550 = vsel %vm286, %v1334, 0
    %v1553 = vsel %vm286, %v1335, 0
    %1555 = vmatprep.subr.bf16.mxu0 0
    %1556 = vmatpush1.bf16.xpose.msra.mxu0 0
    %1557 = vmatprep.subr.bf16.mxu0 0
    %1558 = vmatpush1.bf16.xpose.msra.mxu0 0
    %1559 = vmatprep.subr.bf16.mxu0 0
    %1560 = vmatpush1.bf16.xpose.msra.mxu0 0
    %1561 = vmatprep.subr.bf16.mxu0 0
    %1562 = vmatpush1.bf16.xpose.msra.mxu0 0
    %1563 = vmatprep.subr.bf16.mxu0 0
    %1564 = vmatpush1.bf16.xpose.msra.mxu0 0
    %1565 = vmatprep.subr.bf16.mxu0 0
    %1566 = vmatpush1.bf16.xpose.msra.mxu0 0
    %1567 = vmatprep.subr.bf16.mxu0 0
    %1568 = vmatpush1.bf16.xpose.msra.mxu0 %v1553
    %1569 = vmatprep.subr.bf16.mxu0 0
    %1570 = vmatpush1.bf16.xpose.msra.mxu0 %v1550
    %1571 = vmatprep.subr.bf16.mxu0 0
    %1572 = vmatpush2.bf16.xpose.msra.mxu0 0
    %1573 = vmatprep.subr.bf16.mxu0 0
    %1574 = vmatpush2.bf16.xpose.msra.mxu0 0
    %1575 = vmatprep.subr.bf16.mxu0 0
    %1576 = vmatpush2.bf16.xpose.msra.mxu0 0
    %1577 = vmatprep.subr.bf16.mxu0 0
    %1578 = vmatpush2.bf16.xpose.msra.mxu0 0
    %1579 = vmatprep.subr.bf16.mxu0 0
    %1580 = vmatpush2.bf16.xpose.msra.mxu0 0
    %1581 = vmatprep.subr.bf16.mxu0 0
    %1582 = vmatpush2.bf16.xpose.msra.mxu0 0
    %1583 = vmatprep.subr.bf16.mxu0 0
    %1584 = vmatpush2.bf16.xpose.msra.mxu0 0
    %1585 = vmatprep.subr.bf16.mxu0 0
    %1586 = vmatpush2.bf16.xpose.msra.mxu0 0
    %1587 = vmatprep.mubr.bf16.mxu0 0
    %1588 = vmatmul.mubr.bf16.gmra.mxu0 %v1544
    %v1589 = vpop.f32.mrf.mxu0
    %v1590 = vadd.f32 0.0, %v1589
    %v1591 = vpop.f32.mrf.mxu0
    %v1592 = vpop.f32.mrf.mxu0
    %v1593 = vadd.f32 0.0, %v1592
    %v1594 = vpop.f32.mrf.mxu0
    %1595 = vmatprep.mubr.bf16.mxu0 0
    %1596 = vmatmul.mubr.bf16.gmra.mxu0 %v1547
    %v1597 = vpop.f32.mrf.mxu0
    %v1598 = vadd.f32 0.0, %v1597
    %v1599 = vpop.f32.mrf.mxu0
    %v1600 = vpop.f32.mrf.mxu0
    %v1601 = vadd.f32 0.0, %v1600
    %v1602 = vpop.f32.mrf.mxu0
    %1603 = vdwg.mxu0
    %v1605 = vsel %vm286, %v1304, 0
    %v1608 = vsel %vm286, %v1305, 0
    %v1611 = vsel %vm286, %v1336, 0
    %v1614 = vsel %vm286, %v1337, 0
    %1616 = vmatprep.subr.bf16.mxu0 0
    %1617 = vmatpush1.bf16.xpose.msra.mxu0 0
    %1618 = vmatprep.subr.bf16.mxu0 0
    %1619 = vmatpush1.bf16.xpose.msra.mxu0 0
    %1620 = vmatprep.subr.bf16.mxu0 0
    %1621 = vmatpush1.bf16.xpose.msra.mxu0 0
    %1622 = vmatprep.subr.bf16.mxu0 0
    %1623 = vmatpush1.bf16.xpose.msra.mxu0 0
    %1624 = vmatprep.subr.bf16.mxu0 0
    %1625 = vmatpush1.bf16.xpose.msra.mxu0 0
    %1626 = vmatprep.subr.bf16.mxu0 0
    %1627 = vmatpush1.bf16.xpose.msra.mxu0 0
    %1628 = vmatprep.subr.bf16.mxu0 0
    %1629 = vmatpush1.bf16.xpose.msra.mxu0 %v1614
    %1630 = vmatprep.subr.bf16.mxu0 0
    %1631 = vmatpush1.bf16.xpose.msra.mxu0 %v1611
    %1632 = vmatprep.subr.bf16.mxu0 0
    %1633 = vmatpush2.bf16.xpose.msra.mxu0 0
    %1634 = vmatprep.subr.bf16.mxu0 0
    %1635 = vmatpush2.bf16.xpose.msra.mxu0 0
    %1636 = vmatprep.subr.bf16.mxu0 0
    %1637 = vmatpush2.bf16.xpose.msra.mxu0 0
    %1638 = vmatprep.subr.bf16.mxu0 0
    %1639 = vmatpush2.bf16.xpose.msra.mxu0 0
    %1640 = vmatprep.subr.bf16.mxu0 0
    %1641 = vmatpush2.bf16.xpose.msra.mxu0 0
    %1642 = vmatprep.subr.bf16.mxu0 0
    %1643 = vmatpush2.bf16.xpose.msra.mxu0 0
    %1644 = vmatprep.subr.bf16.mxu0 0
    %1645 = vmatpush2.bf16.xpose.msra.mxu0 0
    %1646 = vmatprep.subr.bf16.mxu0 0
    %1647 = vmatpush2.bf16.xpose.msra.mxu0 0
    %1648 = vmatprep.mubr.bf16.mxu0 0
    %1649 = vmatmul.mubr.bf16.gmra.mxu0 %v1605
    %v1650 = vpop.f32.mrf.mxu0
    %v1651 = vadd.f32 0.0, %v1650
    %v1652 = vpop.f32.mrf.mxu0
    %v1653 = vpop.f32.mrf.mxu0
    %v1654 = vadd.f32 0.0, %v1653
    %v1655 = vpop.f32.mrf.mxu0
    %1656 = vmatprep.mubr.bf16.mxu0 0
    %1657 = vmatmul.mubr.bf16.gmra.mxu0 %v1608
    %v1658 = vpop.f32.mrf.mxu0
    %v1659 = vadd.f32 0.0, %v1658
    %v1660 = vpop.f32.mrf.mxu0
    %v1661 = vpop.f32.mrf.mxu0
    %v1662 = vadd.f32 0.0, %v1661
    %v1663 = vpop.f32.mrf.mxu0
    %1664 = vdwg.mxu0
    %v1666 = vsel %vm286, %v1306, 0
    %v1669 = vsel %vm286, %v1307, 0
    %v1672 = vsel %vm286, %v1338, 0
    %v1675 = vsel %vm286, %v1339, 0
    %1677 = vmatprep.subr.bf16.mxu0 0
    %1678 = vmatpush1.bf16.xpose.msra.mxu0 0
    %1679 = vmatprep.subr.bf16.mxu0 0
    %1680 = vmatpush1.bf16.xpose.msra.mxu0 0
    %1681 = vmatprep.subr.bf16.mxu0 0
    %1682 = vmatpush1.bf16.xpose.msra.mxu0 0
    %1683 = vmatprep.subr.bf16.mxu0 0
    %1684 = vmatpush1.bf16.xpose.msra.mxu0 0
    %1685 = vmatprep.subr.bf16.mxu0 0
    %1686 = vmatpush1.bf16.xpose.msra.mxu0 0
    %1687 = vmatprep.subr.bf16.mxu0 0
    %1688 = vmatpush1.bf16.xpose.msra.mxu0 0
    %1689 = vmatprep.subr.bf16.mxu0 0
    %1690 = vmatpush1.bf16.xpose.msra.mxu0 %v1675
    %1691 = vmatprep.subr.bf16.mxu0 0
    %1692 = vmatpush1.bf16.xpose.msra.mxu0 %v1672
    %1693 = vmatprep.subr.bf16.mxu0 0
    %1694 = vmatpush2.bf16.xpose.msra.mxu0 0
    %1695 = vmatprep.subr.bf16.mxu0 0
    %1696 = vmatpush2.bf16.xpose.msra.mxu0 0
    %1697 = vmatprep.subr.bf16.mxu0 0
    %1698 = vmatpush2.bf16.xpose.msra.mxu0 0
    %1699 = vmatprep.subr.bf16.mxu0 0
    %1700 = vmatpush2.bf16.xpose.msra.mxu0 0
    %1701 = vmatprep.subr.bf16.mxu0 0
    %1702 = vmatpush2.bf16.xpose.msra.mxu0 0
    %1703 = vmatprep.subr.bf16.mxu0 0
    %1704 = vmatpush2.bf16.xpose.msra.mxu0 0
    %1705 = vmatprep.subr.bf16.mxu0 0
    %1706 = vmatpush2.bf16.xpose.msra.mxu0 0
    %1707 = vmatprep.subr.bf16.mxu0 0
    %1708 = vmatpush2.bf16.xpose.msra.mxu0 0
    %1709 = vmatprep.mubr.bf16.mxu0 0
    %1710 = vmatmul.mubr.bf16.gmra.mxu0 %v1666
    %v1711 = vpop.f32.mrf.mxu0
    %v1712 = vadd.f32 0.0, %v1711
    %v1713 = vpop.f32.mrf.mxu0
    %v1714 = vpop.f32.mrf.mxu0
    %v1715 = vadd.f32 0.0, %v1714
    %v1716 = vpop.f32.mrf.mxu0
    %1717 = vmatprep.mubr.bf16.mxu0 0
    %1718 = vmatmul.mubr.bf16.gmra.mxu0 %v1669
    %v1719 = vpop.f32.mrf.mxu0
    %v1720 = vadd.f32 0.0, %v1719
    %v1721 = vpop.f32.mrf.mxu0
    %v1722 = vpop.f32.mrf.mxu0
    %v1723 = vadd.f32 0.0, %v1722
    %v1724 = vpop.f32.mrf.mxu0
    %1725 = vdwg.mxu0
    %v1727 = vsel %vm286, %v1308, 0
    %v1730 = vsel %vm286, %v1309, 0
    %v1733 = vsel %vm286, %v1340, 0
    %v1736 = vsel %vm286, %v1341, 0
    %1738 = vmatprep.subr.bf16.mxu0 0
    %1739 = vmatpush1.bf16.xpose.msra.mxu0 0
    %1740 = vmatprep.subr.bf16.mxu0 0
    %1741 = vmatpush1.bf16.xpose.msra.mxu0 0
    %1742 = vmatprep.subr.bf16.mxu0 0
    %1743 = vmatpush1.bf16.xpose.msra.mxu0 0
    %1744 = vmatprep.subr.bf16.mxu0 0
    %1745 = vmatpush1.bf16.xpose.msra.mxu0 0
    %1746 = vmatprep.subr.bf16.mxu0 0
    %1747 = vmatpush1.bf16.xpose.msra.mxu0 0
    %1748 = vmatprep.subr.bf16.mxu0 0
    %1749 = vmatpush1.bf16.xpose.msra.mxu0 0
    %1750 = vmatprep.subr.bf16.mxu0 0
    %1751 = vmatpush1.bf16.xpose.msra.mxu0 %v1736
    %1752 = vmatprep.subr.bf16.mxu0 0
    %1753 = vmatpush1.bf16.xpose.msra.mxu0 %v1733
    %1754 = vmatprep.subr.bf16.mxu0 0
    %1755 = vmatpush2.bf16.xpose.msra.mxu0 0
    %1756 = vmatprep.subr.bf16.mxu0 0
    %1757 = vmatpush2.bf16.xpose.msra.mxu0 0
    %1758 = vmatprep.subr.bf16.mxu0 0
    %1759 = vmatpush2.bf16.xpose.msra.mxu0 0
    %1760 = vmatprep.subr.bf16.mxu0 0
    %1761 = vmatpush2.bf16.xpose.msra.mxu0 0
    %1762 = vmatprep.subr.bf16.mxu0 0
    %1763 = vmatpush2.bf16.xpose.msra.mxu0 0
    %1764 = vmatprep.subr.bf16.mxu0 0
    %1765 = vmatpush2.bf16.xpose.msra.mxu0 0
    %1766 = vmatprep.subr.bf16.mxu0 0
    %1767 = vmatpush2.bf16.xpose.msra.mxu0 0
    %1768 = vmatprep.subr.bf16.mxu0 0
    %1769 = vmatpush2.bf16.xpose.msra.mxu0 0
    %1770 = vmatprep.mubr.bf16.mxu0 0
    %1771 = vmatmul.mubr.bf16.gmra.mxu0 %v1727
    %v1772 = vpop.f32.mrf.mxu0
    %v1773 = vadd.f32 0.0, %v1772
    %v1774 = vpop.f32.mrf.mxu0
    %v1775 = vpop.f32.mrf.mxu0
    %v1776 = vadd.f32 0.0, %v1775
    %v1777 = vpop.f32.mrf.mxu0
    %1778 = vmatprep.mubr.bf16.mxu0 0
    %1779 = vmatmul.mubr.bf16.gmra.mxu0 %v1730
    %v1780 = vpop.f32.mrf.mxu0
    %v1781 = vadd.f32 0.0, %v1780
    %v1782 = vpop.f32.mrf.mxu0
    %v1783 = vpop.f32.mrf.mxu0
    %v1784 = vadd.f32 0.0, %v1783
    %v1785 = vpop.f32.mrf.mxu0
    %1786 = vdwg.mxu0
    %v1788 = vsel %vm286, %v1310, 0
    %v1791 = vsel %vm286, %v1311, 0
    %v1794 = vsel %vm286, %v1342, 0
    %v1797 = vsel %vm286, %v1343, 0
    %1799 = vmatprep.subr.bf16.mxu0 0
    %1800 = vmatpush1.bf16.xpose.msra.mxu0 0
    %1801 = vmatprep.subr.bf16.mxu0 0
    %1802 = vmatpush1.bf16.xpose.msra.mxu0 0
    %1803 = vmatprep.subr.bf16.mxu0 0
    %1804 = vmatpush1.bf16.xpose.msra.mxu0 0
    %1805 = vmatprep.subr.bf16.mxu0 0
    %1806 = vmatpush1.bf16.xpose.msra.mxu0 0
    %1807 = vmatprep.subr.bf16.mxu0 0
    %1808 = vmatpush1.bf16.xpose.msra.mxu0 0
    %1809 = vmatprep.subr.bf16.mxu0 0
    %1810 = vmatpush1.bf16.xpose.msra.mxu0 0
    %1811 = vmatprep.subr.bf16.mxu0 0
    %1812 = vmatpush1.bf16.xpose.msra.mxu0 %v1797
    %1813 = vmatprep.subr.bf16.mxu0 0
    %1814 = vmatpush1.bf16.xpose.msra.mxu0 %v1794
    %1815 = vmatprep.subr.bf16.mxu0 0
    %1816 = vmatpush2.bf16.xpose.msra.mxu0 0
    %1817 = vmatprep.subr.bf16.mxu0 0
    %1818 = vmatpush2.bf16.xpose.msra.mxu0 0
    %1819 = vmatprep.subr.bf16.mxu0 0
    %1820 = vmatpush2.bf16.xpose.msra.mxu0 0
    %1821 = vmatprep.subr.bf16.mxu0 0
    %1822 = vmatpush2.bf16.xpose.msra.mxu0 0
    %1823 = vmatprep.subr.bf16.mxu0 0
    %1824 = vmatpush2.bf16.xpose.msra.mxu0 0
    %1825 = vmatprep.subr.bf16.mxu0 0
    %1826 = vmatpush2.bf16.xpose.msra.mxu0 0
    %1827 = vmatprep.subr.bf16.mxu0 0
    %1828 = vmatpush2.bf16.xpose.msra.mxu0 0
    %1829 = vmatprep.subr.bf16.mxu0 0
    %1830 = vmatpush2.bf16.xpose.msra.mxu0 0
    %1831 = vmatprep.mubr.bf16.mxu0 0
    %1832 = vmatmul.mubr.bf16.gmra.mxu0 %v1788
    %v1833 = vpop.f32.mrf.mxu0
    %v1834 = vadd.f32 0.0, %v1833
    %v1835 = vpop.f32.mrf.mxu0
    %v1836 = vpop.f32.mrf.mxu0
    %v1837 = vadd.f32 0.0, %v1836
    %v1838 = vpop.f32.mrf.mxu0
    %1839 = vmatprep.mubr.bf16.mxu0 0
    %1840 = vmatmul.mubr.bf16.gmra.mxu0 %v1791
    %v1841 = vpop.f32.mrf.mxu0
    %v1842 = vadd.f32 0.0, %v1841
    %v1843 = vpop.f32.mrf.mxu0
    %v1844 = vpop.f32.mrf.mxu0
    %v1845 = vadd.f32 0.0, %v1844
    %v1846 = vpop.f32.mrf.mxu0
    %1847 = vdwg.mxu0
    %v1849 = vsel %vm286, %v1312, 0
    %v1852 = vsel %vm286, %v1313, 0
    %v1855 = vsel %vm286, %v1344, 0
    %v1858 = vsel %vm286, %v1345, 0
    %1860 = vmatprep.subr.bf16.mxu0 0
    %1861 = vmatpush1.bf16.xpose.msra.mxu0 0
    %1862 = vmatprep.subr.bf16.mxu0 0
    %1863 = vmatpush1.bf16.xpose.msra.mxu0 0
    %1864 = vmatprep.subr.bf16.mxu0 0
    %1865 = vmatpush1.bf16.xpose.msra.mxu0 0
    %1866 = vmatprep.subr.bf16.mxu0 0
    %1867 = vmatpush1.bf16.xpose.msra.mxu0 0
    %1868 = vmatprep.subr.bf16.mxu0 0
    %1869 = vmatpush1.bf16.xpose.msra.mxu0 0
    %1870 = vmatprep.subr.bf16.mxu0 0
    %1871 = vmatpush1.bf16.xpose.msra.mxu0 0
    %1872 = vmatprep.subr.bf16.mxu0 0
    %1873 = vmatpush1.bf16.xpose.msra.mxu0 %v1858
    %1874 = vmatprep.subr.bf16.mxu0 0
    %1875 = vmatpush1.bf16.xpose.msra.mxu0 %v1855
    %1876 = vmatprep.subr.bf16.mxu0 0
    %1877 = vmatpush2.bf16.xpose.msra.mxu0 0
    %1878 = vmatprep.subr.bf16.mxu0 0
    %1879 = vmatpush2.bf16.xpose.msra.mxu0 0
    %1880 = vmatprep.subr.bf16.mxu0 0
    %1881 = vmatpush2.bf16.xpose.msra.mxu0 0
    %1882 = vmatprep.subr.bf16.mxu0 0
    %1883 = vmatpush2.bf16.xpose.msra.mxu0 0
    %1884 = vmatprep.subr.bf16.mxu0 0
    %1885 = vmatpush2.bf16.xpose.msra.mxu0 0
    %1886 = vmatprep.subr.bf16.mxu0 0
    %1887 = vmatpush2.bf16.xpose.msra.mxu0 0
    %1888 = vmatprep.subr.bf16.mxu0 0
    %1889 = vmatpush2.bf16.xpose.msra.mxu0 0
    %1890 = vmatprep.subr.bf16.mxu0 0
    %1891 = vmatpush2.bf16.xpose.msra.mxu0 0
    %1892 = vmatprep.mubr.bf16.mxu0 0
    %1893 = vmatmul.mubr.bf16.gmra.mxu0 %v1849
    %v1894 = vpop.f32.mrf.mxu0
    %v1895 = vadd.f32 0.0, %v1894
    %v1896 = vpop.f32.mrf.mxu0
    %v1897 = vpop.f32.mrf.mxu0
    %v1898 = vadd.f32 0.0, %v1897
    %v1899 = vpop.f32.mrf.mxu0
    %1900 = vmatprep.mubr.bf16.mxu0 0
    %1901 = vmatmul.mubr.bf16.gmra.mxu0 %v1852
    %v1902 = vpop.f32.mrf.mxu0
    %v1903 = vadd.f32 0.0, %v1902
    %v1904 = vpop.f32.mrf.mxu0
    %v1905 = vpop.f32.mrf.mxu0
    %v1906 = vadd.f32 0.0, %v1905
    %v1907 = vpop.f32.mrf.mxu0
    %1908 = vdwg.mxu0
    %v1910 = vsel %vm286, %v1314, 0
    %v1913 = vsel %vm286, %v1315, 0
    %v1916 = vsel %vm286, %v1346, 0
    %v1919 = vsel %vm286, %v1347, 0
    %1921 = vmatprep.subr.bf16.mxu0 0
    %1922 = vmatpush1.bf16.xpose.msra.mxu0 0
    %1923 = vmatprep.subr.bf16.mxu0 0
    %1924 = vmatpush1.bf16.xpose.msra.mxu0 0
    %1925 = vmatprep.subr.bf16.mxu0 0
    %1926 = vmatpush1.bf16.xpose.msra.mxu0 0
    %1927 = vmatprep.subr.bf16.mxu0 0
    %1928 = vmatpush1.bf16.xpose.msra.mxu0 0
    %1929 = vmatprep.subr.bf16.mxu0 0
    %1930 = vmatpush1.bf16.xpose.msra.mxu0 0
    %1931 = vmatprep.subr.bf16.mxu0 0
    %1932 = vmatpush1.bf16.xpose.msra.mxu0 0
    %1933 = vmatprep.subr.bf16.mxu0 0
    %1934 = vmatpush1.bf16.xpose.msra.mxu0 %v1919
    %1935 = vmatprep.subr.bf16.mxu0 0
    %1936 = vmatpush1.bf16.xpose.msra.mxu0 %v1916
    %1937 = vmatprep.subr.bf16.mxu0 0
    %1938 = vmatpush2.bf16.xpose.msra.mxu0 0
    %1939 = vmatprep.subr.bf16.mxu0 0
    %1940 = vmatpush2.bf16.xpose.msra.mxu0 0
    %1941 = vmatprep.subr.bf16.mxu0 0
    %1942 = vmatpush2.bf16.xpose.msra.mxu0 0
    %1943 = vmatprep.subr.bf16.mxu0 0
    %1944 = vmatpush2.bf16.xpose.msra.mxu0 0
    %1945 = vmatprep.subr.bf16.mxu0 0
    %1946 = vmatpush2.bf16.xpose.msra.mxu0 0
    %1947 = vmatprep.subr.bf16.mxu0 0
    %1948 = vmatpush2.bf16.xpose.msra.mxu0 0
    %1949 = vmatprep.subr.bf16.mxu0 0
    %1950 = vmatpush2.bf16.xpose.msra.mxu0 0
    %1951 = vmatprep.subr.bf16.mxu0 0
    %1952 = vmatpush2.bf16.xpose.msra.mxu0 0
    %1953 = vmatprep.mubr.bf16.mxu0 0
    %1954 = vmatmul.mubr.bf16.gmra.mxu0 %v1910
    %v1955 = vpop.f32.mrf.mxu0
    %v1956 = vadd.f32 0.0, %v1955
    %v1957 = vpop.f32.mrf.mxu0
    %v1958 = vpop.f32.mrf.mxu0
    %v1959 = vadd.f32 0.0, %v1958
    %v1960 = vpop.f32.mrf.mxu0
    %1961 = vmatprep.mubr.bf16.mxu0 0
    %1962 = vmatmul.mubr.bf16.gmra.mxu0 %v1913
    %v1963 = vpop.f32.mrf.mxu0
    %v1964 = vadd.f32 0.0, %v1963
    %v1965 = vpop.f32.mrf.mxu0
    %v1966 = vpop.f32.mrf.mxu0
    %v1967 = vadd.f32 0.0, %v1966
    %v1968 = vpop.f32.mrf.mxu0
    %1969 = vdwg.mxu0
    %v1971 = vsel %vm286, %v1316, 0
    %v1974 = vsel %vm286, %v1317, 0
    %v1977 = vsel %vm286, %v1348, 0
    %v1980 = vsel %vm286, %v1349, 0
    %1982 = vmatprep.subr.bf16.mxu0 0
    %1983 = vmatpush1.bf16.xpose.msra.mxu0 0
    %1984 = vmatprep.subr.bf16.mxu0 0
    %1985 = vmatpush1.bf16.xpose.msra.mxu0 0
    %1986 = vmatprep.subr.bf16.mxu0 0
    %1987 = vmatpush1.bf16.xpose.msra.mxu0 0
    %1988 = vmatprep.subr.bf16.mxu0 0
    %1989 = vmatpush1.bf16.xpose.msra.mxu0 0
    %1990 = vmatprep.subr.bf16.mxu0 0
    %1991 = vmatpush1.bf16.xpose.msra.mxu0 0
    %1992 = vmatprep.subr.bf16.mxu0 0
    %1993 = vmatpush1.bf16.xpose.msra.mxu0 0
    %1994 = vmatprep.subr.bf16.mxu0 0
    %1995 = vmatpush1.bf16.xpose.msra.mxu0 %v1980
    %1996 = vmatprep.subr.bf16.mxu0 0
    %1997 = vmatpush1.bf16.xpose.msra.mxu0 %v1977
    %1998 = vmatprep.subr.bf16.mxu0 0
    %1999 = vmatpush2.bf16.xpose.msra.mxu0 0
    %2000 = vmatprep.subr.bf16.mxu0 0
    %2001 = vmatpush2.bf16.xpose.msra.mxu0 0
    %2002 = vmatprep.subr.bf16.mxu0 0
    %2003 = vmatpush2.bf16.xpose.msra.mxu0 0
    %2004 = vmatprep.subr.bf16.mxu0 0
    %2005 = vmatpush2.bf16.xpose.msra.mxu0 0
    %2006 = vmatprep.subr.bf16.mxu0 0
    %2007 = vmatpush2.bf16.xpose.msra.mxu0 0
    %2008 = vmatprep.subr.bf16.mxu0 0
    %2009 = vmatpush2.bf16.xpose.msra.mxu0 0
    %2010 = vmatprep.subr.bf16.mxu0 0
    %2011 = vmatpush2.bf16.xpose.msra.mxu0 0
    %2012 = vmatprep.subr.bf16.mxu0 0
    %2013 = vmatpush2.bf16.xpose.msra.mxu0 0
    %2014 = vmatprep.mubr.bf16.mxu0 0
    %2015 = vmatmul.mubr.bf16.gmra.mxu0 %v1971
    %v2016 = vpop.f32.mrf.mxu0
    %v2017 = vadd.f32 0.0, %v2016
    %v2018 = vpop.f32.mrf.mxu0
    %v2019 = vpop.f32.mrf.mxu0
    %v2020 = vadd.f32 0.0, %v2019
    %v2021 = vpop.f32.mrf.mxu0
    %2022 = vmatprep.mubr.bf16.mxu0 0
    %2023 = vmatmul.mubr.bf16.gmra.mxu0 %v1974
    %v2024 = vpop.f32.mrf.mxu0
    %v2025 = vadd.f32 0.0, %v2024
    %v2026 = vpop.f32.mrf.mxu0
    %v2027 = vpop.f32.mrf.mxu0
    %v2028 = vadd.f32 0.0, %v2027
    %v2029 = vpop.f32.mrf.mxu0
    %2030 = vdwg.mxu0
    %v2032 = vsel %vm286, %v1318, 0
    %v2035 = vsel %vm286, %v1319, 0
    %v2038 = vsel %vm286, %v1350, 0
    %v2041 = vsel %vm286, %v1351, 0
    %2043 = vmatprep.subr.bf16.mxu0 0
    %2044 = vmatpush1.bf16.xpose.msra.mxu0 0
    %2045 = vmatprep.subr.bf16.mxu0 0
    %2046 = vmatpush1.bf16.xpose.msra.mxu0 0
    %2047 = vmatprep.subr.bf16.mxu0 0
    %2048 = vmatpush1.bf16.xpose.msra.mxu0 0
    %2049 = vmatprep.subr.bf16.mxu0 0
    %2050 = vmatpush1.bf16.xpose.msra.mxu0 0
    %2051 = vmatprep.subr.bf16.mxu0 0
    %2052 = vmatpush1.bf16.xpose.msra.mxu0 0
    %2053 = vmatprep.subr.bf16.mxu0 0
    %2054 = vmatpush1.bf16.xpose.msra.mxu0 0
    %2055 = vmatprep.subr.bf16.mxu0 0
    %2056 = vmatpush1.bf16.xpose.msra.mxu0 %v2041
    %2057 = vmatprep.subr.bf16.mxu0 0
    %2058 = vmatpush1.bf16.xpose.msra.mxu0 %v2038
    %2059 = vmatprep.subr.bf16.mxu0 0
    %2060 = vmatpush2.bf16.xpose.msra.mxu0 0
    %2061 = vmatprep.subr.bf16.mxu0 0
    %2062 = vmatpush2.bf16.xpose.msra.mxu0 0
    %2063 = vmatprep.subr.bf16.mxu0 0
    %2064 = vmatpush2.bf16.xpose.msra.mxu0 0
    %2065 = vmatprep.subr.bf16.mxu0 0
    %2066 = vmatpush2.bf16.xpose.msra.mxu0 0
    %2067 = vmatprep.subr.bf16.mxu0 0
    %2068 = vmatpush2.bf16.xpose.msra.mxu0 0
    %2069 = vmatprep.subr.bf16.mxu0 0
    %2070 = vmatpush2.bf16.xpose.msra.mxu0 0
    %2071 = vmatprep.subr.bf16.mxu0 0
    %2072 = vmatpush2.bf16.xpose.msra.mxu0 0
    %2073 = vmatprep.subr.bf16.mxu0 0
    %2074 = vmatpush2.bf16.xpose.msra.mxu0 0
    %2075 = vmatprep.mubr.bf16.mxu0 0
    %2076 = vmatmul.mubr.bf16.gmra.mxu0 %v2032
    %v2077 = vpop.f32.mrf.mxu0
    %v2078 = vadd.f32 0.0, %v2077
    %v2079 = vpop.f32.mrf.mxu0
    %v2080 = vpop.f32.mrf.mxu0
    %v2081 = vadd.f32 0.0, %v2080
    %v2082 = vpop.f32.mrf.mxu0
    %2083 = vmatprep.mubr.bf16.mxu0 0
    %2084 = vmatmul.mubr.bf16.gmra.mxu0 %v2035
    %v2085 = vpop.f32.mrf.mxu0
    %v2086 = vadd.f32 0.0, %v2085
    %v2087 = vpop.f32.mrf.mxu0
    %v2088 = vpop.f32.mrf.mxu0
    %v2089 = vadd.f32 0.0, %v2088
    %v2090 = vpop.f32.mrf.mxu0
    %2091 = vdwg.mxu0
    %v2093 = vsel %vm286, %v1320, 0
    %v2096 = vsel %vm286, %v1321, 0
    %v2099 = vsel %vm286, %v1352, 0
    %v2102 = vsel %vm286, %v1353, 0
    %2104 = vmatprep.subr.bf16.mxu0 0
    %2105 = vmatpush1.bf16.xpose.msra.mxu0 0
    %2106 = vmatprep.subr.bf16.mxu0 0
    %2107 = vmatpush1.bf16.xpose.msra.mxu0 0
    %2108 = vmatprep.subr.bf16.mxu0 0
    %2109 = vmatpush1.bf16.xpose.msra.mxu0 0
    %2110 = vmatprep.subr.bf16.mxu0 0
    %2111 = vmatpush1.bf16.xpose.msra.mxu0 0
    %2112 = vmatprep.subr.bf16.mxu0 0
    %2113 = vmatpush1.bf16.xpose.msra.mxu0 0
    %2114 = vmatprep.subr.bf16.mxu0 0
    %2115 = vmatpush1.bf16.xpose.msra.mxu0 0
    %2116 = vmatprep.subr.bf16.mxu0 0
    %2117 = vmatpush1.bf16.xpose.msra.mxu0 %v2102
    %2118 = vmatprep.subr.bf16.mxu0 0
    %2119 = vmatpush1.bf16.xpose.msra.mxu0 %v2099
    %2120 = vmatprep.subr.bf16.mxu0 0
    %2121 = vmatpush2.bf16.xpose.msra.mxu0 0
    %2122 = vmatprep.subr.bf16.mxu0 0
    %2123 = vmatpush2.bf16.xpose.msra.mxu0 0
    %2124 = vmatprep.subr.bf16.mxu0 0
    %2125 = vmatpush2.bf16.xpose.msra.mxu0 0
    %2126 = vmatprep.subr.bf16.mxu0 0
    %2127 = vmatpush2.bf16.xpose.msra.mxu0 0
    %2128 = vmatprep.subr.bf16.mxu0 0
    %2129 = vmatpush2.bf16.xpose.msra.mxu0 0
    %2130 = vmatprep.subr.bf16.mxu0 0
    %2131 = vmatpush2.bf16.xpose.msra.mxu0 0
    %2132 = vmatprep.subr.bf16.mxu0 0
    %2133 = vmatpush2.bf16.xpose.msra.mxu0 0
    %2134 = vmatprep.subr.bf16.mxu0 0
    %2135 = vmatpush2.bf16.xpose.msra.mxu0 0
    %2136 = vmatprep.mubr.bf16.mxu0 0
    %2137 = vmatmul.mubr.bf16.gmra.mxu0 %v2093
    %v2138 = vpop.f32.mrf.mxu0
    %v2139 = vadd.f32 0.0, %v2138
    %v2140 = vpop.f32.mrf.mxu0
    %v2141 = vpop.f32.mrf.mxu0
    %v2142 = vadd.f32 0.0, %v2141
    %v2143 = vpop.f32.mrf.mxu0
    %2144 = vmatprep.mubr.bf16.mxu0 0
    %2145 = vmatmul.mubr.bf16.gmra.mxu0 %v2096
    %v2146 = vpop.f32.mrf.mxu0
    %v2147 = vadd.f32 0.0, %v2146
    %v2148 = vpop.f32.mrf.mxu0
    %v2149 = vpop.f32.mrf.mxu0
    %v2150 = vadd.f32 0.0, %v2149
    %v2151 = vpop.f32.mrf.mxu0
    %2152 = vdwg.mxu0
    %v2154 = vsel %vm286, %v1322, 0
    %v2157 = vsel %vm286, %v1323, 0
    %v2160 = vsel %vm286, %v1354, 0
    %v2163 = vsel %vm286, %v1355, 0
    %2165 = vmatprep.subr.bf16.mxu0 0
    %2166 = vmatpush1.bf16.xpose.msra.mxu0 0
    %2167 = vmatprep.subr.bf16.mxu0 0
    %2168 = vmatpush1.bf16.xpose.msra.mxu0 0
    %2169 = vmatprep.subr.bf16.mxu0 0
    %2170 = vmatpush1.bf16.xpose.msra.mxu0 0
    %2171 = vmatprep.subr.bf16.mxu0 0
    %2172 = vmatpush1.bf16.xpose.msra.mxu0 0
    %2173 = vmatprep.subr.bf16.mxu0 0
    %2174 = vmatpush1.bf16.xpose.msra.mxu0 0
    %2175 = vmatprep.subr.bf16.mxu0 0
    %2176 = vmatpush1.bf16.xpose.msra.mxu0 0
    %2177 = vmatprep.subr.bf16.mxu0 0
    %2178 = vmatpush1.bf16.xpose.msra.mxu0 %v2163
    %2179 = vmatprep.subr.bf16.mxu0 0
    %2180 = vmatpush1.bf16.xpose.msra.mxu0 %v2160
    %2181 = vmatprep.subr.bf16.mxu0 0
    %2182 = vmatpush2.bf16.xpose.msra.mxu0 0
    %2183 = vmatprep.subr.bf16.mxu0 0
    %2184 = vmatpush2.bf16.xpose.msra.mxu0 0
    %2185 = vmatprep.subr.bf16.mxu0 0
    %2186 = vmatpush2.bf16.xpose.msra.mxu0 0
    %2187 = vmatprep.subr.bf16.mxu0 0
    %2188 = vmatpush2.bf16.xpose.msra.mxu0 0
    %2189 = vmatprep.subr.bf16.mxu0 0
    %2190 = vmatpush2.bf16.xpose.msra.mxu0 0
    %2191 = vmatprep.subr.bf16.mxu0 0
    %2192 = vmatpush2.bf16.xpose.msra.mxu0 0
    %2193 = vmatprep.subr.bf16.mxu0 0
    %2194 = vmatpush2.bf16.xpose.msra.mxu0 0
    %2195 = vmatprep.subr.bf16.mxu0 0
    %2196 = vmatpush2.bf16.xpose.msra.mxu0 0
    %2197 = vmatprep.mubr.bf16.mxu0 0
    %2198 = vmatmul.mubr.bf16.gmra.mxu0 %v2154
    %v2199 = vpop.f32.mrf.mxu0
    %v2200 = vadd.f32 0.0, %v2199
    %v2201 = vpop.f32.mrf.mxu0
    %v2202 = vpop.f32.mrf.mxu0
    %v2203 = vadd.f32 0.0, %v2202
    %v2204 = vpop.f32.mrf.mxu0
    %2205 = vmatprep.mubr.bf16.mxu0 0
    %2206 = vmatmul.mubr.bf16.gmra.mxu0 %v2157
    %v2207 = vpop.f32.mrf.mxu0
    %v2208 = vadd.f32 0.0, %v2207
    %v2209 = vpop.f32.mrf.mxu0
    %v2210 = vpop.f32.mrf.mxu0
    %v2211 = vadd.f32 0.0, %v2210
    %v2212 = vpop.f32.mrf.mxu0
    %2213 = vdwg.mxu0
    %v2215 = vsel %vm286, %v1324, 0
    %v2218 = vsel %vm286, %v1325, 0
    %v2221 = vsel %vm286, %v1356, 0
    %v2224 = vsel %vm286, %v1357, 0
    %2226 = vmatprep.subr.bf16.mxu0 0
    %2227 = vmatpush1.bf16.xpose.msra.mxu0 0
    %2228 = vmatprep.subr.bf16.mxu0 0
    %2229 = vmatpush1.bf16.xpose.msra.mxu0 0
    %2230 = vmatprep.subr.bf16.mxu0 0
    %2231 = vmatpush1.bf16.xpose.msra.mxu0 0
    %2232 = vmatprep.subr.bf16.mxu0 0
    %2233 = vmatpush1.bf16.xpose.msra.mxu0 0
    %2234 = vmatprep.subr.bf16.mxu0 0
    %2235 = vmatpush1.bf16.xpose.msra.mxu0 0
    %2236 = vmatprep.subr.bf16.mxu0 0
    %2237 = vmatpush1.bf16.xpose.msra.mxu0 0
    %2238 = vmatprep.subr.bf16.mxu0 0
    %2239 = vmatpush1.bf16.xpose.msra.mxu0 %v2224
    %2240 = vmatprep.subr.bf16.mxu0 0
    %2241 = vmatpush1.bf16.xpose.msra.mxu0 %v2221
    %2242 = vmatprep.subr.bf16.mxu0 0
    %2243 = vmatpush2.bf16.xpose.msra.mxu0 0
    %2244 = vmatprep.subr.bf16.mxu0 0
    %2245 = vmatpush2.bf16.xpose.msra.mxu0 0
    %2246 = vmatprep.subr.bf16.mxu0 0
    %2247 = vmatpush2.bf16.xpose.msra.mxu0 0
    %2248 = vmatprep.subr.bf16.mxu0 0
    %2249 = vmatpush2.bf16.xpose.msra.mxu0 0
    %2250 = vmatprep.subr.bf16.mxu0 0
    %2251 = vmatpush2.bf16.xpose.msra.mxu0 0
    %2252 = vmatprep.subr.bf16.mxu0 0
    %2253 = vmatpush2.bf16.xpose.msra.mxu0 0
    %2254 = vmatprep.subr.bf16.mxu0 0
    %2255 = vmatpush2.bf16.xpose.msra.mxu0 0
    %2256 = vmatprep.subr.bf16.mxu0 0
    %2257 = vmatpush2.bf16.xpose.msra.mxu0 0
    %2258 = vmatprep.mubr.bf16.mxu0 0
    %2259 = vmatmul.mubr.bf16.gmra.mxu0 %v2215
    %v2260 = vpop.f32.mrf.mxu0
    %v2261 = vadd.f32 0.0, %v2260
    %v2262 = vpop.f32.mrf.mxu0
    %v2263 = vpop.f32.mrf.mxu0
    %v2264 = vadd.f32 0.0, %v2263
    %v2265 = vpop.f32.mrf.mxu0
    %2266 = vmatprep.mubr.bf16.mxu0 0
    %2267 = vmatmul.mubr.bf16.gmra.mxu0 %v2218
    %v2268 = vpop.f32.mrf.mxu0
    %v2269 = vadd.f32 0.0, %v2268
    %v2270 = vpop.f32.mrf.mxu0
    %v2271 = vpop.f32.mrf.mxu0
    %v2272 = vadd.f32 0.0, %v2271
    %v2273 = vpop.f32.mrf.mxu0
    %2274 = vdwg.mxu0
    %v2276 = vsel %vm286, %v1326, 0
    %v2279 = vsel %vm286, %v1327, 0
    %v2282 = vsel %vm286, %v1358, 0
    %v2285 = vsel %vm286, %v1359, 0
    %2287 = vmatprep.subr.bf16.mxu0 0
    %2288 = vmatpush1.bf16.xpose.msra.mxu0 0
    %2289 = vmatprep.subr.bf16.mxu0 0
    %2290 = vmatpush1.bf16.xpose.msra.mxu0 0
    %2291 = vmatprep.subr.bf16.mxu0 0
    %2292 = vmatpush1.bf16.xpose.msra.mxu0 0
    %2293 = vmatprep.subr.bf16.mxu0 0
    %2294 = vmatpush1.bf16.xpose.msra.mxu0 0
    %2295 = vmatprep.subr.bf16.mxu0 0
    %2296 = vmatpush1.bf16.xpose.msra.mxu0 0
    %2297 = vmatprep.subr.bf16.mxu0 0
    %2298 = vmatpush1.bf16.xpose.msra.mxu0 0
    %2299 = vmatprep.subr.bf16.mxu0 0
    %2300 = vmatpush1.bf16.xpose.msra.mxu0 %v2285
    %2301 = vmatprep.subr.bf16.mxu0 0
    %2302 = vmatpush1.bf16.xpose.msra.mxu0 %v2282
    %2303 = vmatprep.subr.bf16.mxu0 0
    %2304 = vmatpush2.bf16.xpose.msra.mxu0 0
    %2305 = vmatprep.subr.bf16.mxu0 0
    %2306 = vmatpush2.bf16.xpose.msra.mxu0 0
    %2307 = vmatprep.subr.bf16.mxu0 0
    %2308 = vmatpush2.bf16.xpose.msra.mxu0 0
    %2309 = vmatprep.subr.bf16.mxu0 0
    %2310 = vmatpush2.bf16.xpose.msra.mxu0 0
    %2311 = vmatprep.subr.bf16.mxu0 0
    %2312 = vmatpush2.bf16.xpose.msra.mxu0 0
    %2313 = vmatprep.subr.bf16.mxu0 0
    %2314 = vmatpush2.bf16.xpose.msra.mxu0 0
    %2315 = vmatprep.subr.bf16.mxu0 0
    %2316 = vmatpush2.bf16.xpose.msra.mxu0 0
    %2317 = vmatprep.subr.bf16.mxu0 0
    %2318 = vmatpush2.bf16.xpose.msra.mxu0 0
    %2319 = vmatprep.mubr.bf16.mxu0 0
    %2320 = vmatmul.mubr.bf16.gmra.mxu0 %v2276
    %v2321 = vpop.f32.mrf.mxu0
    %v2322 = vadd.f32 0.0, %v2321
    %v2323 = vpop.f32.mrf.mxu0
    %v2324 = vpop.f32.mrf.mxu0
    %v2325 = vadd.f32 0.0, %v2324
    %v2326 = vpop.f32.mrf.mxu0
    %2327 = vmatprep.mubr.bf16.mxu0 0
    %2328 = vmatmul.mubr.bf16.gmra.mxu0 %v2279
    %v2329 = vpop.f32.mrf.mxu0
    %v2330 = vadd.f32 0.0, %v2329
    %v2331 = vpop.f32.mrf.mxu0
    %v2332 = vpop.f32.mrf.mxu0
    %v2333 = vadd.f32 0.0, %v2332
    %v2334 = vpop.f32.mrf.mxu0
    %2335 = vdwg.mxu0
    %v2336 = vsel %vm286, %v1407, -inf
    %2337 = vmax.xlane.f32.xlu0 %v2336
    %v2338 = vpop.xlane.xlu0 %2337
    %v2339 = vsel %vm286, %v1410, -inf
    %2340 = vmax.xlane.f32.xlu0 %v2339
    %v2341 = vpop.xlane.xlu0 %2340
    %v2342 = vsel %vm286, %v1415, -inf
    %2343 = vmax.xlane.f32.xlu0 %v2342
    %v2344 = vpop.xlane.xlu0 %2343
    %v2345 = vsel %vm286, %v1418, -inf
    %2346 = vmax.xlane.f32.xlu0 %v2345
    %v2347 = vpop.xlane.xlu0 %2346
    %v2348 = vsel %vm286, %v1468, -inf
    %2349 = vmax.xlane.f32.xlu0 %v2348
    %v2350 = vpop.xlane.xlu0 %2349
    %v2351 = vsel %vm286, %v1471, -inf
    %2352 = vmax.xlane.f32.xlu0 %v2351
    %v2353 = vpop.xlane.xlu0 %2352
    %v2354 = vsel %vm286, %v1476, -inf
    %2355 = vmax.xlane.f32.xlu0 %v2354
    %v2356 = vpop.xlane.xlu0 %2355
    %v2357 = vsel %vm286, %v1479, -inf
    %2358 = vmax.xlane.f32.xlu0 %v2357
    %v2359 = vpop.xlane.xlu0 %2358
    %v2360 = vsel %vm286, %v1529, -inf
    %2361 = vmax.xlane.f32.xlu0 %v2360
    %v2362 = vpop.xlane.xlu0 %2361
    %v2363 = vsel %vm286, %v1532, -inf
    %2364 = vmax.xlane.f32.xlu0 %v2363
    %v2365 = vpop.xlane.xlu0 %2364
    %v2366 = vsel %vm286, %v1537, -inf
    %2367 = vmax.xlane.f32.xlu0 %v2366
    %v2368 = vpop.xlane.xlu0 %2367
    %v2369 = vsel %vm286, %v1540, -inf
    %2370 = vmax.xlane.f32.xlu0 %v2369
    %v2371 = vpop.xlane.xlu0 %2370
    %v2372 = vsel %vm286, %v1590, -inf
    %2373 = vmax.xlane.f32.xlu0 %v2372
    %v2374 = vpop.xlane.xlu0 %2373
    %v2375 = vsel %vm286, %v1593, -inf
    %2376 = vmax.xlane.f32.xlu0 %v2375
    %v2377 = vpop.xlane.xlu0 %2376
    %v2378 = vsel %vm286, %v1598, -inf
    %2379 = vmax.xlane.f32.xlu0 %v2378
    %v2380 = vpop.xlane.xlu0 %2379
    %v2381 = vsel %vm286, %v1601, -inf
    %2382 = vmax.xlane.f32.xlu0 %v2381
    %v2383 = vpop.xlane.xlu0 %2382
    %v2384 = vsel %vm286, %v1651, -inf
    %2385 = vmax.xlane.f32.xlu0 %v2384
    %v2386 = vpop.xlane.xlu0 %2385
    %v2387 = vsel %vm286, %v1654, -inf
    %2388 = vmax.xlane.f32.xlu0 %v2387
    %v2389 = vpop.xlane.xlu0 %2388
    %v2390 = vsel %vm286, %v1659, -inf
    %2391 = vmax.xlane.f32.xlu0 %v2390
    %v2392 = vpop.xlane.xlu0 %2391
    %v2393 = vsel %vm286, %v1662, -inf
    %2394 = vmax.xlane.f32.xlu0 %v2393
    %v2395 = vpop.xlane.xlu0 %2394
    %v2396 = vsel %vm286, %v1712, -inf
    %2397 = vmax.xlane.f32.xlu0 %v2396
    %v2398 = vpop.xlane.xlu0 %2397
    %v2399 = vsel %vm286, %v1715, -inf
    %2400 = vmax.xlane.f32.xlu0 %v2399
    %v2401 = vpop.xlane.xlu0 %2400
    %v2402 = vsel %vm286, %v1720, -inf
    %2403 = vmax.xlane.f32.xlu0 %v2402
    %v2404 = vpop.xlane.xlu0 %2403
    %v2405 = vsel %vm286, %v1723, -inf
    %2406 = vmax.xlane.f32.xlu0 %v2405
    %v2407 = vpop.xlane.xlu0 %2406
    %v2408 = vsel %vm286, %v1773, -inf
    %2409 = vmax.xlane.f32.xlu0 %v2408
    %v2410 = vpop.xlane.xlu0 %2409
    %v2411 = vsel %vm286, %v1776, -inf
    %2412 = vmax.xlane.f32.xlu0 %v2411
    %v2413 = vpop.xlane.xlu0 %2412
    %v2414 = vsel %vm286, %v1781, -inf
    %2415 = vmax.xlane.f32.xlu0 %v2414
    %v2416 = vpop.xlane.xlu0 %2415
    %v2417 = vsel %vm286, %v1784, -inf
    %2418 = vmax.xlane.f32.xlu0 %v2417
    %v2419 = vpop.xlane.xlu0 %2418
    %v2420 = vsel %vm286, %v1834, -inf
    %2421 = vmax.xlane.f32.xlu0 %v2420
    %v2422 = vpop.xlane.xlu0 %2421
    %v2423 = vsel %vm286, %v1837, -inf
    %2424 = vmax.xlane.f32.xlu0 %v2423
    %v2425 = vpop.xlane.xlu0 %2424
    %v2426 = vsel %vm286, %v1842, -inf
    %2427 = vmax.xlane.f32.xlu0 %v2426
    %v2428 = vpop.xlane.xlu0 %2427
    %v2429 = vsel %vm286, %v1845, -inf
    %2430 = vmax.xlane.f32.xlu0 %v2429
    %v2431 = vpop.xlane.xlu0 %2430
    %v2432 = vsel %vm286, %v1895, -inf
    %2433 = vmax.xlane.f32.xlu0 %v2432
    %v2434 = vpop.xlane.xlu0 %2433
    %v2435 = vsel %vm286, %v1898, -inf
    %2436 = vmax.xlane.f32.xlu0 %v2435
    %v2437 = vpop.xlane.xlu0 %2436
    %v2438 = vsel %vm286, %v1903, -inf
    %2439 = vmax.xlane.f32.xlu0 %v2438
    %v2440 = vpop.xlane.xlu0 %2439
    %v2441 = vsel %vm286, %v1906, -inf
    %2442 = vmax.xlane.f32.xlu0 %v2441
    %v2443 = vpop.xlane.xlu0 %2442
    %v2444 = vsel %vm286, %v1956, -inf
    %2445 = vmax.xlane.f32.xlu0 %v2444
    %v2446 = vpop.xlane.xlu0 %2445
    %v2447 = vsel %vm286, %v1959, -inf
    %2448 = vmax.xlane.f32.xlu0 %v2447
    %v2449 = vpop.xlane.xlu0 %2448
    %v2450 = vsel %vm286, %v1964, -inf
    %2451 = vmax.xlane.f32.xlu0 %v2450
    %v2452 = vpop.xlane.xlu0 %2451
    %v2453 = vsel %vm286, %v1967, -inf
    %2454 = vmax.xlane.f32.xlu0 %v2453
    %v2455 = vpop.xlane.xlu0 %2454
    %v2456 = vsel %vm286, %v2017, -inf
    %2457 = vmax.xlane.f32.xlu0 %v2456
    %v2458 = vpop.xlane.xlu0 %2457
    %v2459 = vsel %vm286, %v2020, -inf
    %2460 = vmax.xlane.f32.xlu0 %v2459
    %v2461 = vpop.xlane.xlu0 %2460
    %v2462 = vsel %vm286, %v2025, -inf
    %2463 = vmax.xlane.f32.xlu0 %v2462
    %v2464 = vpop.xlane.xlu0 %2463
    %v2465 = vsel %vm286, %v2028, -inf
    %2466 = vmax.xlane.f32.xlu0 %v2465
    %v2467 = vpop.xlane.xlu0 %2466
    %v2468 = vsel %vm286, %v2078, -inf
    %2469 = vmax.xlane.f32.xlu0 %v2468
    %v2470 = vpop.xlane.xlu0 %2469
    %v2471 = vsel %vm286, %v2081, -inf
    %2472 = vmax.xlane.f32.xlu0 %v2471
    %v2473 = vpop.xlane.xlu0 %2472
    %v2474 = vsel %vm286, %v2086, -inf
    %2475 = vmax.xlane.f32.xlu0 %v2474
    %v2476 = vpop.xlane.xlu0 %2475
    %v2477 = vsel %vm286, %v2089, -inf
    %2478 = vmax.xlane.f32.xlu0 %v2477
    %v2479 = vpop.xlane.xlu0 %2478
    %v2480 = vsel %vm286, %v2139, -inf
    %2481 = vmax.xlane.f32.xlu0 %v2480
    %v2482 = vpop.xlane.xlu0 %2481
    %v2483 = vsel %vm286, %v2142, -inf
    %2484 = vmax.xlane.f32.xlu0 %v2483
    %v2485 = vpop.xlane.xlu0 %2484
    %v2486 = vsel %vm286, %v2147, -inf
    %2487 = vmax.xlane.f32.xlu0 %v2486
    %v2488 = vpop.xlane.xlu0 %2487
    %v2489 = vsel %vm286, %v2150, -inf
    %2490 = vmax.xlane.f32.xlu0 %v2489
    %v2491 = vpop.xlane.xlu0 %2490
    %v2492 = vsel %vm286, %v2200, -inf
    %2493 = vmax.xlane.f32.xlu0 %v2492
    %v2494 = vpop.xlane.xlu0 %2493
    %v2495 = vsel %vm286, %v2203, -inf
    %2496 = vmax.xlane.f32.xlu0 %v2495
    %v2497 = vpop.xlane.xlu0 %2496
    %v2498 = vsel %vm286, %v2208, -inf
    %2499 = vmax.xlane.f32.xlu0 %v2498
    %v2500 = vpop.xlane.xlu0 %2499
    %v2501 = vsel %vm286, %v2211, -inf
    %2502 = vmax.xlane.f32.xlu0 %v2501
    %v2503 = vpop.xlane.xlu0 %2502
    %v2504 = vsel %vm286, %v2261, -inf
    %2505 = vmax.xlane.f32.xlu0 %v2504
    %v2506 = vpop.xlane.xlu0 %2505
    %v2507 = vsel %vm286, %v2264, -inf
    %2508 = vmax.xlane.f32.xlu0 %v2507
    %v2509 = vpop.xlane.xlu0 %2508
    %v2510 = vsel %vm286, %v2269, -inf
    %2511 = vmax.xlane.f32.xlu0 %v2510
    %v2512 = vpop.xlane.xlu0 %2511
    %v2513 = vsel %vm286, %v2272, -inf
    %2514 = vmax.xlane.f32.xlu0 %v2513
    %v2515 = vpop.xlane.xlu0 %2514
    %v2516 = vsel %vm286, %v2322, -inf
    %2517 = vmax.xlane.f32.xlu0 %v2516
    %v2518 = vpop.xlane.xlu0 %2517
    %v2519 = vsel %vm286, %v2325, -inf
    %2520 = vmax.xlane.f32.xlu0 %v2519
    %v2521 = vpop.xlane.xlu0 %2520
    %v2522 = vsel %vm286, %v2330, -inf
    %2523 = vmax.xlane.f32.xlu0 %v2522
    %v2524 = vpop.xlane.xlu0 %2523
    %v2525 = vsel %vm286, %v2333, -inf
    %2526 = vmax.xlane.f32.xlu0 %v2525
    %v2527 = vpop.xlane.xlu0 %2526
    %v2528 = vsub.f32 %v1407, %v2338
    %v2529 = vsub.f32 %v1410, %v2341
    %v2530 = vsub.f32 %v1415, %v2344
    %v2531 = vsub.f32 %v1418, %v2347
    %v2532 = vsub.f32 %v1468, %v2350
    %v2533 = vsub.f32 %v1471, %v2353
    %v2534 = vsub.f32 %v1476, %v2356
    %v2535 = vsub.f32 %v1479, %v2359
    %v2536 = vsub.f32 %v1529, %v2362
    %v2537 = vsub.f32 %v1532, %v2365
    %v2538 = vsub.f32 %v1537, %v2368
    %v2539 = vsub.f32 %v1540, %v2371
    %v2540 = vsub.f32 %v1590, %v2374
    %v2541 = vsub.f32 %v1593, %v2377
    %v2542 = vsub.f32 %v1598, %v2380
    %v2543 = vsub.f32 %v1601, %v2383
    %v2544 = vsub.f32 %v1651, %v2386
    %v2545 = vsub.f32 %v1654, %v2389
    %v2546 = vsub.f32 %v1659, %v2392
    %v2547 = vsub.f32 %v1662, %v2395
    %v2548 = vsub.f32 %v1712, %v2398
    %v2549 = vsub.f32 %v1715, %v2401
    %v2550 = vsub.f32 %v1720, %v2404
    %v2551 = vsub.f32 %v1723, %v2407
    %v2552 = vsub.f32 %v1773, %v2410
    %v2553 = vsub.f32 %v1776, %v2413
    %v2554 = vsub.f32 %v1781, %v2416
    %v2555 = vsub.f32 %v1784, %v2419
    %v2556 = vsub.f32 %v1834, %v2422
    %v2557 = vsub.f32 %v1837, %v2425
    %v2558 = vsub.f32 %v1842, %v2428
    %v2559 = vsub.f32 %v1845, %v2431
    %v2560 = vsub.f32 %v1895, %v2434
    %v2561 = vsub.f32 %v1898, %v2437
    %v2562 = vsub.f32 %v1903, %v2440
    %v2563 = vsub.f32 %v1906, %v2443
    %v2564 = vsub.f32 %v1956, %v2446
    %v2565 = vsub.f32 %v1959, %v2449
    %v2566 = vsub.f32 %v1964, %v2452
    %v2567 = vsub.f32 %v1967, %v2455
    %v2568 = vsub.f32 %v2017, %v2458
    %v2569 = vsub.f32 %v2020, %v2461
    %v2570 = vsub.f32 %v2025, %v2464
    %v2571 = vsub.f32 %v2028, %v2467
    %v2572 = vsub.f32 %v2078, %v2470
    %v2573 = vsub.f32 %v2081, %v2473
    %v2574 = vsub.f32 %v2086, %v2476
    %v2575 = vsub.f32 %v2089, %v2479
    %v2576 = vsub.f32 %v2139, %v2482
    %v2577 = vsub.f32 %v2142, %v2485
    %v2578 = vsub.f32 %v2147, %v2488
    %v2579 = vsub.f32 %v2150, %v2491
    %v2580 = vsub.f32 %v2200, %v2494
    %v2581 = vsub.f32 %v2203, %v2497
    %v2582 = vsub.f32 %v2208, %v2500
    %v2583 = vsub.f32 %v2211, %v2503
    %v2584 = vsub.f32 %v2261, %v2506
    %v2585 = vsub.f32 %v2264, %v2509
    %v2586 = vsub.f32 %v2269, %v2512
    %v2587 = vsub.f32 %v2272, %v2515
    %v2588 = vsub.f32 %v2322, %v2518
    %v2589 = vsub.f32 %v2325, %v2521
    %v2590 = vsub.f32 %v2330, %v2524
    %v2591 = vsub.f32 %v2333, %v2527
    %v2592 = vmul.f32 %v2528, 1.442695
    %v2593 = vpow.pop %v2592
    %v2594 = vmul.f32 %v2529, 1.442695
    %v2595 = vpow.pop %v2594
    %v2596 = vmul.f32 %v2530, 1.442695
    %v2597 = vpow.pop %v2596
    %v2598 = vmul.f32 %v2531, 1.442695
    %v2599 = vpow.pop %v2598
    %v2600 = vmul.f32 %v2532, 1.442695
    %v2601 = vpow.pop %v2600
    %v2602 = vmul.f32 %v2533, 1.442695
    %v2603 = vpow.pop %v2602
    %v2604 = vmul.f32 %v2534, 1.442695
    %v2605 = vpow.pop %v2604
    %v2606 = vmul.f32 %v2535, 1.442695
    %v2607 = vpow.pop %v2606
    %v2608 = vmul.f32 %v2536, 1.442695
    %v2609 = vpow.pop %v2608
    %v2610 = vmul.f32 %v2537, 1.442695
    %v2611 = vpow.pop %v2610
    %v2612 = vmul.f32 %v2538, 1.442695
    %v2613 = vpow.pop %v2612
    %v2614 = vmul.f32 %v2539, 1.442695
    %v2615 = vpow.pop %v2614
    %v2616 = vmul.f32 %v2540, 1.442695
    %v2617 = vpow.pop %v2616
    %v2618 = vmul.f32 %v2541, 1.442695
    %v2619 = vpow.pop %v2618
    %v2620 = vmul.f32 %v2542, 1.442695
    %v2621 = vpow.pop %v2620
    %v2622 = vmul.f32 %v2543, 1.442695
    %v2623 = vpow.pop %v2622
    %v2624 = vmul.f32 %v2544, 1.442695
    %v2625 = vpow.pop %v2624
    %v2626 = vmul.f32 %v2545, 1.442695
    %v2627 = vpow.pop %v2626
    %v2628 = vmul.f32 %v2546, 1.442695
    %v2629 = vpow.pop %v2628
    %v2630 = vmul.f32 %v2547, 1.442695
    %v2631 = vpow.pop %v2630
    %v2632 = vmul.f32 %v2548, 1.442695
    %v2633 = vpow.pop %v2632
    %v2634 = vmul.f32 %v2549, 1.442695
    %v2635 = vpow.pop %v2634
    %v2636 = vmul.f32 %v2550, 1.442695
    %v2637 = vpow.pop %v2636
    %v2638 = vmul.f32 %v2551, 1.442695
    %v2639 = vpow.pop %v2638
    %v2640 = vmul.f32 %v2552, 1.442695
    %v2641 = vpow.pop %v2640
    %v2642 = vmul.f32 %v2553, 1.442695
    %v2643 = vpow.pop %v2642
    %v2644 = vmul.f32 %v2554, 1.442695
    %v2645 = vpow.pop %v2644
    %v2646 = vmul.f32 %v2555, 1.442695
    %v2647 = vpow.pop %v2646
    %v2648 = vmul.f32 %v2556, 1.442695
    %v2649 = vpow.pop %v2648
    %v2650 = vmul.f32 %v2557, 1.442695
    %v2651 = vpow.pop %v2650
    %v2652 = vmul.f32 %v2558, 1.442695
    %v2653 = vpow.pop %v2652
    %v2654 = vmul.f32 %v2559, 1.442695
    %v2655 = vpow.pop %v2654
    %v2656 = vmul.f32 %v2560, 1.442695
    %v2657 = vpow.pop %v2656
    %v2658 = vmul.f32 %v2561, 1.442695
    %v2659 = vpow.pop %v2658
    %v2660 = vmul.f32 %v2562, 1.442695
    %v2661 = vpow.pop %v2660
    %v2662 = vmul.f32 %v2563, 1.442695
    %v2663 = vpow.pop %v2662
    %v2664 = vmul.f32 %v2564, 1.442695
    %v2665 = vpow.pop %v2664
    %v2666 = vmul.f32 %v2565, 1.442695
    %v2667 = vpow.pop %v2666
    %v2668 = vmul.f32 %v2566, 1.442695
    %v2669 = vpow.pop %v2668
    %v2670 = vmul.f32 %v2567, 1.442695
    %v2671 = vpow.pop %v2670
    %v2672 = vmul.f32 %v2568, 1.442695
    %v2673 = vpow.pop %v2672
    %v2674 = vmul.f32 %v2569, 1.442695
    %v2675 = vpow.pop %v2674
    %v2676 = vmul.f32 %v2570, 1.442695
    %v2677 = vpow.pop %v2676
    %v2678 = vmul.f32 %v2571, 1.442695
    %v2679 = vpow.pop %v2678
    %v2680 = vmul.f32 %v2572, 1.442695
    %v2681 = vpow.pop %v2680
    %v2682 = vmul.f32 %v2573, 1.442695
    %v2683 = vpow.pop %v2682
    %v2684 = vmul.f32 %v2574, 1.442695
    %v2685 = vpow.pop %v2684
    %v2686 = vmul.f32 %v2575, 1.442695
    %v2687 = vpow.pop %v2686
    %v2688 = vmul.f32 %v2576, 1.442695
    %v2689 = vpow.pop %v2688
    %v2690 = vmul.f32 %v2577, 1.442695
    %v2691 = vpow.pop %v2690
    %v2692 = vmul.f32 %v2578, 1.442695
    %v2693 = vpow.pop %v2692
    %v2694 = vmul.f32 %v2579, 1.442695
    %v2695 = vpow.pop %v2694
    %v2696 = vmul.f32 %v2580, 1.442695
    %v2697 = vpow.pop %v2696
    %v2698 = vmul.f32 %v2581, 1.442695
    %v2699 = vpow.pop %v2698
    %v2700 = vmul.f32 %v2582, 1.442695
    %v2701 = vpow.pop %v2700
    %v2702 = vmul.f32 %v2583, 1.442695
    %v2703 = vpow.pop %v2702
    %v2704 = vmul.f32 %v2584, 1.442695
    %v2705 = vpow.pop %v2704
    %v2706 = vmul.f32 %v2585, 1.442695
    %v2707 = vpow.pop %v2706
    %v2708 = vmul.f32 %v2586, 1.442695
    %v2709 = vpow.pop %v2708
    %v2710 = vmul.f32 %v2587, 1.442695
    %v2711 = vpow.pop %v2710
    %v2712 = vmul.f32 %v2588, 1.442695
    %v2713 = vpow.pop %v2712
    %v2714 = vmul.f32 %v2589, 1.442695
    %v2715 = vpow.pop %v2714
    %v2716 = vmul.f32 %v2590, 1.442695
    %v2717 = vpow.pop %v2716
    %v2718 = vmul.f32 %v2591, 1.442695
    %v2719 = vpow.pop %v2718
    %v2720 = vsel %vm286, %v2593, 0.0
    %2721 = vadd.xlane.f32.xlu0 %v2720
    %v2722 = vpop.xlane.xlu0 %2721
    %v2723 = vsel %vm286, %v2595, 0.0
    %2724 = vadd.xlane.f32.xlu0 %v2723
    %v2725 = vpop.xlane.xlu0 %2724
    %v2726 = vsel %vm286, %v2597, 0.0
    %2727 = vadd.xlane.f32.xlu0 %v2726
    %v2728 = vpop.xlane.xlu0 %2727
    %v2729 = vsel %vm286, %v2599, 0.0
    %2730 = vadd.xlane.f32.xlu0 %v2729
    %v2731 = vpop.xlane.xlu0 %2730
    %v2732 = vsel %vm286, %v2601, 0.0
    %2733 = vadd.xlane.f32.xlu0 %v2732
    %v2734 = vpop.xlane.xlu0 %2733
    %v2735 = vsel %vm286, %v2603, 0.0
    %2736 = vadd.xlane.f32.xlu0 %v2735
    %v2737 = vpop.xlane.xlu0 %2736
    %v2738 = vsel %vm286, %v2605, 0.0
    %2739 = vadd.xlane.f32.xlu0 %v2738
    %v2740 = vpop.xlane.xlu0 %2739
    %v2741 = vsel %vm286, %v2607, 0.0
    %2742 = vadd.xlane.f32.xlu0 %v2741
    %v2743 = vpop.xlane.xlu0 %2742
    %v2744 = vsel %vm286, %v2609, 0.0
    %2745 = vadd.xlane.f32.xlu0 %v2744
    %v2746 = vpop.xlane.xlu0 %2745
    %v2747 = vsel %vm286, %v2611, 0.0
    %2748 = vadd.xlane.f32.xlu0 %v2747
    %v2749 = vpop.xlane.xlu0 %2748
    %v2750 = vsel %vm286, %v2613, 0.0
    %2751 = vadd.xlane.f32.xlu0 %v2750
    %v2752 = vpop.xlane.xlu0 %2751
    %v2753 = vsel %vm286, %v2615, 0.0
    %2754 = vadd.xlane.f32.xlu0 %v2753
    %v2755 = vpop.xlane.xlu0 %2754
    %v2756 = vsel %vm286, %v2617, 0.0
    %2757 = vadd.xlane.f32.xlu0 %v2756
    %v2758 = vpop.xlane.xlu0 %2757
    %v2759 = vsel %vm286, %v2619, 0.0
    %2760 = vadd.xlane.f32.xlu0 %v2759
    %v2761 = vpop.xlane.xlu0 %2760
    %v2762 = vsel %vm286, %v2621, 0.0
    %2763 = vadd.xlane.f32.xlu0 %v2762
    %v2764 = vpop.xlane.xlu0 %2763
    %v2765 = vsel %vm286, %v2623, 0.0
    %2766 = vadd.xlane.f32.xlu0 %v2765
    %v2767 = vpop.xlane.xlu0 %2766
    %v2768 = vsel %vm286, %v2625, 0.0
    %2769 = vadd.xlane.f32.xlu0 %v2768
    %v2770 = vpop.xlane.xlu0 %2769
    %v2771 = vsel %vm286, %v2627, 0.0
    %2772 = vadd.xlane.f32.xlu0 %v2771
    %v2773 = vpop.xlane.xlu0 %2772
    %v2774 = vsel %vm286, %v2629, 0.0
    %2775 = vadd.xlane.f32.xlu0 %v2774
    %v2776 = vpop.xlane.xlu0 %2775
    %v2777 = vsel %vm286, %v2631, 0.0
    %2778 = vadd.xlane.f32.xlu0 %v2777
    %v2779 = vpop.xlane.xlu0 %2778
    %v2780 = vsel %vm286, %v2633, 0.0
    %2781 = vadd.xlane.f32.xlu0 %v2780
    %v2782 = vpop.xlane.xlu0 %2781
    %v2783 = vsel %vm286, %v2635, 0.0
    %2784 = vadd.xlane.f32.xlu0 %v2783
    %v2785 = vpop.xlane.xlu0 %2784
    %v2786 = vsel %vm286, %v2637, 0.0
    %2787 = vadd.xlane.f32.xlu0 %v2786
    %v2788 = vpop.xlane.xlu0 %2787
    %v2789 = vsel %vm286, %v2639, 0.0
    %2790 = vadd.xlane.f32.xlu0 %v2789
    %v2791 = vpop.xlane.xlu0 %2790
    %v2792 = vsel %vm286, %v2641, 0.0
    %2793 = vadd.xlane.f32.xlu0 %v2792
    %v2794 = vpop.xlane.xlu0 %2793
    %v2795 = vsel %vm286, %v2643, 0.0
    %2796 = vadd.xlane.f32.xlu0 %v2795
    %v2797 = vpop.xlane.xlu0 %2796
    %v2798 = vsel %vm286, %v2645, 0.0
    %2799 = vadd.xlane.f32.xlu0 %v2798
    %v2800 = vpop.xlane.xlu0 %2799
    %v2801 = vsel %vm286, %v2647, 0.0
    %2802 = vadd.xlane.f32.xlu0 %v2801
    %v2803 = vpop.xlane.xlu0 %2802
    %v2804 = vsel %vm286, %v2649, 0.0
    %2805 = vadd.xlane.f32.xlu0 %v2804
    %v2806 = vpop.xlane.xlu0 %2805
    %v2807 = vsel %vm286, %v2651, 0.0
    %2808 = vadd.xlane.f32.xlu0 %v2807
    %v2809 = vpop.xlane.xlu0 %2808
    %v2810 = vsel %vm286, %v2653, 0.0
    %2811 = vadd.xlane.f32.xlu0 %v2810
    %v2812 = vpop.xlane.xlu0 %2811
    %v2813 = vsel %vm286, %v2655, 0.0
    %2814 = vadd.xlane.f32.xlu0 %v2813
    %v2815 = vpop.xlane.xlu0 %2814
    %v2816 = vsel %vm286, %v2657, 0.0
    %2817 = vadd.xlane.f32.xlu0 %v2816
    %v2818 = vpop.xlane.xlu0 %2817
    %v2819 = vsel %vm286, %v2659, 0.0
    %2820 = vadd.xlane.f32.xlu0 %v2819
    %v2821 = vpop.xlane.xlu0 %2820
    %v2822 = vsel %vm286, %v2661, 0.0
    %2823 = vadd.xlane.f32.xlu0 %v2822
    %v2824 = vpop.xlane.xlu0 %2823
    %v2825 = vsel %vm286, %v2663, 0.0
    %2826 = vadd.xlane.f32.xlu0 %v2825
    %v2827 = vpop.xlane.xlu0 %2826
    %v2828 = vsel %vm286, %v2665, 0.0
    %2829 = vadd.xlane.f32.xlu0 %v2828
    %v2830 = vpop.xlane.xlu0 %2829
    %v2831 = vsel %vm286, %v2667, 0.0
    %2832 = vadd.xlane.f32.xlu0 %v2831
    %v2833 = vpop.xlane.xlu0 %2832
    %v2834 = vsel %vm286, %v2669, 0.0
    %2835 = vadd.xlane.f32.xlu0 %v2834
    %v2836 = vpop.xlane.xlu0 %2835
    %v2837 = vsel %vm286, %v2671, 0.0
    %2838 = vadd.xlane.f32.xlu0 %v2837
    %v2839 = vpop.xlane.xlu0 %2838
    %v2840 = vsel %vm286, %v2673, 0.0
    %2841 = vadd.xlane.f32.xlu0 %v2840
    %v2842 = vpop.xlane.xlu0 %2841
    %v2843 = vsel %vm286, %v2675, 0.0
    %2844 = vadd.xlane.f32.xlu0 %v2843
    %v2845 = vpop.xlane.xlu0 %2844
    %v2846 = vsel %vm286, %v2677, 0.0
    %2847 = vadd.xlane.f32.xlu0 %v2846
    %v2848 = vpop.xlane.xlu0 %2847
    %v2849 = vsel %vm286, %v2679, 0.0
    %2850 = vadd.xlane.f32.xlu0 %v2849
    %v2851 = vpop.xlane.xlu0 %2850
    %v2852 = vsel %vm286, %v2681, 0.0
    %2853 = vadd.xlane.f32.xlu0 %v2852
    %v2854 = vpop.xlane.xlu0 %2853
    %v2855 = vsel %vm286, %v2683, 0.0
    %2856 = vadd.xlane.f32.xlu0 %v2855
    %v2857 = vpop.xlane.xlu0 %2856
    %v2858 = vsel %vm286, %v2685, 0.0
    %2859 = vadd.xlane.f32.xlu0 %v2858
    %v2860 = vpop.xlane.xlu0 %2859
    %v2861 = vsel %vm286, %v2687, 0.0
    %2862 = vadd.xlane.f32.xlu0 %v2861
    %v2863 = vpop.xlane.xlu0 %2862
    %v2864 = vsel %vm286, %v2689, 0.0
    %2865 = vadd.xlane.f32.xlu0 %v2864
    %v2866 = vpop.xlane.xlu0 %2865
    %v2867 = vsel %vm286, %v2691, 0.0
    %2868 = vadd.xlane.f32.xlu0 %v2867
    %v2869 = vpop.xlane.xlu0 %2868
    %v2870 = vsel %vm286, %v2693, 0.0
    %2871 = vadd.xlane.f32.xlu0 %v2870
    %v2872 = vpop.xlane.xlu0 %2871
    %v2873 = vsel %vm286, %v2695, 0.0
    %2874 = vadd.xlane.f32.xlu0 %v2873
    %v2875 = vpop.xlane.xlu0 %2874
    %v2876 = vsel %vm286, %v2697, 0.0
    %2877 = vadd.xlane.f32.xlu0 %v2876
    %v2878 = vpop.xlane.xlu0 %2877
    %v2879 = vsel %vm286, %v2699, 0.0
    %2880 = vadd.xlane.f32.xlu0 %v2879
    %v2881 = vpop.xlane.xlu0 %2880
    %v2882 = vsel %vm286, %v2701, 0.0
    %2883 = vadd.xlane.f32.xlu0 %v2882
    %v2884 = vpop.xlane.xlu0 %2883
    %v2885 = vsel %vm286, %v2703, 0.0
    %2886 = vadd.xlane.f32.xlu0 %v2885
    %v2887 = vpop.xlane.xlu0 %2886
    %v2888 = vsel %vm286, %v2705, 0.0
    %2889 = vadd.xlane.f32.xlu0 %v2888
    %v2890 = vpop.xlane.xlu0 %2889
    %v2891 = vsel %vm286, %v2707, 0.0
    %2892 = vadd.xlane.f32.xlu0 %v2891
    %v2893 = vpop.xlane.xlu0 %2892
    %v2894 = vsel %vm286, %v2709, 0.0
    %2895 = vadd.xlane.f32.xlu0 %v2894
    %v2896 = vpop.xlane.xlu0 %2895
    %v2897 = vsel %vm286, %v2711, 0.0
    %2898 = vadd.xlane.f32.xlu0 %v2897
    %v2899 = vpop.xlane.xlu0 %2898
    %v2900 = vsel %vm286, %v2713, 0.0
    %2901 = vadd.xlane.f32.xlu0 %v2900
    %v2902 = vpop.xlane.xlu0 %2901
    %v2903 = vsel %vm286, %v2715, 0.0
    %2904 = vadd.xlane.f32.xlu0 %v2903
    %v2905 = vpop.xlane.xlu0 %2904
    %v2906 = vsel %vm286, %v2717, 0.0
    %2907 = vadd.xlane.f32.xlu0 %v2906
    %v2908 = vpop.xlane.xlu0 %2907
    %v2909 = vsel %vm286, %v2719, 0.0
    %2910 = vadd.xlane.f32.xlu0 %v2909
    %v2911 = vpop.xlane.xlu0 %2910
    %v2912 = vrcp.pop %v2722
    %v2913 = vrcp.pop %v2725
    %v2914 = vrcp.pop %v2728
    %v2915 = vrcp.pop %v2731
    %v2916 = vrcp.pop %v2734
    %v2917 = vrcp.pop %v2737
    %v2918 = vrcp.pop %v2740
    %v2919 = vrcp.pop %v2743
    %v2920 = vrcp.pop %v2746
    %v2921 = vrcp.pop %v2749
    %v2922 = vrcp.pop %v2752
    %v2923 = vrcp.pop %v2755
    %v2924 = vrcp.pop %v2758
    %v2925 = vrcp.pop %v2761
    %v2926 = vrcp.pop %v2764
    %v2927 = vrcp.pop %v2767
    %v2928 = vrcp.pop %v2770
    %v2929 = vrcp.pop %v2773
    %v2930 = vrcp.pop %v2776
    %v2931 = vrcp.pop %v2779
    %v2932 = vrcp.pop %v2782
    %v2933 = vrcp.pop %v2785
    %v2934 = vrcp.pop %v2788
    %v2935 = vrcp.pop %v2791
    %v2936 = vrcp.pop %v2794
    %v2937 = vrcp.pop %v2797
    %v2938 = vrcp.pop %v2800
    %v2939 = vrcp.pop %v2803
    %v2940 = vrcp.pop %v2806
    %v2941 = vrcp.pop %v2809
    %v2942 = vrcp.pop %v2812
    %v2943 = vrcp.pop %v2815
    %v2944 = vrcp.pop %v2818
    %v2945 = vrcp.pop %v2821
    %v2946 = vrcp.pop %v2824
    %v2947 = vrcp.pop %v2827
    %v2948 = vrcp.pop %v2830
    %v2949 = vrcp.pop %v2833
    %v2950 = vrcp.pop %v2836
    %v2951 = vrcp.pop %v2839
    %v2952 = vrcp.pop %v2842
    %v2953 = vrcp.pop %v2845
    %v2954 = vrcp.pop %v2848
    %v2955 = vrcp.pop %v2851
    %v2956 = vrcp.pop %v2854
    %v2957 = vrcp.pop %v2857
    %v2958 = vrcp.pop %v2860
    %v2959 = vrcp.pop %v2863
    %v2960 = vrcp.pop %v2866
    %v2961 = vrcp.pop %v2869
    %v2962 = vrcp.pop %v2872
    %v2963 = vrcp.pop %v2875
    %v2964 = vrcp.pop %v2878
    %v2965 = vrcp.pop %v2881
    %v2966 = vrcp.pop %v2884
    %v2967 = vrcp.pop %v2887
    %v2968 = vrcp.pop %v2890
    %v2969 = vrcp.pop %v2893
    %v2970 = vrcp.pop %v2896
    %v2971 = vrcp.pop %v2899
    %v2972 = vrcp.pop %v2902
    %v2973 = vrcp.pop %v2905
    %v2974 = vrcp.pop %v2908
    %v2975 = vrcp.pop %v2911
    %v2976 = vmul.f32 %v2593, %v2912
    %v2977 = vmul.f32 %v2595, %v2913
    %v2978 = vmul.f32 %v2597, %v2914
    %v2979 = vmul.f32 %v2599, %v2915
    %v2980 = vmul.f32 %v2601, %v2916
    %v2981 = vmul.f32 %v2603, %v2917
    %v2982 = vmul.f32 %v2605, %v2918
    %v2983 = vmul.f32 %v2607, %v2919
    %v2984 = vmul.f32 %v2609, %v2920
    %v2985 = vmul.f32 %v2611, %v2921
    %v2986 = vmul.f32 %v2613, %v2922
    %v2987 = vmul.f32 %v2615, %v2923
    %v2988 = vmul.f32 %v2617, %v2924
    %v2989 = vmul.f32 %v2619, %v2925
    %v2990 = vmul.f32 %v2621, %v2926
    %v2991 = vmul.f32 %v2623, %v2927
    %v2992 = vmul.f32 %v2625, %v2928
    %v2993 = vmul.f32 %v2627, %v2929
    %v2994 = vmul.f32 %v2629, %v2930
    %v2995 = vmul.f32 %v2631, %v2931
    %v2996 = vmul.f32 %v2633, %v2932
    %v2997 = vmul.f32 %v2635, %v2933
    %v2998 = vmul.f32 %v2637, %v2934
    %v2999 = vmul.f32 %v2639, %v2935
    %v3000 = vmul.f32 %v2641, %v2936
    %v3001 = vmul.f32 %v2643, %v2937
    %v3002 = vmul.f32 %v2645, %v2938
    %v3003 = vmul.f32 %v2647, %v2939
    %v3004 = vmul.f32 %v2649, %v2940
    %v3005 = vmul.f32 %v2651, %v2941
    %v3006 = vmul.f32 %v2653, %v2942
    %v3007 = vmul.f32 %v2655, %v2943
    %v3008 = vmul.f32 %v2657, %v2944
    %v3009 = vmul.f32 %v2659, %v2945
    %v3010 = vmul.f32 %v2661, %v2946
    %v3011 = vmul.f32 %v2663, %v2947
    %v3012 = vmul.f32 %v2665, %v2948
    %v3013 = vmul.f32 %v2667, %v2949
    %v3014 = vmul.f32 %v2669, %v2950
    %v3015 = vmul.f32 %v2671, %v2951
    %v3016 = vmul.f32 %v2673, %v2952
    %v3017 = vmul.f32 %v2675, %v2953
    %v3018 = vmul.f32 %v2677, %v2954
    %v3019 = vmul.f32 %v2679, %v2955
    %v3020 = vmul.f32 %v2681, %v2956
    %v3021 = vmul.f32 %v2683, %v2957
    %v3022 = vmul.f32 %v2685, %v2958
    %v3023 = vmul.f32 %v2687, %v2959
    %v3024 = vmul.f32 %v2689, %v2960
    %v3025 = vmul.f32 %v2691, %v2961
    %v3026 = vmul.f32 %v2693, %v2962
    %v3027 = vmul.f32 %v2695, %v2963
    %v3028 = vmul.f32 %v2697, %v2964
    %v3029 = vmul.f32 %v2699, %v2965
    %v3030 = vmul.f32 %v2701, %v2966
    %v3031 = vmul.f32 %v2703, %v2967
    %v3032 = vmul.f32 %v2705, %v2968
    %v3033 = vmul.f32 %v2707, %v2969
    %v3034 = vmul.f32 %v2709, %v2970
    %v3035 = vmul.f32 %v2711, %v2971
    %v3036 = vmul.f32 %v2713, %v2972
    %v3037 = vmul.f32 %v2715, %v2973
    %v3038 = vmul.f32 %v2717, %v2974
    %v3039 = vmul.f32 %v2719, %v2975
    %v3040 = vmul.f32 %v2976, %v1042
    %v3041 = vmul.f32 %v2977, %v1045
    %v3042 = vmul.f32 %v2978, %v1050
    %v3043 = vmul.f32 %v2979, %v1053
    %v3044 = vmul.f32 %v2980, %v1058
    %v3045 = vmul.f32 %v2981, %v1061
    %v3046 = vmul.f32 %v2982, %v1066
    %v3047 = vmul.f32 %v2983, %v1069
    %v3048 = vmul.f32 %v2984, %v1074
    %v3049 = vmul.f32 %v2985, %v1077
    %v3050 = vmul.f32 %v2986, %v1082
    %v3051 = vmul.f32 %v2987, %v1085
    %v3052 = vmul.f32 %v2988, %v1090
    %v3053 = vmul.f32 %v2989, %v1093
    %v3054 = vmul.f32 %v2990, %v1098
    %v3055 = vmul.f32 %v2991, %v1101
    %v3056 = vmul.f32 %v2992, %v1106
    %v3057 = vmul.f32 %v2993, %v1109
    %v3058 = vmul.f32 %v2994, %v1114
    %v3059 = vmul.f32 %v2995, %v1117
    %v3060 = vmul.f32 %v2996, %v1122
    %v3061 = vmul.f32 %v2997, %v1125
    %v3062 = vmul.f32 %v2998, %v1130
    %v3063 = vmul.f32 %v2999, %v1133
    %v3064 = vmul.f32 %v3000, %v1138
    %v3065 = vmul.f32 %v3001, %v1141
    %v3066 = vmul.f32 %v3002, %v1146
    %v3067 = vmul.f32 %v3003, %v1149
    %v3068 = vmul.f32 %v3004, %v1154
    %v3069 = vmul.f32 %v3005, %v1157
    %v3070 = vmul.f32 %v3006, %v1162
    %v3071 = vmul.f32 %v3007, %v1165
    %v3072 = vmul.f32 %v3008, %v1170
    %v3073 = vmul.f32 %v3009, %v1173
    %v3074 = vmul.f32 %v3010, %v1178
    %v3075 = vmul.f32 %v3011, %v1181
    %v3076 = vmul.f32 %v3012, %v1186
    %v3077 = vmul.f32 %v3013, %v1189
    %v3078 = vmul.f32 %v3014, %v1194
    %v3079 = vmul.f32 %v3015, %v1197
    %v3080 = vmul.f32 %v3016, %v1202
    %v3081 = vmul.f32 %v3017, %v1205
    %v3082 = vmul.f32 %v3018, %v1210
    %v3083 = vmul.f32 %v3019, %v1213
    %v3084 = vmul.f32 %v3020, %v1218
    %v3085 = vmul.f32 %v3021, %v1221
    %v3086 = vmul.f32 %v3022, %v1226
    %v3087 = vmul.f32 %v3023, %v1229
    %v3088 = vmul.f32 %v3024, %v1234
    %v3089 = vmul.f32 %v3025, %v1237
    %v3090 = vmul.f32 %v3026, %v1242
    %v3091 = vmul.f32 %v3027, %v1245
    %v3092 = vmul.f32 %v3028, %v1250
    %v3093 = vmul.f32 %v3029, %v1253
    %v3094 = vmul.f32 %v3030, %v1258
    %v3095 = vmul.f32 %v3031, %v1261
    %v3096 = vmul.f32 %v3032, %v1266
    %v3097 = vmul.f32 %v3033, %v1269
    %v3098 = vmul.f32 %v3034, %v1274
    %v3099 = vmul.f32 %v3035, %v1277
    %v3100 = vmul.f32 %v3036, %v1282
    %v3101 = vmul.f32 %v3037, %v1285
    %v3102 = vmul.f32 %v3038, %v1290
    %v3103 = vmul.f32 %v3039, %v1293
    %v3104 = vpack.c.bf16 %v3041, %v3040
    %v3105 = vpack.c.bf16 %v3043, %v3042
    %v3106 = vpack.c.bf16 %v3045, %v3044
    %v3107 = vpack.c.bf16 %v3047, %v3046
    %v3108 = vpack.c.bf16 %v3049, %v3048
    %v3109 = vpack.c.bf16 %v3051, %v3050
    %v3110 = vpack.c.bf16 %v3053, %v3052
    %v3111 = vpack.c.bf16 %v3055, %v3054
    %v3112 = vpack.c.bf16 %v3057, %v3056
    %v3113 = vpack.c.bf16 %v3059, %v3058
    %v3114 = vpack.c.bf16 %v3061, %v3060
    %v3115 = vpack.c.bf16 %v3063, %v3062
    %v3116 = vpack.c.bf16 %v3065, %v3064
    %v3117 = vpack.c.bf16 %v3067, %v3066
    %v3118 = vpack.c.bf16 %v3069, %v3068
    %v3119 = vpack.c.bf16 %v3071, %v3070
    %v3120 = vpack.c.bf16 %v3073, %v3072
    %v3121 = vpack.c.bf16 %v3075, %v3074
    %v3122 = vpack.c.bf16 %v3077, %v3076
    %v3123 = vpack.c.bf16 %v3079, %v3078
    %v3124 = vpack.c.bf16 %v3081, %v3080
    %v3125 = vpack.c.bf16 %v3083, %v3082
    %v3126 = vpack.c.bf16 %v3085, %v3084
    %v3127 = vpack.c.bf16 %v3087, %v3086
    %v3128 = vpack.c.bf16 %v3089, %v3088
    %v3129 = vpack.c.bf16 %v3091, %v3090
    %v3130 = vpack.c.bf16 %v3093, %v3092
    %v3131 = vpack.c.bf16 %v3095, %v3094
    %v3132 = vpack.c.bf16 %v3097, %v3096
    %v3133 = vpack.c.bf16 %v3099, %v3098
    %v3134 = vpack.c.bf16 %v3101, %v3100
    %v3135 = vpack.c.bf16 %v3103, %v3102
    %v3136 = vld [vmem:[#allocation6 + $0xc] sm:$0xf]
    %v3137 = vld [vmem:[#allocation6 + $0x28] sm:$0xf]
    %v3138 = vld [vmem:[#allocation6 + $0x44] sm:$0xf]
    %v3139 = vld [vmem:[#allocation6 + $0x60] sm:$0xf]
    %v3140 = vld [vmem:[#allocation7 + $0x3] sm:$0x1]
    %v3142 = vlaneseq
    %v3143 = vshrl.u32 %v3142, 7
    %v3144 = vsub.s32 0, %v3143
    %v3145 = vrot.slane %v3140, %v3144
    %v3151 = vunpack.c.l.b16 %v3136
    %v3152 = vunpack.c.l.b16 %v3137
    %v3153 = vunpack.c.l.b16 %v3138
    %v3154 = vunpack.c.l.b16 %v3139
    %v3155 = vpack.c.b16 %v3152, %v3151
    %v3156 = vpack.c.b16 %v3154, %v3153
    %v3160 = vsel %vm286, %v3104, 0
    %v3163 = vsel %vm286, %v3105, 0
    %v3166 = vsel %vm286, %v3106, 0
    %v3169 = vsel %vm286, %v3107, 0
    %v3172 = vsel %vm286, %v3108, 0
    %v3175 = vsel %vm286, %v3109, 0
    %v3178 = vsel %vm286, %v3110, 0
    %v3181 = vsel %vm286, %v3111, 0
    %v3184 = vsel %vm286, %v3112, 0
    %v3187 = vsel %vm286, %v3113, 0
    %v3190 = vsel %vm286, %v3114, 0
    %v3193 = vsel %vm286, %v3115, 0
    %v3196 = vsel %vm286, %v3116, 0
    %v3199 = vsel %vm286, %v3117, 0
    %v3202 = vsel %vm286, %v3118, 0
    %v3205 = vsel %vm286, %v3119, 0
    %v3208 = vsel %vm286, %v3120, 0
    %v3211 = vsel %vm286, %v3121, 0
    %v3214 = vsel %vm286, %v3122, 0
    %v3217 = vsel %vm286, %v3123, 0
    %v3220 = vsel %vm286, %v3124, 0
    %v3223 = vsel %vm286, %v3125, 0
    %v3226 = vsel %vm286, %v3126, 0
    %v3229 = vsel %vm286, %v3127, 0
    %v3232 = vsel %vm286, %v3128, 0
    %v3235 = vsel %vm286, %v3129, 0
    %v3238 = vsel %vm286, %v3130, 0
    %v3241 = vsel %vm286, %v3131, 0
    %v3244 = vsel %vm286, %v3132, 0
    %v3247 = vsel %vm286, %v3133, 0
    %v3250 = vsel %vm286, %v3134, 0
    %v3253 = vsel %vm286, %v3135, 0
    %3255 = vmatprep.subr.bf16.mxu0 0
    %3256 = vmatpush1.bf16.msra.mxu0 0
    %3257 = vmatprep.subr.bf16.mxu0 0
    %3258 = vmatpush1.bf16.msra.mxu0 0
    %3259 = vmatprep.subr.bf16.mxu0 0
    %3260 = vmatpush1.bf16.msra.mxu0 0
    %3261 = vmatprep.subr.bf16.mxu0 0
    %3262 = vmatpush1.bf16.msra.mxu0 0
    %3263 = vmatprep.subr.bf16.mxu0 0
    %3264 = vmatpush1.bf16.msra.mxu0 0
    %3265 = vmatprep.subr.bf16.mxu0 0
    %3266 = vmatpush1.bf16.msra.mxu0 0
    %3267 = vmatprep.subr.bf16.mxu0 0
    %3268 = vmatpush1.bf16.msra.mxu0 %v3156
    %3269 = vmatprep.subr.bf16.mxu0 0
    %3270 = vmatpush1.bf16.msra.mxu0 %v3155
    %3271 = vmatprep.subr.bf16.mxu0 0
    %3272 = vmatpush2.bf16.msra.mxu0 0
    %3273 = vmatprep.subr.bf16.mxu0 0
    %3274 = vmatpush2.bf16.msra.mxu0 0
    %3275 = vmatprep.subr.bf16.mxu0 0
    %3276 = vmatpush2.bf16.msra.mxu0 0
    %3277 = vmatprep.subr.bf16.mxu0 0
    %3278 = vmatpush2.bf16.msra.mxu0 0
    %3279 = vmatprep.subr.bf16.mxu0 0
    %3280 = vmatpush2.bf16.msra.mxu0 0
    %3281 = vmatprep.subr.bf16.mxu0 0
    %3282 = vmatpush2.bf16.msra.mxu0 0
    %3283 = vmatprep.subr.bf16.mxu0 0
    %3284 = vmatpush2.bf16.msra.mxu0 0
    %3285 = vmatprep.subr.bf16.mxu0 0
    %3286 = vmatpush2.bf16.msra.mxu0 0
    %3287 = vmatprep.mubr.bf16.mxu0 0
    %3288 = vmatmul.mubr.bf16.gmra.mxu0 %v3160
    %v3289 = vpop.f32.mrf.mxu0
    %v3290 = vadd.f32 %v3145, %v3289
    %v3291 = vpop.f32.mrf.mxu0
    %v3292 = vpop.f32.mrf.mxu0
    %v3293 = vadd.f32 %v3145, %v3292
    %v3294 = vpop.f32.mrf.mxu0
    %3295 = vmatprep.mubr.bf16.mxu0 0
    %3296 = vmatmul.mubr.bf16.gmra.mxu0 %v3163
    %v3297 = vpop.f32.mrf.mxu0
    %v3298 = vadd.f32 %v3145, %v3297
    %v3299 = vpop.f32.mrf.mxu0
    %v3300 = vpop.f32.mrf.mxu0
    %v3301 = vadd.f32 %v3145, %v3300
    %v3302 = vpop.f32.mrf.mxu0
    %3303 = vmatprep.mubr.bf16.mxu0 0
    %3304 = vmatmul.mubr.bf16.gmra.mxu0 %v3166
    %v3305 = vpop.f32.mrf.mxu0
    %v3306 = vadd.f32 %v3145, %v3305
    %v3307 = vpop.f32.mrf.mxu0
    %v3308 = vpop.f32.mrf.mxu0
    %v3309 = vadd.f32 %v3145, %v3308
    %v3310 = vpop.f32.mrf.mxu0
    %3311 = vmatprep.mubr.bf16.mxu0 0
    %3312 = vmatmul.mubr.bf16.gmra.mxu0 %v3169
    %v3313 = vpop.f32.mrf.mxu0
    %v3314 = vadd.f32 %v3145, %v3313
    %v3315 = vpop.f32.mrf.mxu0
    %v3316 = vpop.f32.mrf.mxu0
    %v3317 = vadd.f32 %v3145, %v3316
    %v3318 = vpop.f32.mrf.mxu0
    %3319 = vmatprep.mubr.bf16.mxu0 0
    %3320 = vmatmul.mubr.bf16.gmra.mxu0 %v3172
    %v3321 = vpop.f32.mrf.mxu0
    %v3322 = vadd.f32 %v3145, %v3321
    %v3323 = vpop.f32.mrf.mxu0
    %v3324 = vpop.f32.mrf.mxu0
    %v3325 = vadd.f32 %v3145, %v3324
    %v3326 = vpop.f32.mrf.mxu0
    %3327 = vmatprep.mubr.bf16.mxu0 0
    %3328 = vmatmul.mubr.bf16.gmra.mxu0 %v3175
    %v3329 = vpop.f32.mrf.mxu0
    %v3330 = vadd.f32 %v3145, %v3329
    %v3331 = vpop.f32.mrf.mxu0
    %v3332 = vpop.f32.mrf.mxu0
    %v3333 = vadd.f32 %v3145, %v3332
    %v3334 = vpop.f32.mrf.mxu0
    %3335 = vmatprep.mubr.bf16.mxu0 0
    %3336 = vmatmul.mubr.bf16.gmra.mxu0 %v3178
    %v3337 = vpop.f32.mrf.mxu0
    %v3338 = vadd.f32 %v3145, %v3337
    %v3339 = vpop.f32.mrf.mxu0
    %v3340 = vpop.f32.mrf.mxu0
    %v3341 = vadd.f32 %v3145, %v3340
    %v3342 = vpop.f32.mrf.mxu0
    %3343 = vmatprep.mubr.bf16.mxu0 0
    %3344 = vmatmul.mubr.bf16.gmra.mxu0 %v3181
    %v3345 = vpop.f32.mrf.mxu0
    %v3346 = vadd.f32 %v3145, %v3345
    %v3347 = vpop.f32.mrf.mxu0
    %v3348 = vpop.f32.mrf.mxu0
    %v3349 = vadd.f32 %v3145, %v3348
    %v3350 = vpop.f32.mrf.mxu0
    %3351 = vmatprep.mubr.bf16.mxu0 0
    %3352 = vmatmul.mubr.bf16.gmra.mxu0 %v3184
    %v3353 = vpop.f32.mrf.mxu0
    %v3354 = vadd.f32 %v3145, %v3353
    %v3355 = vpop.f32.mrf.mxu0
    %v3356 = vpop.f32.mrf.mxu0
    %v3357 = vadd.f32 %v3145, %v3356
    %v3358 = vpop.f32.mrf.mxu0
    %3359 = vmatprep.mubr.bf16.mxu0 0
    %3360 = vmatmul.mubr.bf16.gmra.mxu0 %v3187
    %v3361 = vpop.f32.mrf.mxu0
    %v3362 = vadd.f32 %v3145, %v3361
    %v3363 = vpop.f32.mrf.mxu0
    %v3364 = vpop.f32.mrf.mxu0
    %v3365 = vadd.f32 %v3145, %v3364
    %v3366 = vpop.f32.mrf.mxu0
    %3367 = vmatprep.mubr.bf16.mxu0 0
    %3368 = vmatmul.mubr.bf16.gmra.mxu0 %v3190
    %v3369 = vpop.f32.mrf.mxu0
    %v3370 = vadd.f32 %v3145, %v3369
    %v3371 = vpop.f32.mrf.mxu0
    %v3372 = vpop.f32.mrf.mxu0
    %v3373 = vadd.f32 %v3145, %v3372
    %v3374 = vpop.f32.mrf.mxu0
    %3375 = vmatprep.mubr.bf16.mxu0 0
    %3376 = vmatmul.mubr.bf16.gmra.mxu0 %v3193
    %v3377 = vpop.f32.mrf.mxu0
    %v3378 = vadd.f32 %v3145, %v3377
    %v3379 = vpop.f32.mrf.mxu0
    %v3380 = vpop.f32.mrf.mxu0
    %v3381 = vadd.f32 %v3145, %v3380
    %v3382 = vpop.f32.mrf.mxu0
    %3383 = vmatprep.mubr.bf16.mxu0 0
    %3384 = vmatmul.mubr.bf16.gmra.mxu0 %v3196
    %v3385 = vpop.f32.mrf.mxu0
    %v3386 = vadd.f32 %v3145, %v3385
    %v3387 = vpop.f32.mrf.mxu0
    %v3388 = vpop.f32.mrf.mxu0
    %v3389 = vadd.f32 %v3145, %v3388
    %v3390 = vpop.f32.mrf.mxu0
    %3391 = vmatprep.mubr.bf16.mxu0 0
    %3392 = vmatmul.mubr.bf16.gmra.mxu0 %v3199
    %v3393 = vpop.f32.mrf.mxu0
    %v3394 = vadd.f32 %v3145, %v3393
    %v3395 = vpop.f32.mrf.mxu0
    %v3396 = vpop.f32.mrf.mxu0
    %v3397 = vadd.f32 %v3145, %v3396
    %v3398 = vpop.f32.mrf.mxu0
    %3399 = vmatprep.mubr.bf16.mxu0 0
    %3400 = vmatmul.mubr.bf16.gmra.mxu0 %v3202
    %v3401 = vpop.f32.mrf.mxu0
    %v3402 = vadd.f32 %v3145, %v3401
    %v3403 = vpop.f32.mrf.mxu0
    %v3404 = vpop.f32.mrf.mxu0
    %v3405 = vadd.f32 %v3145, %v3404
    %v3406 = vpop.f32.mrf.mxu0
    %3407 = vmatprep.mubr.bf16.mxu0 0
    %3408 = vmatmul.mubr.bf16.gmra.mxu0 %v3205
    %v3409 = vpop.f32.mrf.mxu0
    %v3410 = vadd.f32 %v3145, %v3409
    %v3411 = vpop.f32.mrf.mxu0
    %v3412 = vpop.f32.mrf.mxu0
    %v3413 = vadd.f32 %v3145, %v3412
    %v3414 = vpop.f32.mrf.mxu0
    %3415 = vmatprep.mubr.bf16.mxu0 0
    %3416 = vmatmul.mubr.bf16.gmra.mxu0 %v3208
    %v3417 = vpop.f32.mrf.mxu0
    %v3418 = vadd.f32 %v3145, %v3417
    %v3419 = vpop.f32.mrf.mxu0
    %v3420 = vpop.f32.mrf.mxu0
    %v3421 = vadd.f32 %v3145, %v3420
    %v3422 = vpop.f32.mrf.mxu0
    %3423 = vmatprep.mubr.bf16.mxu0 0
    %3424 = vmatmul.mubr.bf16.gmra.mxu0 %v3211
    %v3425 = vpop.f32.mrf.mxu0
    %v3426 = vadd.f32 %v3145, %v3425
    %v3427 = vpop.f32.mrf.mxu0
    %v3428 = vpop.f32.mrf.mxu0
    %v3429 = vadd.f32 %v3145, %v3428
    %v3430 = vpop.f32.mrf.mxu0
    %3431 = vmatprep.mubr.bf16.mxu0 0
    %3432 = vmatmul.mubr.bf16.gmra.mxu0 %v3214
    %v3433 = vpop.f32.mrf.mxu0
    %v3434 = vadd.f32 %v3145, %v3433
    %v3435 = vpop.f32.mrf.mxu0
    %v3436 = vpop.f32.mrf.mxu0
    %v3437 = vadd.f32 %v3145, %v3436
    %v3438 = vpop.f32.mrf.mxu0
    %3439 = vmatprep.mubr.bf16.mxu0 0
    %3440 = vmatmul.mubr.bf16.gmra.mxu0 %v3217
    %v3441 = vpop.f32.mrf.mxu0
    %v3442 = vadd.f32 %v3145, %v3441
    %v3443 = vpop.f32.mrf.mxu0
    %v3444 = vpop.f32.mrf.mxu0
    %v3445 = vadd.f32 %v3145, %v3444
    %v3446 = vpop.f32.mrf.mxu0
    %3447 = vmatprep.mubr.bf16.mxu0 0
    %3448 = vmatmul.mubr.bf16.gmra.mxu0 %v3220
    %v3449 = vpop.f32.mrf.mxu0
    %v3450 = vadd.f32 %v3145, %v3449
    %v3451 = vpop.f32.mrf.mxu0
    %v3452 = vpop.f32.mrf.mxu0
    %v3453 = vadd.f32 %v3145, %v3452
    %v3454 = vpop.f32.mrf.mxu0
    %3455 = vmatprep.mubr.bf16.mxu0 0
    %3456 = vmatmul.mubr.bf16.gmra.mxu0 %v3223
    %v3457 = vpop.f32.mrf.mxu0
    %v3458 = vadd.f32 %v3145, %v3457
    %v3459 = vpop.f32.mrf.mxu0
    %v3460 = vpop.f32.mrf.mxu0
    %v3461 = vadd.f32 %v3145, %v3460
    %v3462 = vpop.f32.mrf.mxu0
    %3463 = vmatprep.mubr.bf16.mxu0 0
    %3464 = vmatmul.mubr.bf16.gmra.mxu0 %v3226
    %v3465 = vpop.f32.mrf.mxu0
    %v3466 = vadd.f32 %v3145, %v3465
    %v3467 = vpop.f32.mrf.mxu0
    %v3468 = vpop.f32.mrf.mxu0
    %v3469 = vadd.f32 %v3145, %v3468
    %v3470 = vpop.f32.mrf.mxu0
    %3471 = vmatprep.mubr.bf16.mxu0 0
    %3472 = vmatmul.mubr.bf16.gmra.mxu0 %v3229
    %v3473 = vpop.f32.mrf.mxu0
    %v3474 = vadd.f32 %v3145, %v3473
    %v3475 = vpop.f32.mrf.mxu0
    %v3476 = vpop.f32.mrf.mxu0
    %v3477 = vadd.f32 %v3145, %v3476
    %v3478 = vpop.f32.mrf.mxu0
    %3479 = vmatprep.mubr.bf16.mxu0 0
    %3480 = vmatmul.mubr.bf16.gmra.mxu0 %v3232
    %v3481 = vpop.f32.mrf.mxu0
    %v3482 = vadd.f32 %v3145, %v3481
    %v3483 = vpop.f32.mrf.mxu0
    %v3484 = vpop.f32.mrf.mxu0
    %v3485 = vadd.f32 %v3145, %v3484
    %v3486 = vpop.f32.mrf.mxu0
    %3487 = vmatprep.mubr.bf16.mxu0 0
    %3488 = vmatmul.mubr.bf16.gmra.mxu0 %v3235
    %v3489 = vpop.f32.mrf.mxu0
    %v3490 = vadd.f32 %v3145, %v3489
    %v3491 = vpop.f32.mrf.mxu0
    %v3492 = vpop.f32.mrf.mxu0
    %v3493 = vadd.f32 %v3145, %v3492
    %v3494 = vpop.f32.mrf.mxu0
    %3495 = vmatprep.mubr.bf16.mxu0 0
    %3496 = vmatmul.mubr.bf16.gmra.mxu0 %v3238
    %v3497 = vpop.f32.mrf.mxu0
    %v3498 = vadd.f32 %v3145, %v3497
    %v3499 = vpop.f32.mrf.mxu0
    %v3500 = vpop.f32.mrf.mxu0
    %v3501 = vadd.f32 %v3145, %v3500
    %v3502 = vpop.f32.mrf.mxu0
    %3503 = vmatprep.mubr.bf16.mxu0 0
    %3504 = vmatmul.mubr.bf16.gmra.mxu0 %v3241
    %v3505 = vpop.f32.mrf.mxu0
    %v3506 = vadd.f32 %v3145, %v3505
    %v3507 = vpop.f32.mrf.mxu0
    %v3508 = vpop.f32.mrf.mxu0
    %v3509 = vadd.f32 %v3145, %v3508
    %v3510 = vpop.f32.mrf.mxu0
    %3511 = vmatprep.mubr.bf16.mxu0 0
    %3512 = vmatmul.mubr.bf16.gmra.mxu0 %v3244
    %v3513 = vpop.f32.mrf.mxu0
    %v3514 = vadd.f32 %v3145, %v3513
    %v3515 = vpop.f32.mrf.mxu0
    %v3516 = vpop.f32.mrf.mxu0
    %v3517 = vadd.f32 %v3145, %v3516
    %v3518 = vpop.f32.mrf.mxu0
    %3519 = vmatprep.mubr.bf16.mxu0 0
    %3520 = vmatmul.mubr.bf16.gmra.mxu0 %v3247
    %v3521 = vpop.f32.mrf.mxu0
    %v3522 = vadd.f32 %v3145, %v3521
    %v3523 = vpop.f32.mrf.mxu0
    %v3524 = vpop.f32.mrf.mxu0
    %v3525 = vadd.f32 %v3145, %v3524
    %v3526 = vpop.f32.mrf.mxu0
    %3527 = vmatprep.mubr.bf16.mxu0 0
    %3528 = vmatmul.mubr.bf16.gmra.mxu0 %v3250
    %v3529 = vpop.f32.mrf.mxu0
    %v3530 = vadd.f32 %v3145, %v3529
    %v3531 = vpop.f32.mrf.mxu0
    %v3532 = vpop.f32.mrf.mxu0
    %v3533 = vadd.f32 %v3145, %v3532
    %v3534 = vpop.f32.mrf.mxu0
    %3535 = vmatprep.mubr.bf16.mxu0 0
    %3536 = vmatmul.mubr.bf16.gmra.mxu0 %v3253
    %v3537 = vpop.f32.mrf.mxu0
    %v3538 = vadd.f32 %v3145, %v3537
    %v3539 = vpop.f32.mrf.mxu0
    %v3540 = vpop.f32.mrf.mxu0
    %v3541 = vadd.f32 %v3145, %v3540
    %v3542 = vpop.f32.mrf.mxu0
    %3543 = vdwg.mxu0
    %v3544 = vld [vmem:[#allocation6 + $0x10] sm:$0xf]
    %v3545 = vld [vmem:[#allocation6 + $0x2c] sm:$0xf]
    %v3546 = vld [vmem:[#allocation6 + $0x48] sm:$0xf]
    %v3547 = vld [vmem:[#allocation6 + $0x64] sm:$0xf]
    %v3548 = vld [vmem:[#allocation7 + $0x4] sm:$0x1]
    %v3550 = vlaneseq
    %v3551 = vshrl.u32 %v3550, 7
    %v3552 = vsub.s32 0, %v3551
    %v3553 = vrot.slane %v3548, %v3552
    %v3559 = vunpack.c.l.b16 %v3544
    %v3560 = vunpack.c.l.b16 %v3545
    %v3561 = vunpack.c.l.b16 %v3546
    %v3562 = vunpack.c.l.b16 %v3547
    %v3563 = vpack.c.b16 %v3560, %v3559
    %v3564 = vpack.c.b16 %v3562, %v3561
    %v3568 = vsel %vm286, %v231, 0
    %v3571 = vsel %vm286, %v232, 0
    %v3574 = vsel %vm286, %v233, 0
    %v3577 = vsel %vm286, %v234, 0
    %v3580 = vsel %vm286, %v235, 0
    %v3583 = vsel %vm286, %v236, 0
    %v3586 = vsel %vm286, %v237, 0
    %v3589 = vsel %vm286, %v238, 0
    %v3592 = vsel %vm286, %v239, 0
    %v3595 = vsel %vm286, %v240, 0
    %v3598 = vsel %vm286, %v241, 0
    %v3601 = vsel %vm286, %v242, 0
    %v3604 = vsel %vm286, %v243, 0
    %v3607 = vsel %vm286, %v244, 0
    %v3610 = vsel %vm286, %v245, 0
    %v3613 = vsel %vm286, %v246, 0
    %v3616 = vsel %vm286, %v247, 0
    %v3619 = vsel %vm286, %v248, 0
    %v3622 = vsel %vm286, %v249, 0
    %v3625 = vsel %vm286, %v250, 0
    %v3628 = vsel %vm286, %v251, 0
    %v3631 = vsel %vm286, %v252, 0
    %v3634 = vsel %vm286, %v253, 0
    %v3637 = vsel %vm286, %v254, 0
    %v3640 = vsel %vm286, %v255, 0
    %v3643 = vsel %vm286, %v256, 0
    %v3646 = vsel %vm286, %v257, 0
    %v3649 = vsel %vm286, %v258, 0
    %v3652 = vsel %vm286, %v259, 0
    %v3655 = vsel %vm286, %v260, 0
    %v3658 = vsel %vm286, %v261, 0
    %v3661 = vsel %vm286, %v262, 0
    %3663 = vmatprep.subr.bf16.mxu0 0
    %3664 = vmatpush1.bf16.msra.mxu0 0
    %3665 = vmatprep.subr.bf16.mxu0 0
    %3666 = vmatpush1.bf16.msra.mxu0 0
    %3667 = vmatprep.subr.bf16.mxu0 0
    %3668 = vmatpush1.bf16.msra.mxu0 0
    %3669 = vmatprep.subr.bf16.mxu0 0
    %3670 = vmatpush1.bf16.msra.mxu0 0
    %3671 = vmatprep.subr.bf16.mxu0 0
    %3672 = vmatpush1.bf16.msra.mxu0 0
    %3673 = vmatprep.subr.bf16.mxu0 0
    %3674 = vmatpush1.bf16.msra.mxu0 0
    %3675 = vmatprep.subr.bf16.mxu0 0
    %3676 = vmatpush1.bf16.msra.mxu0 %v3564
    %3677 = vmatprep.subr.bf16.mxu0 0
    %3678 = vmatpush1.bf16.msra.mxu0 %v3563
    %3679 = vmatprep.subr.bf16.mxu0 0
    %3680 = vmatpush2.bf16.msra.mxu0 0
    %3681 = vmatprep.subr.bf16.mxu0 0
    %3682 = vmatpush2.bf16.msra.mxu0 0
    %3683 = vmatprep.subr.bf16.mxu0 0
    %3684 = vmatpush2.bf16.msra.mxu0 0
    %3685 = vmatprep.subr.bf16.mxu0 0
    %3686 = vmatpush2.bf16.msra.mxu0 0
    %3687 = vmatprep.subr.bf16.mxu0 0
    %3688 = vmatpush2.bf16.msra.mxu0 0
    %3689 = vmatprep.subr.bf16.mxu0 0
    %3690 = vmatpush2.bf16.msra.mxu0 0
    %3691 = vmatprep.subr.bf16.mxu0 0
    %3692 = vmatpush2.bf16.msra.mxu0 0
    %3693 = vmatprep.subr.bf16.mxu0 0
    %3694 = vmatpush2.bf16.msra.mxu0 0
    %3695 = vmatprep.mubr.bf16.mxu0 0
    %3696 = vmatmul.mubr.bf16.gmra.mxu0 %v3568
    %v3697 = vpop.f32.mrf.mxu0
    %v3698 = vadd.f32 %v3553, %v3697
    %v3699 = vpop.f32.mrf.mxu0
    %v3700 = vpop.f32.mrf.mxu0
    %v3701 = vadd.f32 %v3553, %v3700
    %v3702 = vpop.f32.mrf.mxu0
    %3703 = vmatprep.mubr.bf16.mxu0 0
    %3704 = vmatmul.mubr.bf16.gmra.mxu0 %v3571
    %v3705 = vpop.f32.mrf.mxu0
    %v3706 = vadd.f32 %v3553, %v3705
    %v3707 = vpop.f32.mrf.mxu0
    %v3708 = vpop.f32.mrf.mxu0
    %v3709 = vadd.f32 %v3553, %v3708
    %v3710 = vpop.f32.mrf.mxu0
    %3711 = vmatprep.mubr.bf16.mxu0 0
    %3712 = vmatmul.mubr.bf16.gmra.mxu0 %v3574
    %v3713 = vpop.f32.mrf.mxu0
    %v3714 = vadd.f32 %v3553, %v3713
    %v3715 = vpop.f32.mrf.mxu0
    %v3716 = vpop.f32.mrf.mxu0
    %v3717 = vadd.f32 %v3553, %v3716
    %v3718 = vpop.f32.mrf.mxu0
    %3719 = vmatprep.mubr.bf16.mxu0 0
    %3720 = vmatmul.mubr.bf16.gmra.mxu0 %v3577
    %v3721 = vpop.f32.mrf.mxu0
    %v3722 = vadd.f32 %v3553, %v3721
    %v3723 = vpop.f32.mrf.mxu0
    %v3724 = vpop.f32.mrf.mxu0
    %v3725 = vadd.f32 %v3553, %v3724
    %v3726 = vpop.f32.mrf.mxu0
    %3727 = vmatprep.mubr.bf16.mxu0 0
    %3728 = vmatmul.mubr.bf16.gmra.mxu0 %v3580
    %v3729 = vpop.f32.mrf.mxu0
    %v3730 = vadd.f32 %v3553, %v3729
    %v3731 = vpop.f32.mrf.mxu0
    %v3732 = vpop.f32.mrf.mxu0
    %v3733 = vadd.f32 %v3553, %v3732
    %v3734 = vpop.f32.mrf.mxu0
    %3735 = vmatprep.mubr.bf16.mxu0 0
    %3736 = vmatmul.mubr.bf16.gmra.mxu0 %v3583
    %v3737 = vpop.f32.mrf.mxu0
    %v3738 = vadd.f32 %v3553, %v3737
    %v3739 = vpop.f32.mrf.mxu0
    %v3740 = vpop.f32.mrf.mxu0
    %v3741 = vadd.f32 %v3553, %v3740
    %v3742 = vpop.f32.mrf.mxu0
    %3743 = vmatprep.mubr.bf16.mxu0 0
    %3744 = vmatmul.mubr.bf16.gmra.mxu0 %v3586
    %v3745 = vpop.f32.mrf.mxu0
    %v3746 = vadd.f32 %v3553, %v3745
    %v3747 = vpop.f32.mrf.mxu0
    %v3748 = vpop.f32.mrf.mxu0
    %v3749 = vadd.f32 %v3553, %v3748
    %v3750 = vpop.f32.mrf.mxu0
    %3751 = vmatprep.mubr.bf16.mxu0 0
    %3752 = vmatmul.mubr.bf16.gmra.mxu0 %v3589
    %v3753 = vpop.f32.mrf.mxu0
    %v3754 = vadd.f32 %v3553, %v3753
    %v3755 = vpop.f32.mrf.mxu0
    %v3756 = vpop.f32.mrf.mxu0
    %v3757 = vadd.f32 %v3553, %v3756
    %v3758 = vpop.f32.mrf.mxu0
    %3759 = vmatprep.mubr.bf16.mxu0 0
    %3760 = vmatmul.mubr.bf16.gmra.mxu0 %v3592
    %v3761 = vpop.f32.mrf.mxu0
    %v3762 = vadd.f32 %v3553, %v3761
    %v3763 = vpop.f32.mrf.mxu0
    %v3764 = vpop.f32.mrf.mxu0
    %v3765 = vadd.f32 %v3553, %v3764
    %v3766 = vpop.f32.mrf.mxu0
    %3767 = vmatprep.mubr.bf16.mxu0 0
    %3768 = vmatmul.mubr.bf16.gmra.mxu0 %v3595
    %v3769 = vpop.f32.mrf.mxu0
    %v3770 = vadd.f32 %v3553, %v3769
    %v3771 = vpop.f32.mrf.mxu0
    %v3772 = vpop.f32.mrf.mxu0
    %v3773 = vadd.f32 %v3553, %v3772
    %v3774 = vpop.f32.mrf.mxu0
    %3775 = vmatprep.mubr.bf16.mxu0 0
    %3776 = vmatmul.mubr.bf16.gmra.mxu0 %v3598
    %v3777 = vpop.f32.mrf.mxu0
    %v3778 = vadd.f32 %v3553, %v3777
    %v3779 = vpop.f32.mrf.mxu0
    %v3780 = vpop.f32.mrf.mxu0
    %v3781 = vadd.f32 %v3553, %v3780
    %v3782 = vpop.f32.mrf.mxu0
    %3783 = vmatprep.mubr.bf16.mxu0 0
    %3784 = vmatmul.mubr.bf16.gmra.mxu0 %v3601
    %v3785 = vpop.f32.mrf.mxu0
    %v3786 = vadd.f32 %v3553, %v3785
    %v3787 = vpop.f32.mrf.mxu0
    %v3788 = vpop.f32.mrf.mxu0
    %v3789 = vadd.f32 %v3553, %v3788
    %v3790 = vpop.f32.mrf.mxu0
    %3791 = vmatprep.mubr.bf16.mxu0 0
    %3792 = vmatmul.mubr.bf16.gmra.mxu0 %v3604
    %v3793 = vpop.f32.mrf.mxu0
    %v3794 = vadd.f32 %v3553, %v3793
    %v3795 = vpop.f32.mrf.mxu0
    %v3796 = vpop.f32.mrf.mxu0
    %v3797 = vadd.f32 %v3553, %v3796
    %v3798 = vpop.f32.mrf.mxu0
    %3799 = vmatprep.mubr.bf16.mxu0 0
    %3800 = vmatmul.mubr.bf16.gmra.mxu0 %v3607
    %v3801 = vpop.f32.mrf.mxu0
    %v3802 = vadd.f32 %v3553, %v3801
    %v3803 = vpop.f32.mrf.mxu0
    %v3804 = vpop.f32.mrf.mxu0
    %v3805 = vadd.f32 %v3553, %v3804
    %v3806 = vpop.f32.mrf.mxu0
    %3807 = vmatprep.mubr.bf16.mxu0 0
    %3808 = vmatmul.mubr.bf16.gmra.mxu0 %v3610
    %v3809 = vpop.f32.mrf.mxu0
    %v3810 = vadd.f32 %v3553, %v3809
    %v3811 = vpop.f32.mrf.mxu0
    %v3812 = vpop.f32.mrf.mxu0
    %v3813 = vadd.f32 %v3553, %v3812
    %v3814 = vpop.f32.mrf.mxu0
    %3815 = vmatprep.mubr.bf16.mxu0 0
    %3816 = vmatmul.mubr.bf16.gmra.mxu0 %v3613
    %v3817 = vpop.f32.mrf.mxu0
    %v3818 = vadd.f32 %v3553, %v3817
    %v3819 = vpop.f32.mrf.mxu0
    %v3820 = vpop.f32.mrf.mxu0
    %v3821 = vadd.f32 %v3553, %v3820
    %v3822 = vpop.f32.mrf.mxu0
    %3823 = vmatprep.mubr.bf16.mxu0 0
    %3824 = vmatmul.mubr.bf16.gmra.mxu0 %v3616
    %v3825 = vpop.f32.mrf.mxu0
    %v3826 = vadd.f32 %v3553, %v3825
    %v3827 = vpop.f32.mrf.mxu0
    %v3828 = vpop.f32.mrf.mxu0
    %v3829 = vadd.f32 %v3553, %v3828
    %v3830 = vpop.f32.mrf.mxu0
    %3831 = vmatprep.mubr.bf16.mxu0 0
    %3832 = vmatmul.mubr.bf16.gmra.mxu0 %v3619
    %v3833 = vpop.f32.mrf.mxu0
    %v3834 = vadd.f32 %v3553, %v3833
    %v3835 = vpop.f32.mrf.mxu0
    %v3836 = vpop.f32.mrf.mxu0
    %v3837 = vadd.f32 %v3553, %v3836
    %v3838 = vpop.f32.mrf.mxu0
    %3839 = vmatprep.mubr.bf16.mxu0 0
    %3840 = vmatmul.mubr.bf16.gmra.mxu0 %v3622
    %v3841 = vpop.f32.mrf.mxu0
    %v3842 = vadd.f32 %v3553, %v3841
    %v3843 = vpop.f32.mrf.mxu0
    %v3844 = vpop.f32.mrf.mxu0
    %v3845 = vadd.f32 %v3553, %v3844
    %v3846 = vpop.f32.mrf.mxu0
    %3847 = vmatprep.mubr.bf16.mxu0 0
    %3848 = vmatmul.mubr.bf16.gmra.mxu0 %v3625
    %v3849 = vpop.f32.mrf.mxu0
    %v3850 = vadd.f32 %v3553, %v3849
    %v3851 = vpop.f32.mrf.mxu0
    %v3852 = vpop.f32.mrf.mxu0
    %v3853 = vadd.f32 %v3553, %v3852
    %v3854 = vpop.f32.mrf.mxu0
    %3855 = vmatprep.mubr.bf16.mxu0 0
    %3856 = vmatmul.mubr.bf16.gmra.mxu0 %v3628
    %v3857 = vpop.f32.mrf.mxu0
    %v3858 = vadd.f32 %v3553, %v3857
    %v3859 = vpop.f32.mrf.mxu0
    %v3860 = vpop.f32.mrf.mxu0
    %v3861 = vadd.f32 %v3553, %v3860
    %v3862 = vpop.f32.mrf.mxu0
    %3863 = vmatprep.mubr.bf16.mxu0 0
    %3864 = vmatmul.mubr.bf16.gmra.mxu0 %v3631
    %v3865 = vpop.f32.mrf.mxu0
    %v3866 = vadd.f32 %v3553, %v3865
    %v3867 = vpop.f32.mrf.mxu0
    %v3868 = vpop.f32.mrf.mxu0
    %v3869 = vadd.f32 %v3553, %v3868
    %v3870 = vpop.f32.mrf.mxu0
    %3871 = vmatprep.mubr.bf16.mxu0 0
    %3872 = vmatmul.mubr.bf16.gmra.mxu0 %v3634
    %v3873 = vpop.f32.mrf.mxu0
    %v3874 = vadd.f32 %v3553, %v3873
    %v3875 = vpop.f32.mrf.mxu0
    %v3876 = vpop.f32.mrf.mxu0
    %v3877 = vadd.f32 %v3553, %v3876
    %v3878 = vpop.f32.mrf.mxu0
    %3879 = vmatprep.mubr.bf16.mxu0 0
    %3880 = vmatmul.mubr.bf16.gmra.mxu0 %v3637
    %v3881 = vpop.f32.mrf.mxu0
    %v3882 = vadd.f32 %v3553, %v3881
    %v3883 = vpop.f32.mrf.mxu0
    %v3884 = vpop.f32.mrf.mxu0
    %v3885 = vadd.f32 %v3553, %v3884
    %v3886 = vpop.f32.mrf.mxu0
    %3887 = vmatprep.mubr.bf16.mxu0 0
    %3888 = vmatmul.mubr.bf16.gmra.mxu0 %v3640
    %v3889 = vpop.f32.mrf.mxu0
    %v3890 = vadd.f32 %v3553, %v3889
    %v3891 = vpop.f32.mrf.mxu0
    %v3892 = vpop.f32.mrf.mxu0
    %v3893 = vadd.f32 %v3553, %v3892
    %v3894 = vpop.f32.mrf.mxu0
    %3895 = vmatprep.mubr.bf16.mxu0 0
    %3896 = vmatmul.mubr.bf16.gmra.mxu0 %v3643
    %v3897 = vpop.f32.mrf.mxu0
    %v3898 = vadd.f32 %v3553, %v3897
    %v3899 = vpop.f32.mrf.mxu0
    %v3900 = vpop.f32.mrf.mxu0
    %v3901 = vadd.f32 %v3553, %v3900
    %v3902 = vpop.f32.mrf.mxu0
    %3903 = vmatprep.mubr.bf16.mxu0 0
    %3904 = vmatmul.mubr.bf16.gmra.mxu0 %v3646
    %v3905 = vpop.f32.mrf.mxu0
    %v3906 = vadd.f32 %v3553, %v3905
    %v3907 = vpop.f32.mrf.mxu0
    %v3908 = vpop.f32.mrf.mxu0
    %v3909 = vadd.f32 %v3553, %v3908
    %v3910 = vpop.f32.mrf.mxu0
    %3911 = vmatprep.mubr.bf16.mxu0 0
    %3912 = vmatmul.mubr.bf16.gmra.mxu0 %v3649
    %v3913 = vpop.f32.mrf.mxu0
    %v3914 = vadd.f32 %v3553, %v3913
    %v3915 = vpop.f32.mrf.mxu0
    %v3916 = vpop.f32.mrf.mxu0
    %v3917 = vadd.f32 %v3553, %v3916
    %v3918 = vpop.f32.mrf.mxu0
    %3919 = vmatprep.mubr.bf16.mxu0 0
    %3920 = vmatmul.mubr.bf16.gmra.mxu0 %v3652
    %v3921 = vpop.f32.mrf.mxu0
    %v3922 = vadd.f32 %v3553, %v3921
    %v3923 = vpop.f32.mrf.mxu0
    %v3924 = vpop.f32.mrf.mxu0
    %v3925 = vadd.f32 %v3553, %v3924
    %v3926 = vpop.f32.mrf.mxu0
    %3927 = vmatprep.mubr.bf16.mxu0 0
    %3928 = vmatmul.mubr.bf16.gmra.mxu0 %v3655
    %v3929 = vpop.f32.mrf.mxu0
    %v3930 = vadd.f32 %v3553, %v3929
    %v3931 = vpop.f32.mrf.mxu0
    %v3932 = vpop.f32.mrf.mxu0
    %v3933 = vadd.f32 %v3553, %v3932
    %v3934 = vpop.f32.mrf.mxu0
    %3935 = vmatprep.mubr.bf16.mxu0 0
    %3936 = vmatmul.mubr.bf16.gmra.mxu0 %v3658
    %v3937 = vpop.f32.mrf.mxu0
    %v3938 = vadd.f32 %v3553, %v3937
    %v3939 = vpop.f32.mrf.mxu0
    %v3940 = vpop.f32.mrf.mxu0
    %v3941 = vadd.f32 %v3553, %v3940
    %v3942 = vpop.f32.mrf.mxu0
    %3943 = vmatprep.mubr.bf16.mxu0 0
    %3944 = vmatmul.mubr.bf16.gmra.mxu0 %v3661
    %v3945 = vpop.f32.mrf.mxu0
    %v3946 = vadd.f32 %v3553, %v3945
    %v3947 = vpop.f32.mrf.mxu0
    %v3948 = vpop.f32.mrf.mxu0
    %v3949 = vadd.f32 %v3553, %v3948
    %v3950 = vpop.f32.mrf.mxu0
    %3951 = vdwg.mxu0
    %v3952 = vld [vmem:[#allocation6 + $0x14] sm:$0xf]
    %v3953 = vld [vmem:[#allocation6 + $0x30] sm:$0xf]
    %v3954 = vld [vmem:[#allocation6 + $0x4c] sm:$0xf]
    %v3955 = vld [vmem:[#allocation6 + $0x68] sm:$0xf]
    %v3956 = vld [vmem:[#allocation7 + $0x5] sm:$0x1]
    %v3958 = vlaneseq
    %v3959 = vshrl.u32 %v3958, 7
    %v3960 = vsub.s32 0, %v3959
    %v3961 = vrot.slane %v3956, %v3960
    %v3967 = vunpack.c.l.b16 %v3952
    %v3968 = vunpack.c.l.b16 %v3953
    %v3969 = vunpack.c.l.b16 %v3954
    %v3970 = vunpack.c.l.b16 %v3955
    %v3971 = vpack.c.b16 %v3968, %v3967
    %v3972 = vpack.c.b16 %v3970, %v3969
    %3975 = vmatprep.subr.bf16.mxu0 0
    %3976 = vmatpush1.bf16.msra.mxu0 0
    %3977 = vmatprep.subr.bf16.mxu0 0
    %3978 = vmatpush1.bf16.msra.mxu0 0
    %3979 = vmatprep.subr.bf16.mxu0 0
    %3980 = vmatpush1.bf16.msra.mxu0 0
    %3981 = vmatprep.subr.bf16.mxu0 0
    %3982 = vmatpush1.bf16.msra.mxu0 0
    %3983 = vmatprep.subr.bf16.mxu0 0
    %3984 = vmatpush1.bf16.msra.mxu0 0
    %3985 = vmatprep.subr.bf16.mxu0 0
    %3986 = vmatpush1.bf16.msra.mxu0 0
    %3987 = vmatprep.subr.bf16.mxu0 0
    %3988 = vmatpush1.bf16.msra.mxu0 %v3972
    %3989 = vmatprep.subr.bf16.mxu0 0
    %3990 = vmatpush1.bf16.msra.mxu0 %v3971
    %3991 = vmatprep.subr.bf16.mxu0 0
    %3992 = vmatpush2.bf16.msra.mxu0 0
    %3993 = vmatprep.subr.bf16.mxu0 0
    %3994 = vmatpush2.bf16.msra.mxu0 0
    %3995 = vmatprep.subr.bf16.mxu0 0
    %3996 = vmatpush2.bf16.msra.mxu0 0
    %3997 = vmatprep.subr.bf16.mxu0 0
    %3998 = vmatpush2.bf16.msra.mxu0 0
    %3999 = vmatprep.subr.bf16.mxu0 0
    %4000 = vmatpush2.bf16.msra.mxu0 0
    %4001 = vmatprep.subr.bf16.mxu0 0
    %4002 = vmatpush2.bf16.msra.mxu0 0
    %4003 = vmatprep.subr.bf16.mxu0 0
    %4004 = vmatpush2.bf16.msra.mxu0 0
    %4005 = vmatprep.subr.bf16.mxu0 0
    %4006 = vmatpush2.bf16.msra.mxu0 0
    %4007 = vmatprep.mubr.bf16.mxu0 0
    %4008 = vmatmul.mubr.bf16.gmra.mxu0 %v3568
    %v4009 = vpop.f32.mrf.mxu0
    %v4010 = vadd.f32 %v3961, %v4009
    %v4011 = vpop.f32.mrf.mxu0
    %v4012 = vpop.f32.mrf.mxu0
    %v4013 = vadd.f32 %v3961, %v4012
    %v4014 = vpop.f32.mrf.mxu0
    %4015 = vmatprep.mubr.bf16.mxu0 0
    %4016 = vmatmul.mubr.bf16.gmra.mxu0 %v3571
    %v4017 = vpop.f32.mrf.mxu0
    %v4018 = vadd.f32 %v3961, %v4017
    %v4019 = vpop.f32.mrf.mxu0
    %v4020 = vpop.f32.mrf.mxu0
    %v4021 = vadd.f32 %v3961, %v4020
    %v4022 = vpop.f32.mrf.mxu0
    %4023 = vmatprep.mubr.bf16.mxu0 0
    %4024 = vmatmul.mubr.bf16.gmra.mxu0 %v3574
    %v4025 = vpop.f32.mrf.mxu0
    %v4026 = vadd.f32 %v3961, %v4025
    %v4027 = vpop.f32.mrf.mxu0
    %v4028 = vpop.f32.mrf.mxu0
    %v4029 = vadd.f32 %v3961, %v4028
    %v4030 = vpop.f32.mrf.mxu0
    %4031 = vmatprep.mubr.bf16.mxu0 0
    %4032 = vmatmul.mubr.bf16.gmra.mxu0 %v3577
    %v4033 = vpop.f32.mrf.mxu0
    %v4034 = vadd.f32 %v3961, %v4033
    %v4035 = vpop.f32.mrf.mxu0
    %v4036 = vpop.f32.mrf.mxu0
    %v4037 = vadd.f32 %v3961, %v4036
    %v4038 = vpop.f32.mrf.mxu0
    %4039 = vmatprep.mubr.bf16.mxu0 0
    %4040 = vmatmul.mubr.bf16.gmra.mxu0 %v3580
    %v4041 = vpop.f32.mrf.mxu0
    %v4042 = vadd.f32 %v3961, %v4041
    %v4043 = vpop.f32.mrf.mxu0
    %v4044 = vpop.f32.mrf.mxu0
    %v4045 = vadd.f32 %v3961, %v4044
    %v4046 = vpop.f32.mrf.mxu0
    %4047 = vmatprep.mubr.bf16.mxu0 0
    %4048 = vmatmul.mubr.bf16.gmra.mxu0 %v3583
    %v4049 = vpop.f32.mrf.mxu0
    %v4050 = vadd.f32 %v3961, %v4049
    %v4051 = vpop.f32.mrf.mxu0
    %v4052 = vpop.f32.mrf.mxu0
    %v4053 = vadd.f32 %v3961, %v4052
    %v4054 = vpop.f32.mrf.mxu0
    %4055 = vmatprep.mubr.bf16.mxu0 0
    %4056 = vmatmul.mubr.bf16.gmra.mxu0 %v3586
    %v4057 = vpop.f32.mrf.mxu0
    %v4058 = vadd.f32 %v3961, %v4057
    %v4059 = vpop.f32.mrf.mxu0
    %v4060 = vpop.f32.mrf.mxu0
    %v4061 = vadd.f32 %v3961, %v4060
    %v4062 = vpop.f32.mrf.mxu0
    %4063 = vmatprep.mubr.bf16.mxu0 0
    %4064 = vmatmul.mubr.bf16.gmra.mxu0 %v3589
    %v4065 = vpop.f32.mrf.mxu0
    %v4066 = vadd.f32 %v3961, %v4065
    %v4067 = vpop.f32.mrf.mxu0
    %v4068 = vpop.f32.mrf.mxu0
    %v4069 = vadd.f32 %v3961, %v4068
    %v4070 = vpop.f32.mrf.mxu0
    %4071 = vmatprep.mubr.bf16.mxu0 0
    %4072 = vmatmul.mubr.bf16.gmra.mxu0 %v3592
    %v4073 = vpop.f32.mrf.mxu0
    %v4074 = vadd.f32 %v3961, %v4073
    %v4075 = vpop.f32.mrf.mxu0
    %v4076 = vpop.f32.mrf.mxu0
    %v4077 = vadd.f32 %v3961, %v4076
    %v4078 = vpop.f32.mrf.mxu0
    %4079 = vmatprep.mubr.bf16.mxu0 0
    %4080 = vmatmul.mubr.bf16.gmra.mxu0 %v3595
    %v4081 = vpop.f32.mrf.mxu0
    %v4082 = vadd.f32 %v3961, %v4081
    %v4083 = vpop.f32.mrf.mxu0
    %v4084 = vpop.f32.mrf.mxu0
    %v4085 = vadd.f32 %v3961, %v4084
    %v4086 = vpop.f32.mrf.mxu0
    %4087 = vmatprep.mubr.bf16.mxu0 0
    %4088 = vmatmul.mubr.bf16.gmra.mxu0 %v3598
    %v4089 = vpop.f32.mrf.mxu0
    %v4090 = vadd.f32 %v3961, %v4089
    %v4091 = vpop.f32.mrf.mxu0
    %v4092 = vpop.f32.mrf.mxu0
    %v4093 = vadd.f32 %v3961, %v4092
    %v4094 = vpop.f32.mrf.mxu0
    %4095 = vmatprep.mubr.bf16.mxu0 0
    %4096 = vmatmul.mubr.bf16.gmra.mxu0 %v3601
    %v4097 = vpop.f32.mrf.mxu0
    %v4098 = vadd.f32 %v3961, %v4097
    %v4099 = vpop.f32.mrf.mxu0
    %v4100 = vpop.f32.mrf.mxu0
    %v4101 = vadd.f32 %v3961, %v4100
    %v4102 = vpop.f32.mrf.mxu0
    %4103 = vmatprep.mubr.bf16.mxu0 0
    %4104 = vmatmul.mubr.bf16.gmra.mxu0 %v3604
    %v4105 = vpop.f32.mrf.mxu0
    %v4106 = vadd.f32 %v3961, %v4105
    %v4107 = vpop.f32.mrf.mxu0
    %v4108 = vpop.f32.mrf.mxu0
    %v4109 = vadd.f32 %v3961, %v4108
    %v4110 = vpop.f32.mrf.mxu0
    %4111 = vmatprep.mubr.bf16.mxu0 0
    %4112 = vmatmul.mubr.bf16.gmra.mxu0 %v3607
    %v4113 = vpop.f32.mrf.mxu0
    %v4114 = vadd.f32 %v3961, %v4113
    %v4115 = vpop.f32.mrf.mxu0
    %v4116 = vpop.f32.mrf.mxu0
    %v4117 = vadd.f32 %v3961, %v4116
    %v4118 = vpop.f32.mrf.mxu0
    %4119 = vmatprep.mubr.bf16.mxu0 0
    %4120 = vmatmul.mubr.bf16.gmra.mxu0 %v3610
    %v4121 = vpop.f32.mrf.mxu0
    %v4122 = vadd.f32 %v3961, %v4121
    %v4123 = vpop.f32.mrf.mxu0
    %v4124 = vpop.f32.mrf.mxu0
    %v4125 = vadd.f32 %v3961, %v4124
    %v4126 = vpop.f32.mrf.mxu0
    %4127 = vmatprep.mubr.bf16.mxu0 0
    %4128 = vmatmul.mubr.bf16.gmra.mxu0 %v3613
    %v4129 = vpop.f32.mrf.mxu0
    %v4130 = vadd.f32 %v3961, %v4129
    %v4131 = vpop.f32.mrf.mxu0
    %v4132 = vpop.f32.mrf.mxu0
    %v4133 = vadd.f32 %v3961, %v4132
    %v4134 = vpop.f32.mrf.mxu0
    %4135 = vmatprep.mubr.bf16.mxu0 0
    %4136 = vmatmul.mubr.bf16.gmra.mxu0 %v3616
    %v4137 = vpop.f32.mrf.mxu0
    %v4138 = vadd.f32 %v3961, %v4137
    %v4139 = vpop.f32.mrf.mxu0
    %v4140 = vpop.f32.mrf.mxu0
    %v4141 = vadd.f32 %v3961, %v4140
    %v4142 = vpop.f32.mrf.mxu0
    %4143 = vmatprep.mubr.bf16.mxu0 0
    %4144 = vmatmul.mubr.bf16.gmra.mxu0 %v3619
    %v4145 = vpop.f32.mrf.mxu0
    %v4146 = vadd.f32 %v3961, %v4145
    %v4147 = vpop.f32.mrf.mxu0
    %v4148 = vpop.f32.mrf.mxu0
    %v4149 = vadd.f32 %v3961, %v4148
    %v4150 = vpop.f32.mrf.mxu0
    %4151 = vmatprep.mubr.bf16.mxu0 0
    %4152 = vmatmul.mubr.bf16.gmra.mxu0 %v3622
    %v4153 = vpop.f32.mrf.mxu0
    %v4154 = vadd.f32 %v3961, %v4153
    %v4155 = vpop.f32.mrf.mxu0
    %v4156 = vpop.f32.mrf.mxu0
    %v4157 = vadd.f32 %v3961, %v4156
    %v4158 = vpop.f32.mrf.mxu0
    %4159 = vmatprep.mubr.bf16.mxu0 0
    %4160 = vmatmul.mubr.bf16.gmra.mxu0 %v3625
    %v4161 = vpop.f32.mrf.mxu0
    %v4162 = vadd.f32 %v3961, %v4161
    %v4163 = vpop.f32.mrf.mxu0
    %v4164 = vpop.f32.mrf.mxu0
    %v4165 = vadd.f32 %v3961, %v4164
    %v4166 = vpop.f32.mrf.mxu0
    %4167 = vmatprep.mubr.bf16.mxu0 0
    %4168 = vmatmul.mubr.bf16.gmra.mxu0 %v3628
    %v4169 = vpop.f32.mrf.mxu0
    %v4170 = vadd.f32 %v3961, %v4169
    %v4171 = vpop.f32.mrf.mxu0
    %v4172 = vpop.f32.mrf.mxu0
    %v4173 = vadd.f32 %v3961, %v4172
    %v4174 = vpop.f32.mrf.mxu0
    %4175 = vmatprep.mubr.bf16.mxu0 0
    %4176 = vmatmul.mubr.bf16.gmra.mxu0 %v3631
    %v4177 = vpop.f32.mrf.mxu0
    %v4178 = vadd.f32 %v3961, %v4177
    %v4179 = vpop.f32.mrf.mxu0
    %v4180 = vpop.f32.mrf.mxu0
    %v4181 = vadd.f32 %v3961, %v4180
    %v4182 = vpop.f32.mrf.mxu0
    %4183 = vmatprep.mubr.bf16.mxu0 0
    %4184 = vmatmul.mubr.bf16.gmra.mxu0 %v3634
    %v4185 = vpop.f32.mrf.mxu0
    %v4186 = vadd.f32 %v3961, %v4185
    %v4187 = vpop.f32.mrf.mxu0
    %v4188 = vpop.f32.mrf.mxu0
    %v4189 = vadd.f32 %v3961, %v4188
    %v4190 = vpop.f32.mrf.mxu0
    %4191 = vmatprep.mubr.bf16.mxu0 0
    %4192 = vmatmul.mubr.bf16.gmra.mxu0 %v3637
    %v4193 = vpop.f32.mrf.mxu0
    %v4194 = vadd.f32 %v3961, %v4193
    %v4195 = vpop.f32.mrf.mxu0
    %v4196 = vpop.f32.mrf.mxu0
    %v4197 = vadd.f32 %v3961, %v4196
    %v4198 = vpop.f32.mrf.mxu0
    %4199 = vmatprep.mubr.bf16.mxu0 0
    %4200 = vmatmul.mubr.bf16.gmra.mxu0 %v3640
    %v4201 = vpop.f32.mrf.mxu0
    %v4202 = vadd.f32 %v3961, %v4201
    %v4203 = vpop.f32.mrf.mxu0
    %v4204 = vpop.f32.mrf.mxu0
    %v4205 = vadd.f32 %v3961, %v4204
    %v4206 = vpop.f32.mrf.mxu0
    %4207 = vmatprep.mubr.bf16.mxu0 0
    %4208 = vmatmul.mubr.bf16.gmra.mxu0 %v3643
    %v4209 = vpop.f32.mrf.mxu0
    %v4210 = vadd.f32 %v3961, %v4209
    %v4211 = vpop.f32.mrf.mxu0
    %v4212 = vpop.f32.mrf.mxu0
    %v4213 = vadd.f32 %v3961, %v4212
    %v4214 = vpop.f32.mrf.mxu0
    %4215 = vmatprep.mubr.bf16.mxu0 0
    %4216 = vmatmul.mubr.bf16.gmra.mxu0 %v3646
    %v4217 = vpop.f32.mrf.mxu0
    %v4218 = vadd.f32 %v3961, %v4217
    %v4219 = vpop.f32.mrf.mxu0
    %v4220 = vpop.f32.mrf.mxu0
    %v4221 = vadd.f32 %v3961, %v4220
    %v4222 = vpop.f32.mrf.mxu0
    %4223 = vmatprep.mubr.bf16.mxu0 0
    %4224 = vmatmul.mubr.bf16.gmra.mxu0 %v3649
    %v4225 = vpop.f32.mrf.mxu0
    %v4226 = vadd.f32 %v3961, %v4225
    %v4227 = vpop.f32.mrf.mxu0
    %v4228 = vpop.f32.mrf.mxu0
    %v4229 = vadd.f32 %v3961, %v4228
    %v4230 = vpop.f32.mrf.mxu0
    %4231 = vmatprep.mubr.bf16.mxu0 0
    %4232 = vmatmul.mubr.bf16.gmra.mxu0 %v3652
    %v4233 = vpop.f32.mrf.mxu0
    %v4234 = vadd.f32 %v3961, %v4233
    %v4235 = vpop.f32.mrf.mxu0
    %v4236 = vpop.f32.mrf.mxu0
    %v4237 = vadd.f32 %v3961, %v4236
    %v4238 = vpop.f32.mrf.mxu0
    %4239 = vmatprep.mubr.bf16.mxu0 0
    %4240 = vmatmul.mubr.bf16.gmra.mxu0 %v3655
    %v4241 = vpop.f32.mrf.mxu0
    %v4242 = vadd.f32 %v3961, %v4241
    %v4243 = vpop.f32.mrf.mxu0
    %v4244 = vpop.f32.mrf.mxu0
    %v4245 = vadd.f32 %v3961, %v4244
    %v4246 = vpop.f32.mrf.mxu0
    %4247 = vmatprep.mubr.bf16.mxu0 0
    %4248 = vmatmul.mubr.bf16.gmra.mxu0 %v3658
    %v4249 = vpop.f32.mrf.mxu0
    %v4250 = vadd.f32 %v3961, %v4249
    %v4251 = vpop.f32.mrf.mxu0
    %v4252 = vpop.f32.mrf.mxu0
    %v4253 = vadd.f32 %v3961, %v4252
    %v4254 = vpop.f32.mrf.mxu0
    %4255 = vmatprep.mubr.bf16.mxu0 0
    %4256 = vmatmul.mubr.bf16.gmra.mxu0 %v3661
    %v4257 = vpop.f32.mrf.mxu0
    %v4258 = vadd.f32 %v3961, %v4257
    %v4259 = vpop.f32.mrf.mxu0
    %v4260 = vpop.f32.mrf.mxu0
    %v4261 = vadd.f32 %v3961, %v4260
    %v4262 = vpop.f32.mrf.mxu0
    %4263 = vdwg.mxu0
    %v4264 = vpack.c.bf16 %v3293, %v3290
    %v4265 = vpack.c.bf16 %v3301, %v3298
    %v4266 = vpack.c.bf16 %v3309, %v3306
    %v4267 = vpack.c.bf16 %v3317, %v3314
    %v4268 = vpack.c.bf16 %v3325, %v3322
    %v4269 = vpack.c.bf16 %v3333, %v3330
    %v4270 = vpack.c.bf16 %v3341, %v3338
    %v4271 = vpack.c.bf16 %v3349, %v3346
    %v4272 = vpack.c.bf16 %v3357, %v3354
    %v4273 = vpack.c.bf16 %v3365, %v3362
    %v4274 = vpack.c.bf16 %v3373, %v3370
    %v4275 = vpack.c.bf16 %v3381, %v3378
    %v4276 = vpack.c.bf16 %v3389, %v3386
    %v4277 = vpack.c.bf16 %v3397, %v3394
    %v4278 = vpack.c.bf16 %v3405, %v3402
    %v4279 = vpack.c.bf16 %v3413, %v3410
    %v4280 = vpack.c.bf16 %v3421, %v3418
    %v4281 = vpack.c.bf16 %v3429, %v3426
    %v4282 = vpack.c.bf16 %v3437, %v3434
    %v4283 = vpack.c.bf16 %v3445, %v3442
    %v4284 = vpack.c.bf16 %v3453, %v3450
    %v4285 = vpack.c.bf16 %v3461, %v3458
    %v4286 = vpack.c.bf16 %v3469, %v3466
    %v4287 = vpack.c.bf16 %v3477, %v3474
    %v4288 = vpack.c.bf16 %v3485, %v3482
    %v4289 = vpack.c.bf16 %v3493, %v3490
    %v4290 = vpack.c.bf16 %v3501, %v3498
    %v4291 = vpack.c.bf16 %v3509, %v3506
    %v4292 = vpack.c.bf16 %v3517, %v3514
    %v4293 = vpack.c.bf16 %v3525, %v3522
    %v4294 = vpack.c.bf16 %v3533, %v3530
    %v4295 = vpack.c.bf16 %v3541, %v3538
    %v4296 = vpack.c.bf16 %v3701, %v3698
    %v4297 = vpack.c.bf16 %v3709, %v3706
    %v4298 = vpack.c.bf16 %v3717, %v3714
    %v4299 = vpack.c.bf16 %v3725, %v3722
    %v4300 = vpack.c.bf16 %v3733, %v3730
    %v4301 = vpack.c.bf16 %v3741, %v3738
    %v4302 = vpack.c.bf16 %v3749, %v3746
    %v4303 = vpack.c.bf16 %v3757, %v3754
    %v4304 = vpack.c.bf16 %v3765, %v3762
    %v4305 = vpack.c.bf16 %v3773, %v3770
    %v4306 = vpack.c.bf16 %v3781, %v3778
    %v4307 = vpack.c.bf16 %v3789, %v3786
    %v4308 = vpack.c.bf16 %v3797, %v3794
    %v4309 = vpack.c.bf16 %v3805, %v3802
    %v4310 = vpack.c.bf16 %v3813, %v3810
    %v4311 = vpack.c.bf16 %v3821, %v3818
    %v4312 = vpack.c.bf16 %v3829, %v3826
    %v4313 = vpack.c.bf16 %v3837, %v3834
    %v4314 = vpack.c.bf16 %v3845, %v3842
    %v4315 = vpack.c.bf16 %v3853, %v3850
    %v4316 = vpack.c.bf16 %v3861, %v3858
    %v4317 = vpack.c.bf16 %v3869, %v3866
    %v4318 = vpack.c.bf16 %v3877, %v3874
    %v4319 = vpack.c.bf16 %v3885, %v3882
    %v4320 = vpack.c.bf16 %v3893, %v3890
    %v4321 = vpack.c.bf16 %v3901, %v3898
    %v4322 = vpack.c.bf16 %v3909, %v3906
    %v4323 = vpack.c.bf16 %v3917, %v3914
    %v4324 = vpack.c.bf16 %v3925, %v3922
    %v4325 = vpack.c.bf16 %v3933, %v3930
    %v4326 = vpack.c.bf16 %v3941, %v3938
    %v4327 = vpack.c.bf16 %v3949, %v3946
    %v4329 = vsel %vm286, %v4264, 0
    %v4332 = vsel %vm286, %v4265, 0
    %v4335 = vsel %vm286, %v4296, 0
    %v4338 = vsel %vm286, %v4297, 0
    %4340 = vmatprep.subr.bf16.mxu0 0
    %4341 = vmatpush1.bf16.xpose.msra.mxu0 0
    %4342 = vmatprep.subr.bf16.mxu0 0
    %4343 = vmatpush1.bf16.xpose.msra.mxu0 0
    %4344 = vmatprep.subr.bf16.mxu0 0
    %4345 = vmatpush1.bf16.xpose.msra.mxu0 0
    %4346 = vmatprep.subr.bf16.mxu0 0
    %4347 = vmatpush1.bf16.xpose.msra.mxu0 0
    %4348 = vmatprep.subr.bf16.mxu0 0
    %4349 = vmatpush1.bf16.xpose.msra.mxu0 0
    %4350 = vmatprep.subr.bf16.mxu0 0
    %4351 = vmatpush1.bf16.xpose.msra.mxu0 0
    %4352 = vmatprep.subr.bf16.mxu0 0
    %4353 = vmatpush1.bf16.xpose.msra.mxu0 %v4338
    %4354 = vmatprep.subr.bf16.mxu0 0
    %4355 = vmatpush1.bf16.xpose.msra.mxu0 %v4335
    %4356 = vmatprep.subr.bf16.mxu0 0
    %4357 = vmatpush2.bf16.xpose.msra.mxu0 0
    %4358 = vmatprep.subr.bf16.mxu0 0
    %4359 = vmatpush2.bf16.xpose.msra.mxu0 0
    %4360 = vmatprep.subr.bf16.mxu0 0
    %4361 = vmatpush2.bf16.xpose.msra.mxu0 0
    %4362 = vmatprep.subr.bf16.mxu0 0
    %4363 = vmatpush2.bf16.xpose.msra.mxu0 0
    %4364 = vmatprep.subr.bf16.mxu0 0
    %4365 = vmatpush2.bf16.xpose.msra.mxu0 0
    %4366 = vmatprep.subr.bf16.mxu0 0
    %4367 = vmatpush2.bf16.xpose.msra.mxu0 0
    %4368 = vmatprep.subr.bf16.mxu0 0
    %4369 = vmatpush2.bf16.xpose.msra.mxu0 0
    %4370 = vmatprep.subr.bf16.mxu0 0
    %4371 = vmatpush2.bf16.xpose.msra.mxu0 0
    %4372 = vmatprep.mubr.bf16.mxu0 0
    %4373 = vmatmul.mubr.bf16.gmra.mxu0 %v4329
    %v4374 = vpop.f32.mrf.mxu0
    %v4375 = vadd.f32 0.0, %v4374
    %v4376 = vpop.f32.mrf.mxu0
    %v4377 = vpop.f32.mrf.mxu0
    %v4378 = vadd.f32 0.0, %v4377
    %v4379 = vpop.f32.mrf.mxu0
    %4380 = vmatprep.mubr.bf16.mxu0 0
    %4381 = vmatmul.mubr.bf16.gmra.mxu0 %v4332
    %v4382 = vpop.f32.mrf.mxu0
    %v4383 = vadd.f32 0.0, %v4382
    %v4384 = vpop.f32.mrf.mxu0
    %v4385 = vpop.f32.mrf.mxu0
    %v4386 = vadd.f32 0.0, %v4385
    %v4387 = vpop.f32.mrf.mxu0
    %4388 = vdwg.mxu0
    %v4390 = vsel %vm286, %v4266, 0
    %v4393 = vsel %vm286, %v4267, 0
    %v4396 = vsel %vm286, %v4298, 0
    %v4399 = vsel %vm286, %v4299, 0
    %4401 = vmatprep.subr.bf16.mxu0 0
    %4402 = vmatpush1.bf16.xpose.msra.mxu0 0
    %4403 = vmatprep.subr.bf16.mxu0 0
    %4404 = vmatpush1.bf16.xpose.msra.mxu0 0
    %4405 = vmatprep.subr.bf16.mxu0 0
    %4406 = vmatpush1.bf16.xpose.msra.mxu0 0
    %4407 = vmatprep.subr.bf16.mxu0 0
    %4408 = vmatpush1.bf16.xpose.msra.mxu0 0
    %4409 = vmatprep.subr.bf16.mxu0 0
    %4410 = vmatpush1.bf16.xpose.msra.mxu0 0
    %4411 = vmatprep.subr.bf16.mxu0 0
    %4412 = vmatpush1.bf16.xpose.msra.mxu0 0
    %4413 = vmatprep.subr.bf16.mxu0 0
    %4414 = vmatpush1.bf16.xpose.msra.mxu0 %v4399
    %4415 = vmatprep.subr.bf16.mxu0 0
    %4416 = vmatpush1.bf16.xpose.msra.mxu0 %v4396
    %4417 = vmatprep.subr.bf16.mxu0 0
    %4418 = vmatpush2.bf16.xpose.msra.mxu0 0
    %4419 = vmatprep.subr.bf16.mxu0 0
    %4420 = vmatpush2.bf16.xpose.msra.mxu0 0
    %4421 = vmatprep.subr.bf16.mxu0 0
    %4422 = vmatpush2.bf16.xpose.msra.mxu0 0
    %4423 = vmatprep.subr.bf16.mxu0 0
    %4424 = vmatpush2.bf16.xpose.msra.mxu0 0
    %4425 = vmatprep.subr.bf16.mxu0 0
    %4426 = vmatpush2.bf16.xpose.msra.mxu0 0
    %4427 = vmatprep.subr.bf16.mxu0 0
    %4428 = vmatpush2.bf16.xpose.msra.mxu0 0
    %4429 = vmatprep.subr.bf16.mxu0 0
    %4430 = vmatpush2.bf16.xpose.msra.mxu0 0
    %4431 = vmatprep.subr.bf16.mxu0 0
    %4432 = vmatpush2.bf16.xpose.msra.mxu0 0
    %4433 = vmatprep.mubr.bf16.mxu0 0
    %4434 = vmatmul.mubr.bf16.gmra.mxu0 %v4390
    %v4435 = vpop.f32.mrf.mxu0
    %v4436 = vadd.f32 0.0, %v4435
    %v4437 = vpop.f32.mrf.mxu0
    %v4438 = vpop.f32.mrf.mxu0
    %v4439 = vadd.f32 0.0, %v4438
    %v4440 = vpop.f32.mrf.mxu0
    %4441 = vmatprep.mubr.bf16.mxu0 0
    %4442 = vmatmul.mubr.bf16.gmra.mxu0 %v4393
    %v4443 = vpop.f32.mrf.mxu0
    %v4444 = vadd.f32 0.0, %v4443
    %v4445 = vpop.f32.mrf.mxu0
    %v4446 = vpop.f32.mrf.mxu0
    %v4447 = vadd.f32 0.0, %v4446
    %v4448 = vpop.f32.mrf.mxu0
    %4449 = vdwg.mxu0
    %v4451 = vsel %vm286, %v4268, 0
    %v4454 = vsel %vm286, %v4269, 0
    %v4457 = vsel %vm286, %v4300, 0
    %v4460 = vsel %vm286, %v4301, 0
    %4462 = vmatprep.subr.bf16.mxu0 0
    %4463 = vmatpush1.bf16.xpose.msra.mxu0 0
    %4464 = vmatprep.subr.bf16.mxu0 0
    %4465 = vmatpush1.bf16.xpose.msra.mxu0 0
    %4466 = vmatprep.subr.bf16.mxu0 0
    %4467 = vmatpush1.bf16.xpose.msra.mxu0 0
    %4468 = vmatprep.subr.bf16.mxu0 0
    %4469 = vmatpush1.bf16.xpose.msra.mxu0 0
    %4470 = vmatprep.subr.bf16.mxu0 0
    %4471 = vmatpush1.bf16.xpose.msra.mxu0 0
    %4472 = vmatprep.subr.bf16.mxu0 0
    %4473 = vmatpush1.bf16.xpose.msra.mxu0 0
    %4474 = vmatprep.subr.bf16.mxu0 0
    %4475 = vmatpush1.bf16.xpose.msra.mxu0 %v4460
    %4476 = vmatprep.subr.bf16.mxu0 0
    %4477 = vmatpush1.bf16.xpose.msra.mxu0 %v4457
    %4478 = vmatprep.subr.bf16.mxu0 0
    %4479 = vmatpush2.bf16.xpose.msra.mxu0 0
    %4480 = vmatprep.subr.bf16.mxu0 0
    %4481 = vmatpush2.bf16.xpose.msra.mxu0 0
    %4482 = vmatprep.subr.bf16.mxu0 0
    %4483 = vmatpush2.bf16.xpose.msra.mxu0 0
    %4484 = vmatprep.subr.bf16.mxu0 0
    %4485 = vmatpush2.bf16.xpose.msra.mxu0 0
    %4486 = vmatprep.subr.bf16.mxu0 0
    %4487 = vmatpush2.bf16.xpose.msra.mxu0 0
    %4488 = vmatprep.subr.bf16.mxu0 0
    %4489 = vmatpush2.bf16.xpose.msra.mxu0 0
    %4490 = vmatprep.subr.bf16.mxu0 0
    %4491 = vmatpush2.bf16.xpose.msra.mxu0 0
    %4492 = vmatprep.subr.bf16.mxu0 0
    %4493 = vmatpush2.bf16.xpose.msra.mxu0 0
    %4494 = vmatprep.mubr.bf16.mxu0 0
    %4495 = vmatmul.mubr.bf16.gmra.mxu0 %v4451
    %v4496 = vpop.f32.mrf.mxu0
    %v4497 = vadd.f32 0.0, %v4496
    %v4498 = vpop.f32.mrf.mxu0
    %v4499 = vpop.f32.mrf.mxu0
    %v4500 = vadd.f32 0.0, %v4499
    %v4501 = vpop.f32.mrf.mxu0
    %4502 = vmatprep.mubr.bf16.mxu0 0
    %4503 = vmatmul.mubr.bf16.gmra.mxu0 %v4454
    %v4504 = vpop.f32.mrf.mxu0
    %v4505 = vadd.f32 0.0, %v4504
    %v4506 = vpop.f32.mrf.mxu0
    %v4507 = vpop.f32.mrf.mxu0
    %v4508 = vadd.f32 0.0, %v4507
    %v4509 = vpop.f32.mrf.mxu0
    %4510 = vdwg.mxu0
    %v4512 = vsel %vm286, %v4270, 0
    %v4515 = vsel %vm286, %v4271, 0
    %v4518 = vsel %vm286, %v4302, 0
    %v4521 = vsel %vm286, %v4303, 0
    %4523 = vmatprep.subr.bf16.mxu0 0
    %4524 = vmatpush1.bf16.xpose.msra.mxu0 0
    %4525 = vmatprep.subr.bf16.mxu0 0
    %4526 = vmatpush1.bf16.xpose.msra.mxu0 0
    %4527 = vmatprep.subr.bf16.mxu0 0
    %4528 = vmatpush1.bf16.xpose.msra.mxu0 0
    %4529 = vmatprep.subr.bf16.mxu0 0
    %4530 = vmatpush1.bf16.xpose.msra.mxu0 0
    %4531 = vmatprep.subr.bf16.mxu0 0
    %4532 = vmatpush1.bf16.xpose.msra.mxu0 0
    %4533 = vmatprep.subr.bf16.mxu0 0
    %4534 = vmatpush1.bf16.xpose.msra.mxu0 0
    %4535 = vmatprep.subr.bf16.mxu0 0
    %4536 = vmatpush1.bf16.xpose.msra.mxu0 %v4521
    %4537 = vmatprep.subr.bf16.mxu0 0
    %4538 = vmatpush1.bf16.xpose.msra.mxu0 %v4518
    %4539 = vmatprep.subr.bf16.mxu0 0
    %4540 = vmatpush2.bf16.xpose.msra.mxu0 0
    %4541 = vmatprep.subr.bf16.mxu0 0
    %4542 = vmatpush2.bf16.xpose.msra.mxu0 0
    %4543 = vmatprep.subr.bf16.mxu0 0
    %4544 = vmatpush2.bf16.xpose.msra.mxu0 0
    %4545 = vmatprep.subr.bf16.mxu0 0
    %4546 = vmatpush2.bf16.xpose.msra.mxu0 0
    %4547 = vmatprep.subr.bf16.mxu0 0
    %4548 = vmatpush2.bf16.xpose.msra.mxu0 0
    %4549 = vmatprep.subr.bf16.mxu0 0
    %4550 = vmatpush2.bf16.xpose.msra.mxu0 0
    %4551 = vmatprep.subr.bf16.mxu0 0
    %4552 = vmatpush2.bf16.xpose.msra.mxu0 0
    %4553 = vmatprep.subr.bf16.mxu0 0
    %4554 = vmatpush2.bf16.xpose.msra.mxu0 0
    %4555 = vmatprep.mubr.bf16.mxu0 0
    %4556 = vmatmul.mubr.bf16.gmra.mxu0 %v4512
    %v4557 = vpop.f32.mrf.mxu0
    %v4558 = vadd.f32 0.0, %v4557
    %v4559 = vpop.f32.mrf.mxu0
    %v4560 = vpop.f32.mrf.mxu0
    %v4561 = vadd.f32 0.0, %v4560
    %v4562 = vpop.f32.mrf.mxu0
    %4563 = vmatprep.mubr.bf16.mxu0 0
    %4564 = vmatmul.mubr.bf16.gmra.mxu0 %v4515
    %v4565 = vpop.f32.mrf.mxu0
    %v4566 = vadd.f32 0.0, %v4565
    %v4567 = vpop.f32.mrf.mxu0
    %v4568 = vpop.f32.mrf.mxu0
    %v4569 = vadd.f32 0.0, %v4568
    %v4570 = vpop.f32.mrf.mxu0
    %4571 = vdwg.mxu0
    %v4573 = vsel %vm286, %v4272, 0
    %v4576 = vsel %vm286, %v4273, 0
    %v4579 = vsel %vm286, %v4304, 0
    %v4582 = vsel %vm286, %v4305, 0
    %4584 = vmatprep.subr.bf16.mxu0 0
    %4585 = vmatpush1.bf16.xpose.msra.mxu0 0
    %4586 = vmatprep.subr.bf16.mxu0 0
    %4587 = vmatpush1.bf16.xpose.msra.mxu0 0
    %4588 = vmatprep.subr.bf16.mxu0 0
    %4589 = vmatpush1.bf16.xpose.msra.mxu0 0
    %4590 = vmatprep.subr.bf16.mxu0 0
    %4591 = vmatpush1.bf16.xpose.msra.mxu0 0
    %4592 = vmatprep.subr.bf16.mxu0 0
    %4593 = vmatpush1.bf16.xpose.msra.mxu0 0
    %4594 = vmatprep.subr.bf16.mxu0 0
    %4595 = vmatpush1.bf16.xpose.msra.mxu0 0
    %4596 = vmatprep.subr.bf16.mxu0 0
    %4597 = vmatpush1.bf16.xpose.msra.mxu0 %v4582
    %4598 = vmatprep.subr.bf16.mxu0 0
    %4599 = vmatpush1.bf16.xpose.msra.mxu0 %v4579
    %4600 = vmatprep.subr.bf16.mxu0 0
    %4601 = vmatpush2.bf16.xpose.msra.mxu0 0
    %4602 = vmatprep.subr.bf16.mxu0 0
    %4603 = vmatpush2.bf16.xpose.msra.mxu0 0
    %4604 = vmatprep.subr.bf16.mxu0 0
    %4605 = vmatpush2.bf16.xpose.msra.mxu0 0
    %4606 = vmatprep.subr.bf16.mxu0 0
    %4607 = vmatpush2.bf16.xpose.msra.mxu0 0
    %4608 = vmatprep.subr.bf16.mxu0 0
    %4609 = vmatpush2.bf16.xpose.msra.mxu0 0
    %4610 = vmatprep.subr.bf16.mxu0 0
    %4611 = vmatpush2.bf16.xpose.msra.mxu0 0
    %4612 = vmatprep.subr.bf16.mxu0 0
    %4613 = vmatpush2.bf16.xpose.msra.mxu0 0
    %4614 = vmatprep.subr.bf16.mxu0 0
    %4615 = vmatpush2.bf16.xpose.msra.mxu0 0
    %4616 = vmatprep.mubr.bf16.mxu0 0
    %4617 = vmatmul.mubr.bf16.gmra.mxu0 %v4573
    %v4618 = vpop.f32.mrf.mxu0
    %v4619 = vadd.f32 0.0, %v4618
    %v4620 = vpop.f32.mrf.mxu0
    %v4621 = vpop.f32.mrf.mxu0
    %v4622 = vadd.f32 0.0, %v4621
    %v4623 = vpop.f32.mrf.mxu0
    %4624 = vmatprep.mubr.bf16.mxu0 0
    %4625 = vmatmul.mubr.bf16.gmra.mxu0 %v4576
    %v4626 = vpop.f32.mrf.mxu0
    %v4627 = vadd.f32 0.0, %v4626
    %v4628 = vpop.f32.mrf.mxu0
    %v4629 = vpop.f32.mrf.mxu0
    %v4630 = vadd.f32 0.0, %v4629
    %v4631 = vpop.f32.mrf.mxu0
    %4632 = vdwg.mxu0
    %v4634 = vsel %vm286, %v4274, 0
    %v4637 = vsel %vm286, %v4275, 0
    %v4640 = vsel %vm286, %v4306, 0
    %v4643 = vsel %vm286, %v4307, 0
    %4645 = vmatprep.subr.bf16.mxu0 0
    %4646 = vmatpush1.bf16.xpose.msra.mxu0 0
    %4647 = vmatprep.subr.bf16.mxu0 0
    %4648 = vmatpush1.bf16.xpose.msra.mxu0 0
    %4649 = vmatprep.subr.bf16.mxu0 0
    %4650 = vmatpush1.bf16.xpose.msra.mxu0 0
    %4651 = vmatprep.subr.bf16.mxu0 0
    %4652 = vmatpush1.bf16.xpose.msra.mxu0 0
    %4653 = vmatprep.subr.bf16.mxu0 0
    %4654 = vmatpush1.bf16.xpose.msra.mxu0 0
    %4655 = vmatprep.subr.bf16.mxu0 0
    %4656 = vmatpush1.bf16.xpose.msra.mxu0 0
    %4657 = vmatprep.subr.bf16.mxu0 0
    %4658 = vmatpush1.bf16.xpose.msra.mxu0 %v4643
    %4659 = vmatprep.subr.bf16.mxu0 0
    %4660 = vmatpush1.bf16.xpose.msra.mxu0 %v4640
    %4661 = vmatprep.subr.bf16.mxu0 0
    %4662 = vmatpush2.bf16.xpose.msra.mxu0 0
    %4663 = vmatprep.subr.bf16.mxu0 0
    %4664 = vmatpush2.bf16.xpose.msra.mxu0 0
    %4665 = vmatprep.subr.bf16.mxu0 0
    %4666 = vmatpush2.bf16.xpose.msra.mxu0 0
    %4667 = vmatprep.subr.bf16.mxu0 0
    %4668 = vmatpush2.bf16.xpose.msra.mxu0 0
    %4669 = vmatprep.subr.bf16.mxu0 0
    %4670 = vmatpush2.bf16.xpose.msra.mxu0 0
    %4671 = vmatprep.subr.bf16.mxu0 0
    %4672 = vmatpush2.bf16.xpose.msra.mxu0 0
    %4673 = vmatprep.subr.bf16.mxu0 0
    %4674 = vmatpush2.bf16.xpose.msra.mxu0 0
    %4675 = vmatprep.subr.bf16.mxu0 0
    %4676 = vmatpush2.bf16.xpose.msra.mxu0 0
    %4677 = vmatprep.mubr.bf16.mxu0 0
    %4678 = vmatmul.mubr.bf16.gmra.mxu0 %v4634
    %v4679 = vpop.f32.mrf.mxu0
    %v4680 = vadd.f32 0.0, %v4679
    %v4681 = vpop.f32.mrf.mxu0
    %v4682 = vpop.f32.mrf.mxu0
    %v4683 = vadd.f32 0.0, %v4682
    %v4684 = vpop.f32.mrf.mxu0
    %4685 = vmatprep.mubr.bf16.mxu0 0
    %4686 = vmatmul.mubr.bf16.gmra.mxu0 %v4637
    %v4687 = vpop.f32.mrf.mxu0
    %v4688 = vadd.f32 0.0, %v4687
    %v4689 = vpop.f32.mrf.mxu0
    %v4690 = vpop.f32.mrf.mxu0
    %v4691 = vadd.f32 0.0, %v4690
    %v4692 = vpop.f32.mrf.mxu0
    %4693 = vdwg.mxu0
    %v4695 = vsel %vm286, %v4276, 0
    %v4698 = vsel %vm286, %v4277, 0
    %v4701 = vsel %vm286, %v4308, 0
    %v4704 = vsel %vm286, %v4309, 0
    %4706 = vmatprep.subr.bf16.mxu0 0
    %4707 = vmatpush1.bf16.xpose.msra.mxu0 0
    %4708 = vmatprep.subr.bf16.mxu0 0
    %4709 = vmatpush1.bf16.xpose.msra.mxu0 0
    %4710 = vmatprep.subr.bf16.mxu0 0
    %4711 = vmatpush1.bf16.xpose.msra.mxu0 0
    %4712 = vmatprep.subr.bf16.mxu0 0
    %4713 = vmatpush1.bf16.xpose.msra.mxu0 0
    %4714 = vmatprep.subr.bf16.mxu0 0
    %4715 = vmatpush1.bf16.xpose.msra.mxu0 0
    %4716 = vmatprep.subr.bf16.mxu0 0
    %4717 = vmatpush1.bf16.xpose.msra.mxu0 0
    %4718 = vmatprep.subr.bf16.mxu0 0
    %4719 = vmatpush1.bf16.xpose.msra.mxu0 %v4704
    %4720 = vmatprep.subr.bf16.mxu0 0
    %4721 = vmatpush1.bf16.xpose.msra.mxu0 %v4701
    %4722 = vmatprep.subr.bf16.mxu0 0
    %4723 = vmatpush2.bf16.xpose.msra.mxu0 0
    %4724 = vmatprep.subr.bf16.mxu0 0
    %4725 = vmatpush2.bf16.xpose.msra.mxu0 0
    %4726 = vmatprep.subr.bf16.mxu0 0
    %4727 = vmatpush2.bf16.xpose.msra.mxu0 0
    %4728 = vmatprep.subr.bf16.mxu0 0
    %4729 = vmatpush2.bf16.xpose.msra.mxu0 0
    %4730 = vmatprep.subr.bf16.mxu0 0
    %4731 = vmatpush2.bf16.xpose.msra.mxu0 0
    %4732 = vmatprep.subr.bf16.mxu0 0
    %4733 = vmatpush2.bf16.xpose.msra.mxu0 0
    %4734 = vmatprep.subr.bf16.mxu0 0
    %4735 = vmatpush2.bf16.xpose.msra.mxu0 0
    %4736 = vmatprep.subr.bf16.mxu0 0
    %4737 = vmatpush2.bf16.xpose.msra.mxu0 0
    %4738 = vmatprep.mubr.bf16.mxu0 0
    %4739 = vmatmul.mubr.bf16.gmra.mxu0 %v4695
    %v4740 = vpop.f32.mrf.mxu0
    %v4741 = vadd.f32 0.0, %v4740
    %v4742 = vpop.f32.mrf.mxu0
    %v4743 = vpop.f32.mrf.mxu0
    %v4744 = vadd.f32 0.0, %v4743
    %v4745 = vpop.f32.mrf.mxu0
    %4746 = vmatprep.mubr.bf16.mxu0 0
    %4747 = vmatmul.mubr.bf16.gmra.mxu0 %v4698
    %v4748 = vpop.f32.mrf.mxu0
    %v4749 = vadd.f32 0.0, %v4748
    %v4750 = vpop.f32.mrf.mxu0
    %v4751 = vpop.f32.mrf.mxu0
    %v4752 = vadd.f32 0.0, %v4751
    %v4753 = vpop.f32.mrf.mxu0
    %4754 = vdwg.mxu0
    %v4756 = vsel %vm286, %v4278, 0
    %v4759 = vsel %vm286, %v4279, 0
    %v4762 = vsel %vm286, %v4310, 0
    %v4765 = vsel %vm286, %v4311, 0
    %4767 = vmatprep.subr.bf16.mxu0 0
    %4768 = vmatpush1.bf16.xpose.msra.mxu0 0
    %4769 = vmatprep.subr.bf16.mxu0 0
    %4770 = vmatpush1.bf16.xpose.msra.mxu0 0
    %4771 = vmatprep.subr.bf16.mxu0 0
    %4772 = vmatpush1.bf16.xpose.msra.mxu0 0
    %4773 = vmatprep.subr.bf16.mxu0 0
    %4774 = vmatpush1.bf16.xpose.msra.mxu0 0
    %4775 = vmatprep.subr.bf16.mxu0 0
    %4776 = vmatpush1.bf16.xpose.msra.mxu0 0
    %4777 = vmatprep.subr.bf16.mxu0 0
    %4778 = vmatpush1.bf16.xpose.msra.mxu0 0
    %4779 = vmatprep.subr.bf16.mxu0 0
    %4780 = vmatpush1.bf16.xpose.msra.mxu0 %v4765
    %4781 = vmatprep.subr.bf16.mxu0 0
    %4782 = vmatpush1.bf16.xpose.msra.mxu0 %v4762
    %4783 = vmatprep.subr.bf16.mxu0 0
    %4784 = vmatpush2.bf16.xpose.msra.mxu0 0
    %4785 = vmatprep.subr.bf16.mxu0 0
    %4786 = vmatpush2.bf16.xpose.msra.mxu0 0
    %4787 = vmatprep.subr.bf16.mxu0 0
    %4788 = vmatpush2.bf16.xpose.msra.mxu0 0
    %4789 = vmatprep.subr.bf16.mxu0 0
    %4790 = vmatpush2.bf16.xpose.msra.mxu0 0
    %4791 = vmatprep.subr.bf16.mxu0 0
    %4792 = vmatpush2.bf16.xpose.msra.mxu0 0
    %4793 = vmatprep.subr.bf16.mxu0 0
    %4794 = vmatpush2.bf16.xpose.msra.mxu0 0
    %4795 = vmatprep.subr.bf16.mxu0 0
    %4796 = vmatpush2.bf16.xpose.msra.mxu0 0
    %4797 = vmatprep.subr.bf16.mxu0 0
    %4798 = vmatpush2.bf16.xpose.msra.mxu0 0
    %4799 = vmatprep.mubr.bf16.mxu0 0
    %4800 = vmatmul.mubr.bf16.gmra.mxu0 %v4756
    %v4801 = vpop.f32.mrf.mxu0
    %v4802 = vadd.f32 0.0, %v4801
    %v4803 = vpop.f32.mrf.mxu0
    %v4804 = vpop.f32.mrf.mxu0
    %v4805 = vadd.f32 0.0, %v4804
    %v4806 = vpop.f32.mrf.mxu0
    %4807 = vmatprep.mubr.bf16.mxu0 0
    %4808 = vmatmul.mubr.bf16.gmra.mxu0 %v4759
    %v4809 = vpop.f32.mrf.mxu0
    %v4810 = vadd.f32 0.0, %v4809
    %v4811 = vpop.f32.mrf.mxu0
    %v4812 = vpop.f32.mrf.mxu0
    %v4813 = vadd.f32 0.0, %v4812
    %v4814 = vpop.f32.mrf.mxu0
    %4815 = vdwg.mxu0
    %v4817 = vsel %vm286, %v4280, 0
    %v4820 = vsel %vm286, %v4281, 0
    %v4823 = vsel %vm286, %v4312, 0
    %v4826 = vsel %vm286, %v4313, 0
    %4828 = vmatprep.subr.bf16.mxu0 0
    %4829 = vmatpush1.bf16.xpose.msra.mxu0 0
    %4830 = vmatprep.subr.bf16.mxu0 0
    %4831 = vmatpush1.bf16.xpose.msra.mxu0 0
    %4832 = vmatprep.subr.bf16.mxu0 0
    %4833 = vmatpush1.bf16.xpose.msra.mxu0 0
    %4834 = vmatprep.subr.bf16.mxu0 0
    %4835 = vmatpush1.bf16.xpose.msra.mxu0 0
    %4836 = vmatprep.subr.bf16.mxu0 0
    %4837 = vmatpush1.bf16.xpose.msra.mxu0 0
    %4838 = vmatprep.subr.bf16.mxu0 0
    %4839 = vmatpush1.bf16.xpose.msra.mxu0 0
    %4840 = vmatprep.subr.bf16.mxu0 0
    %4841 = vmatpush1.bf16.xpose.msra.mxu0 %v4826
    %4842 = vmatprep.subr.bf16.mxu0 0
    %4843 = vmatpush1.bf16.xpose.msra.mxu0 %v4823
    %4844 = vmatprep.subr.bf16.mxu0 0
    %4845 = vmatpush2.bf16.xpose.msra.mxu0 0
    %4846 = vmatprep.subr.bf16.mxu0 0
    %4847 = vmatpush2.bf16.xpose.msra.mxu0 0
    %4848 = vmatprep.subr.bf16.mxu0 0
    %4849 = vmatpush2.bf16.xpose.msra.mxu0 0
    %4850 = vmatprep.subr.bf16.mxu0 0
    %4851 = vmatpush2.bf16.xpose.msra.mxu0 0
    %4852 = vmatprep.subr.bf16.mxu0 0
    %4853 = vmatpush2.bf16.xpose.msra.mxu0 0
    %4854 = vmatprep.subr.bf16.mxu0 0
    %4855 = vmatpush2.bf16.xpose.msra.mxu0 0
    %4856 = vmatprep.subr.bf16.mxu0 0
    %4857 = vmatpush2.bf16.xpose.msra.mxu0 0
    %4858 = vmatprep.subr.bf16.mxu0 0
    %4859 = vmatpush2.bf16.xpose.msra.mxu0 0
    %4860 = vmatprep.mubr.bf16.mxu0 0
    %4861 = vmatmul.mubr.bf16.gmra.mxu0 %v4817
    %v4862 = vpop.f32.mrf.mxu0
    %v4863 = vadd.f32 0.0, %v4862
    %v4864 = vpop.f32.mrf.mxu0
    %v4865 = vpop.f32.mrf.mxu0
    %v4866 = vadd.f32 0.0, %v4865
    %v4867 = vpop.f32.mrf.mxu0
    %4868 = vmatprep.mubr.bf16.mxu0 0
    %4869 = vmatmul.mubr.bf16.gmra.mxu0 %v4820
    %v4870 = vpop.f32.mrf.mxu0
    %v4871 = vadd.f32 0.0, %v4870
    %v4872 = vpop.f32.mrf.mxu0
    %v4873 = vpop.f32.mrf.mxu0
    %v4874 = vadd.f32 0.0, %v4873
    %v4875 = vpop.f32.mrf.mxu0
    %4876 = vdwg.mxu0
    %v4878 = vsel %vm286, %v4282, 0
    %v4881 = vsel %vm286, %v4283, 0
    %v4884 = vsel %vm286, %v4314, 0
    %v4887 = vsel %vm286, %v4315, 0
    %4889 = vmatprep.subr.bf16.mxu0 0
    %4890 = vmatpush1.bf16.xpose.msra.mxu0 0
    %4891 = vmatprep.subr.bf16.mxu0 0
    %4892 = vmatpush1.bf16.xpose.msra.mxu0 0
    %4893 = vmatprep.subr.bf16.mxu0 0
    %4894 = vmatpush1.bf16.xpose.msra.mxu0 0
    %4895 = vmatprep.subr.bf16.mxu0 0
    %4896 = vmatpush1.bf16.xpose.msra.mxu0 0
    %4897 = vmatprep.subr.bf16.mxu0 0
    %4898 = vmatpush1.bf16.xpose.msra.mxu0 0
    %4899 = vmatprep.subr.bf16.mxu0 0
    %4900 = vmatpush1.bf16.xpose.msra.mxu0 0
    %4901 = vmatprep.subr.bf16.mxu0 0
    %4902 = vmatpush1.bf16.xpose.msra.mxu0 %v4887
    %4903 = vmatprep.subr.bf16.mxu0 0
    %4904 = vmatpush1.bf16.xpose.msra.mxu0 %v4884
    %4905 = vmatprep.subr.bf16.mxu0 0
    %4906 = vmatpush2.bf16.xpose.msra.mxu0 0
    %4907 = vmatprep.subr.bf16.mxu0 0
    %4908 = vmatpush2.bf16.xpose.msra.mxu0 0
    %4909 = vmatprep.subr.bf16.mxu0 0
    %4910 = vmatpush2.bf16.xpose.msra.mxu0 0
    %4911 = vmatprep.subr.bf16.mxu0 0
    %4912 = vmatpush2.bf16.xpose.msra.mxu0 0
    %4913 = vmatprep.subr.bf16.mxu0 0
    %4914 = vmatpush2.bf16.xpose.msra.mxu0 0
    %4915 = vmatprep.subr.bf16.mxu0 0
    %4916 = vmatpush2.bf16.xpose.msra.mxu0 0
    %4917 = vmatprep.subr.bf16.mxu0 0
    %4918 = vmatpush2.bf16.xpose.msra.mxu0 0
    %4919 = vmatprep.subr.bf16.mxu0 0
    %4920 = vmatpush2.bf16.xpose.msra.mxu0 0
    %4921 = vmatprep.mubr.bf16.mxu0 0
    %4922 = vmatmul.mubr.bf16.gmra.mxu0 %v4878
    %v4923 = vpop.f32.mrf.mxu0
    %v4924 = vadd.f32 0.0, %v4923
    %v4925 = vpop.f32.mrf.mxu0
    %v4926 = vpop.f32.mrf.mxu0
    %v4927 = vadd.f32 0.0, %v4926
    %v4928 = vpop.f32.mrf.mxu0
    %4929 = vmatprep.mubr.bf16.mxu0 0
    %4930 = vmatmul.mubr.bf16.gmra.mxu0 %v4881
    %v4931 = vpop.f32.mrf.mxu0
    %v4932 = vadd.f32 0.0, %v4931
    %v4933 = vpop.f32.mrf.mxu0
    %v4934 = vpop.f32.mrf.mxu0
    %v4935 = vadd.f32 0.0, %v4934
    %v4936 = vpop.f32.mrf.mxu0
    %4937 = vdwg.mxu0
    %v4939 = vsel %vm286, %v4284, 0
    %v4942 = vsel %vm286, %v4285, 0
    %v4945 = vsel %vm286, %v4316, 0
    %v4948 = vsel %vm286, %v4317, 0
    %4950 = vmatprep.subr.bf16.mxu0 0
    %4951 = vmatpush1.bf16.xpose.msra.mxu0 0
    %4952 = vmatprep.subr.bf16.mxu0 0
    %4953 = vmatpush1.bf16.xpose.msra.mxu0 0
    %4954 = vmatprep.subr.bf16.mxu0 0
    %4955 = vmatpush1.bf16.xpose.msra.mxu0 0
    %4956 = vmatprep.subr.bf16.mxu0 0
    %4957 = vmatpush1.bf16.xpose.msra.mxu0 0
    %4958 = vmatprep.subr.bf16.mxu0 0
    %4959 = vmatpush1.bf16.xpose.msra.mxu0 0
    %4960 = vmatprep.subr.bf16.mxu0 0
    %4961 = vmatpush1.bf16.xpose.msra.mxu0 0
    %4962 = vmatprep.subr.bf16.mxu0 0
    %4963 = vmatpush1.bf16.xpose.msra.mxu0 %v4948
    %4964 = vmatprep.subr.bf16.mxu0 0
    %4965 = vmatpush1.bf16.xpose.msra.mxu0 %v4945
    %4966 = vmatprep.subr.bf16.mxu0 0
    %4967 = vmatpush2.bf16.xpose.msra.mxu0 0
    %4968 = vmatprep.subr.bf16.mxu0 0
    %4969 = vmatpush2.bf16.xpose.msra.mxu0 0
    %4970 = vmatprep.subr.bf16.mxu0 0
    %4971 = vmatpush2.bf16.xpose.msra.mxu0 0
    %4972 = vmatprep.subr.bf16.mxu0 0
    %4973 = vmatpush2.bf16.xpose.msra.mxu0 0
    %4974 = vmatprep.subr.bf16.mxu0 0
    %4975 = vmatpush2.bf16.xpose.msra.mxu0 0
    %4976 = vmatprep.subr.bf16.mxu0 0
    %4977 = vmatpush2.bf16.xpose.msra.mxu0 0
    %4978 = vmatprep.subr.bf16.mxu0 0
    %4979 = vmatpush2.bf16.xpose.msra.mxu0 0
    %4980 = vmatprep.subr.bf16.mxu0 0
    %4981 = vmatpush2.bf16.xpose.msra.mxu0 0
    %4982 = vmatprep.mubr.bf16.mxu0 0
    %4983 = vmatmul.mubr.bf16.gmra.mxu0 %v4939
    %v4984 = vpop.f32.mrf.mxu0
    %v4985 = vadd.f32 0.0, %v4984
    %v4986 = vpop.f32.mrf.mxu0
    %v4987 = vpop.f32.mrf.mxu0
    %v4988 = vadd.f32 0.0, %v4987
    %v4989 = vpop.f32.mrf.mxu0
    %4990 = vmatprep.mubr.bf16.mxu0 0
    %4991 = vmatmul.mubr.bf16.gmra.mxu0 %v4942
    %v4992 = vpop.f32.mrf.mxu0
    %v4993 = vadd.f32 0.0, %v4992
    %v4994 = vpop.f32.mrf.mxu0
    %v4995 = vpop.f32.mrf.mxu0
    %v4996 = vadd.f32 0.0, %v4995
    %v4997 = vpop.f32.mrf.mxu0
    %4998 = vdwg.mxu0
    %v5000 = vsel %vm286, %v4286, 0
    %v5003 = vsel %vm286, %v4287, 0
    %v5006 = vsel %vm286, %v4318, 0
    %v5009 = vsel %vm286, %v4319, 0
    %5011 = vmatprep.subr.bf16.mxu0 0
    %5012 = vmatpush1.bf16.xpose.msra.mxu0 0
    %5013 = vmatprep.subr.bf16.mxu0 0
    %5014 = vmatpush1.bf16.xpose.msra.mxu0 0
    %5015 = vmatprep.subr.bf16.mxu0 0
    %5016 = vmatpush1.bf16.xpose.msra.mxu0 0
    %5017 = vmatprep.subr.bf16.mxu0 0
    %5018 = vmatpush1.bf16.xpose.msra.mxu0 0
    %5019 = vmatprep.subr.bf16.mxu0 0
    %5020 = vmatpush1.bf16.xpose.msra.mxu0 0
    %5021 = vmatprep.subr.bf16.mxu0 0
    %5022 = vmatpush1.bf16.xpose.msra.mxu0 0
    %5023 = vmatprep.subr.bf16.mxu0 0
    %5024 = vmatpush1.bf16.xpose.msra.mxu0 %v5009
    %5025 = vmatprep.subr.bf16.mxu0 0
    %5026 = vmatpush1.bf16.xpose.msra.mxu0 %v5006
    %5027 = vmatprep.subr.bf16.mxu0 0
    %5028 = vmatpush2.bf16.xpose.msra.mxu0 0
    %5029 = vmatprep.subr.bf16.mxu0 0
    %5030 = vmatpush2.bf16.xpose.msra.mxu0 0
    %5031 = vmatprep.subr.bf16.mxu0 0
    %5032 = vmatpush2.bf16.xpose.msra.mxu0 0
    %5033 = vmatprep.subr.bf16.mxu0 0
    %5034 = vmatpush2.bf16.xpose.msra.mxu0 0
    %5035 = vmatprep.subr.bf16.mxu0 0
    %5036 = vmatpush2.bf16.xpose.msra.mxu0 0
    %5037 = vmatprep.subr.bf16.mxu0 0
    %5038 = vmatpush2.bf16.xpose.msra.mxu0 0
    %5039 = vmatprep.subr.bf16.mxu0 0
    %5040 = vmatpush2.bf16.xpose.msra.mxu0 0
    %5041 = vmatprep.subr.bf16.mxu0 0
    %5042 = vmatpush2.bf16.xpose.msra.mxu0 0
    %5043 = vmatprep.mubr.bf16.mxu0 0
    %5044 = vmatmul.mubr.bf16.gmra.mxu0 %v5000
    %v5045 = vpop.f32.mrf.mxu0
    %v5046 = vadd.f32 0.0, %v5045
    %v5047 = vpop.f32.mrf.mxu0
    %v5048 = vpop.f32.mrf.mxu0
    %v5049 = vadd.f32 0.0, %v5048
    %v5050 = vpop.f32.mrf.mxu0
    %5051 = vmatprep.mubr.bf16.mxu0 0
    %5052 = vmatmul.mubr.bf16.gmra.mxu0 %v5003
    %v5053 = vpop.f32.mrf.mxu0
    %v5054 = vadd.f32 0.0, %v5053
    %v5055 = vpop.f32.mrf.mxu0
    %v5056 = vpop.f32.mrf.mxu0
    %v5057 = vadd.f32 0.0, %v5056
    %v5058 = vpop.f32.mrf.mxu0
    %5059 = vdwg.mxu0
    %v5061 = vsel %vm286, %v4288, 0
    %v5064 = vsel %vm286, %v4289, 0
    %v5067 = vsel %vm286, %v4320, 0
    %v5070 = vsel %vm286, %v4321, 0
    %5072 = vmatprep.subr.bf16.mxu0 0
    %5073 = vmatpush1.bf16.xpose.msra.mxu0 0
    %5074 = vmatprep.subr.bf16.mxu0 0
    %5075 = vmatpush1.bf16.xpose.msra.mxu0 0
    %5076 = vmatprep.subr.bf16.mxu0 0
    %5077 = vmatpush1.bf16.xpose.msra.mxu0 0
    %5078 = vmatprep.subr.bf16.mxu0 0
    %5079 = vmatpush1.bf16.xpose.msra.mxu0 0
    %5080 = vmatprep.subr.bf16.mxu0 0
    %5081 = vmatpush1.bf16.xpose.msra.mxu0 0
    %5082 = vmatprep.subr.bf16.mxu0 0
    %5083 = vmatpush1.bf16.xpose.msra.mxu0 0
    %5084 = vmatprep.subr.bf16.mxu0 0
    %5085 = vmatpush1.bf16.xpose.msra.mxu0 %v5070
    %5086 = vmatprep.subr.bf16.mxu0 0
    %5087 = vmatpush1.bf16.xpose.msra.mxu0 %v5067
    %5088 = vmatprep.subr.bf16.mxu0 0
    %5089 = vmatpush2.bf16.xpose.msra.mxu0 0
    %5090 = vmatprep.subr.bf16.mxu0 0
    %5091 = vmatpush2.bf16.xpose.msra.mxu0 0
    %5092 = vmatprep.subr.bf16.mxu0 0
    %5093 = vmatpush2.bf16.xpose.msra.mxu0 0
    %5094 = vmatprep.subr.bf16.mxu0 0
    %5095 = vmatpush2.bf16.xpose.msra.mxu0 0
    %5096 = vmatprep.subr.bf16.mxu0 0
    %5097 = vmatpush2.bf16.xpose.msra.mxu0 0
    %5098 = vmatprep.subr.bf16.mxu0 0
    %5099 = vmatpush2.bf16.xpose.msra.mxu0 0
    %5100 = vmatprep.subr.bf16.mxu0 0
    %5101 = vmatpush2.bf16.xpose.msra.mxu0 0
    %5102 = vmatprep.subr.bf16.mxu0 0
    %5103 = vmatpush2.bf16.xpose.msra.mxu0 0
    %5104 = vmatprep.mubr.bf16.mxu0 0
    %5105 = vmatmul.mubr.bf16.gmra.mxu0 %v5061
    %v5106 = vpop.f32.mrf.mxu0
    %v5107 = vadd.f32 0.0, %v5106
    %v5108 = vpop.f32.mrf.mxu0
    %v5109 = vpop.f32.mrf.mxu0
    %v5110 = vadd.f32 0.0, %v5109
    %v5111 = vpop.f32.mrf.mxu0
    %5112 = vmatprep.mubr.bf16.mxu0 0
    %5113 = vmatmul.mubr.bf16.gmra.mxu0 %v5064
    %v5114 = vpop.f32.mrf.mxu0
    %v5115 = vadd.f32 0.0, %v5114
    %v5116 = vpop.f32.mrf.mxu0
    %v5117 = vpop.f32.mrf.mxu0
    %v5118 = vadd.f32 0.0, %v5117
    %v5119 = vpop.f32.mrf.mxu0
    %5120 = vdwg.mxu0
    %v5122 = vsel %vm286, %v4290, 0
    %v5125 = vsel %vm286, %v4291, 0
    %v5128 = vsel %vm286, %v4322, 0
    %v5131 = vsel %vm286, %v4323, 0
    %5133 = vmatprep.subr.bf16.mxu0 0
    %5134 = vmatpush1.bf16.xpose.msra.mxu0 0
    %5135 = vmatprep.subr.bf16.mxu0 0
    %5136 = vmatpush1.bf16.xpose.msra.mxu0 0
    %5137 = vmatprep.subr.bf16.mxu0 0
    %5138 = vmatpush1.bf16.xpose.msra.mxu0 0
    %5139 = vmatprep.subr.bf16.mxu0 0
    %5140 = vmatpush1.bf16.xpose.msra.mxu0 0
    %5141 = vmatprep.subr.bf16.mxu0 0
    %5142 = vmatpush1.bf16.xpose.msra.mxu0 0
    %5143 = vmatprep.subr.bf16.mxu0 0
    %5144 = vmatpush1.bf16.xpose.msra.mxu0 0
    %5145 = vmatprep.subr.bf16.mxu0 0
    %5146 = vmatpush1.bf16.xpose.msra.mxu0 %v5131
    %5147 = vmatprep.subr.bf16.mxu0 0
    %5148 = vmatpush1.bf16.xpose.msra.mxu0 %v5128
    %5149 = vmatprep.subr.bf16.mxu0 0
    %5150 = vmatpush2.bf16.xpose.msra.mxu0 0
    %5151 = vmatprep.subr.bf16.mxu0 0
    %5152 = vmatpush2.bf16.xpose.msra.mxu0 0
    %5153 = vmatprep.subr.bf16.mxu0 0
    %5154 = vmatpush2.bf16.xpose.msra.mxu0 0
    %5155 = vmatprep.subr.bf16.mxu0 0
    %5156 = vmatpush2.bf16.xpose.msra.mxu0 0
    %5157 = vmatprep.subr.bf16.mxu0 0
    %5158 = vmatpush2.bf16.xpose.msra.mxu0 0
    %5159 = vmatprep.subr.bf16.mxu0 0
    %5160 = vmatpush2.bf16.xpose.msra.mxu0 0
    %5161 = vmatprep.subr.bf16.mxu0 0
    %5162 = vmatpush2.bf16.xpose.msra.mxu0 0
    %5163 = vmatprep.subr.bf16.mxu0 0
    %5164 = vmatpush2.bf16.xpose.msra.mxu0 0
    %5165 = vmatprep.mubr.bf16.mxu0 0
    %5166 = vmatmul.mubr.bf16.gmra.mxu0 %v5122
    %v5167 = vpop.f32.mrf.mxu0
    %v5168 = vadd.f32 0.0, %v5167
    %v5169 = vpop.f32.mrf.mxu0
    %v5170 = vpop.f32.mrf.mxu0
    %v5171 = vadd.f32 0.0, %v5170
    %v5172 = vpop.f32.mrf.mxu0
    %5173 = vmatprep.mubr.bf16.mxu0 0
    %5174 = vmatmul.mubr.bf16.gmra.mxu0 %v5125
    %v5175 = vpop.f32.mrf.mxu0
    %v5176 = vadd.f32 0.0, %v5175
    %v5177 = vpop.f32.mrf.mxu0
    %v5178 = vpop.f32.mrf.mxu0
    %v5179 = vadd.f32 0.0, %v5178
    %v5180 = vpop.f32.mrf.mxu0
    %5181 = vdwg.mxu0
    %v5183 = vsel %vm286, %v4292, 0
    %v5186 = vsel %vm286, %v4293, 0
    %v5189 = vsel %vm286, %v4324, 0
    %v5192 = vsel %vm286, %v4325, 0
    %5194 = vmatprep.subr.bf16.mxu0 0
    %5195 = vmatpush1.bf16.xpose.msra.mxu0 0
    %5196 = vmatprep.subr.bf16.mxu0 0
    %5197 = vmatpush1.bf16.xpose.msra.mxu0 0
    %5198 = vmatprep.subr.bf16.mxu0 0
    %5199 = vmatpush1.bf16.xpose.msra.mxu0 0
    %5200 = vmatprep.subr.bf16.mxu0 0
    %5201 = vmatpush1.bf16.xpose.msra.mxu0 0
    %5202 = vmatprep.subr.bf16.mxu0 0
    %5203 = vmatpush1.bf16.xpose.msra.mxu0 0
    %5204 = vmatprep.subr.bf16.mxu0 0
    %5205 = vmatpush1.bf16.xpose.msra.mxu0 0
    %5206 = vmatprep.subr.bf16.mxu0 0
    %5207 = vmatpush1.bf16.xpose.msra.mxu0 %v5192
    %5208 = vmatprep.subr.bf16.mxu0 0
    %5209 = vmatpush1.bf16.xpose.msra.mxu0 %v5189
    %5210 = vmatprep.subr.bf16.mxu0 0
    %5211 = vmatpush2.bf16.xpose.msra.mxu0 0
    %5212 = vmatprep.subr.bf16.mxu0 0
    %5213 = vmatpush2.bf16.xpose.msra.mxu0 0
    %5214 = vmatprep.subr.bf16.mxu0 0
    %5215 = vmatpush2.bf16.xpose.msra.mxu0 0
    %5216 = vmatprep.subr.bf16.mxu0 0
    %5217 = vmatpush2.bf16.xpose.msra.mxu0 0
    %5218 = vmatprep.subr.bf16.mxu0 0
    %5219 = vmatpush2.bf16.xpose.msra.mxu0 0
    %5220 = vmatprep.subr.bf16.mxu0 0
    %5221 = vmatpush2.bf16.xpose.msra.mxu0 0
    %5222 = vmatprep.subr.bf16.mxu0 0
    %5223 = vmatpush2.bf16.xpose.msra.mxu0 0
    %5224 = vmatprep.subr.bf16.mxu0 0
    %5225 = vmatpush2.bf16.xpose.msra.mxu0 0
    %5226 = vmatprep.mubr.bf16.mxu0 0
    %5227 = vmatmul.mubr.bf16.gmra.mxu0 %v5183
    %v5228 = vpop.f32.mrf.mxu0
    %v5229 = vadd.f32 0.0, %v5228
    %v5230 = vpop.f32.mrf.mxu0
    %v5231 = vpop.f32.mrf.mxu0
    %v5232 = vadd.f32 0.0, %v5231
    %v5233 = vpop.f32.mrf.mxu0
    %5234 = vmatprep.mubr.bf16.mxu0 0
    %5235 = vmatmul.mubr.bf16.gmra.mxu0 %v5186
    %v5236 = vpop.f32.mrf.mxu0
    %v5237 = vadd.f32 0.0, %v5236
    %v5238 = vpop.f32.mrf.mxu0
    %v5239 = vpop.f32.mrf.mxu0
    %v5240 = vadd.f32 0.0, %v5239
    %v5241 = vpop.f32.mrf.mxu0
    %5242 = vdwg.mxu0
    %v5244 = vsel %vm286, %v4294, 0
    %v5247 = vsel %vm286, %v4295, 0
    %v5250 = vsel %vm286, %v4326, 0
    %v5253 = vsel %vm286, %v4327, 0
    %5255 = vmatprep.subr.bf16.mxu0 0
    %5256 = vmatpush1.bf16.xpose.msra.mxu0 0
    %5257 = vmatprep.subr.bf16.mxu0 0
    %5258 = vmatpush1.bf16.xpose.msra.mxu0 0
    %5259 = vmatprep.subr.bf16.mxu0 0
    %5260 = vmatpush1.bf16.xpose.msra.mxu0 0
    %5261 = vmatprep.subr.bf16.mxu0 0
    %5262 = vmatpush1.bf16.xpose.msra.mxu0 0
    %5263 = vmatprep.subr.bf16.mxu0 0
    %5264 = vmatpush1.bf16.xpose.msra.mxu0 0
    %5265 = vmatprep.subr.bf16.mxu0 0
    %5266 = vmatpush1.bf16.xpose.msra.mxu0 0
    %5267 = vmatprep.subr.bf16.mxu0 0
    %5268 = vmatpush1.bf16.xpose.msra.mxu0 %v5253
    %5269 = vmatprep.subr.bf16.mxu0 0
    %5270 = vmatpush1.bf16.xpose.msra.mxu0 %v5250
    %5271 = vmatprep.subr.bf16.mxu0 0
    %5272 = vmatpush2.bf16.xpose.msra.mxu0 0
    %5273 = vmatprep.subr.bf16.mxu0 0
    %5274 = vmatpush2.bf16.xpose.msra.mxu0 0
    %5275 = vmatprep.subr.bf16.mxu0 0
    %5276 = vmatpush2.bf16.xpose.msra.mxu0 0
    %5277 = vmatprep.subr.bf16.mxu0 0
    %5278 = vmatpush2.bf16.xpose.msra.mxu0 0
    %5279 = vmatprep.subr.bf16.mxu0 0
    %5280 = vmatpush2.bf16.xpose.msra.mxu0 0
    %5281 = vmatprep.subr.bf16.mxu0 0
    %5282 = vmatpush2.bf16.xpose.msra.mxu0 0
    %5283 = vmatprep.subr.bf16.mxu0 0
    %5284 = vmatpush2.bf16.xpose.msra.mxu0 0
    %5285 = vmatprep.subr.bf16.mxu0 0
    %5286 = vmatpush2.bf16.xpose.msra.mxu0 0
    %5287 = vmatprep.mubr.bf16.mxu0 0
    %5288 = vmatmul.mubr.bf16.gmra.mxu0 %v5244
    %v5289 = vpop.f32.mrf.mxu0
    %v5290 = vadd.f32 0.0, %v5289
    %v5291 = vpop.f32.mrf.mxu0
    %v5292 = vpop.f32.mrf.mxu0
    %v5293 = vadd.f32 0.0, %v5292
    %v5294 = vpop.f32.mrf.mxu0
    %5295 = vmatprep.mubr.bf16.mxu0 0
    %5296 = vmatmul.mubr.bf16.gmra.mxu0 %v5247
    %v5297 = vpop.f32.mrf.mxu0
    %v5298 = vadd.f32 0.0, %v5297
    %v5299 = vpop.f32.mrf.mxu0
    %v5300 = vpop.f32.mrf.mxu0
    %v5301 = vadd.f32 0.0, %v5300
    %v5302 = vpop.f32.mrf.mxu0
    %5303 = vdwg.mxu0
    %v5304 = vsel %vm286, %v4375, -inf
    %5305 = vmax.xlane.f32.xlu0 %v5304
    %v5306 = vpop.xlane.xlu0 %5305
    %v5307 = vsel %vm286, %v4378, -inf
    %5308 = vmax.xlane.f32.xlu0 %v5307
    %v5309 = vpop.xlane.xlu0 %5308
    %v5310 = vsel %vm286, %v4383, -inf
    %5311 = vmax.xlane.f32.xlu0 %v5310
    %v5312 = vpop.xlane.xlu0 %5311
    %v5313 = vsel %vm286, %v4386, -inf
    %5314 = vmax.xlane.f32.xlu0 %v5313
    %v5315 = vpop.xlane.xlu0 %5314
    %v5316 = vsel %vm286, %v4436, -inf
    %5317 = vmax.xlane.f32.xlu0 %v5316
    %v5318 = vpop.xlane.xlu0 %5317
    %v5319 = vsel %vm286, %v4439, -inf
    %5320 = vmax.xlane.f32.xlu0 %v5319
    %v5321 = vpop.xlane.xlu0 %5320
    %v5322 = vsel %vm286, %v4444, -inf
    %5323 = vmax.xlane.f32.xlu0 %v5322
    %v5324 = vpop.xlane.xlu0 %5323
    %v5325 = vsel %vm286, %v4447, -inf
    %5326 = vmax.xlane.f32.xlu0 %v5325
    %v5327 = vpop.xlane.xlu0 %5326
    %v5328 = vsel %vm286, %v4497, -inf
    %5329 = vmax.xlane.f32.xlu0 %v5328
    %v5330 = vpop.xlane.xlu0 %5329
    %v5331 = vsel %vm286, %v4500, -inf
    %5332 = vmax.xlane.f32.xlu0 %v5331
    %v5333 = vpop.xlane.xlu0 %5332
    %v5334 = vsel %vm286, %v4505, -inf
    %5335 = vmax.xlane.f32.xlu0 %v5334
    %v5336 = vpop.xlane.xlu0 %5335
    %v5337 = vsel %vm286, %v4508, -inf
    %5338 = vmax.xlane.f32.xlu0 %v5337
    %v5339 = vpop.xlane.xlu0 %5338
    %v5340 = vsel %vm286, %v4558, -inf
    %5341 = vmax.xlane.f32.xlu0 %v5340
    %v5342 = vpop.xlane.xlu0 %5341
    %v5343 = vsel %vm286, %v4561, -inf
    %5344 = vmax.xlane.f32.xlu0 %v5343
    %v5345 = vpop.xlane.xlu0 %5344
    %v5346 = vsel %vm286, %v4566, -inf
    %5347 = vmax.xlane.f32.xlu0 %v5346
    %v5348 = vpop.xlane.xlu0 %5347
    %v5349 = vsel %vm286, %v4569, -inf
    %5350 = vmax.xlane.f32.xlu0 %v5349
    %v5351 = vpop.xlane.xlu0 %5350
    %v5352 = vsel %vm286, %v4619, -inf
    %5353 = vmax.xlane.f32.xlu0 %v5352
    %v5354 = vpop.xlane.xlu0 %5353
    %v5355 = vsel %vm286, %v4622, -inf
    %5356 = vmax.xlane.f32.xlu0 %v5355
    %v5357 = vpop.xlane.xlu0 %5356
    %v5358 = vsel %vm286, %v4627, -inf
    %5359 = vmax.xlane.f32.xlu0 %v5358
    %v5360 = vpop.xlane.xlu0 %5359
    %v5361 = vsel %vm286, %v4630, -inf
    %5362 = vmax.xlane.f32.xlu0 %v5361
    %v5363 = vpop.xlane.xlu0 %5362
    %v5364 = vsel %vm286, %v4680, -inf
    %5365 = vmax.xlane.f32.xlu0 %v5364
    %v5366 = vpop.xlane.xlu0 %5365
    %v5367 = vsel %vm286, %v4683, -inf
    %5368 = vmax.xlane.f32.xlu0 %v5367
    %v5369 = vpop.xlane.xlu0 %5368
    %v5370 = vsel %vm286, %v4688, -inf
    %5371 = vmax.xlane.f32.xlu0 %v5370
    %v5372 = vpop.xlane.xlu0 %5371
    %v5373 = vsel %vm286, %v4691, -inf
    %5374 = vmax.xlane.f32.xlu0 %v5373
    %v5375 = vpop.xlane.xlu0 %5374
    %v5376 = vsel %vm286, %v4741, -inf
    %5377 = vmax.xlane.f32.xlu0 %v5376
    %v5378 = vpop.xlane.xlu0 %5377
    %v5379 = vsel %vm286, %v4744, -inf
    %5380 = vmax.xlane.f32.xlu0 %v5379
    %v5381 = vpop.xlane.xlu0 %5380
    %v5382 = vsel %vm286, %v4749, -inf
    %5383 = vmax.xlane.f32.xlu0 %v5382
    %v5384 = vpop.xlane.xlu0 %5383
    %v5385 = vsel %vm286, %v4752, -inf
    %5386 = vmax.xlane.f32.xlu0 %v5385
    %v5387 = vpop.xlane.xlu0 %5386
    %v5388 = vsel %vm286, %v4802, -inf
    %5389 = vmax.xlane.f32.xlu0 %v5388
    %v5390 = vpop.xlane.xlu0 %5389
    %v5391 = vsel %vm286, %v4805, -inf
    %5392 = vmax.xlane.f32.xlu0 %v5391
    %v5393 = vpop.xlane.xlu0 %5392
    %v5394 = vsel %vm286, %v4810, -inf
    %5395 = vmax.xlane.f32.xlu0 %v5394
    %v5396 = vpop.xlane.xlu0 %5395
    %v5397 = vsel %vm286, %v4813, -inf
    %5398 = vmax.xlane.f32.xlu0 %v5397
    %v5399 = vpop.xlane.xlu0 %5398
    %v5400 = vsel %vm286, %v4863, -inf
    %5401 = vmax.xlane.f32.xlu0 %v5400
    %v5402 = vpop.xlane.xlu0 %5401
    %v5403 = vsel %vm286, %v4866, -inf
    %5404 = vmax.xlane.f32.xlu0 %v5403
    %v5405 = vpop.xlane.xlu0 %5404
    %v5406 = vsel %vm286, %v4871, -inf
    %5407 = vmax.xlane.f32.xlu0 %v5406
    %v5408 = vpop.xlane.xlu0 %5407
    %v5409 = vsel %vm286, %v4874, -inf
    %5410 = vmax.xlane.f32.xlu0 %v5409
    %v5411 = vpop.xlane.xlu0 %5410
    %v5412 = vsel %vm286, %v4924, -inf
    %5413 = vmax.xlane.f32.xlu0 %v5412
    %v5414 = vpop.xlane.xlu0 %5413
    %v5415 = vsel %vm286, %v4927, -inf
    %5416 = vmax.xlane.f32.xlu0 %v5415
    %v5417 = vpop.xlane.xlu0 %5416
    %v5418 = vsel %vm286, %v4932, -inf
    %5419 = vmax.xlane.f32.xlu0 %v5418
    %v5420 = vpop.xlane.xlu0 %5419
    %v5421 = vsel %vm286, %v4935, -inf
    %5422 = vmax.xlane.f32.xlu0 %v5421
    %v5423 = vpop.xlane.xlu0 %5422
    %v5424 = vsel %vm286, %v4985, -inf
    %5425 = vmax.xlane.f32.xlu0 %v5424
    %v5426 = vpop.xlane.xlu0 %5425
    %v5427 = vsel %vm286, %v4988, -inf
    %5428 = vmax.xlane.f32.xlu0 %v5427
    %v5429 = vpop.xlane.xlu0 %5428
    %v5430 = vsel %vm286, %v4993, -inf
    %5431 = vmax.xlane.f32.xlu0 %v5430
    %v5432 = vpop.xlane.xlu0 %5431
    %v5433 = vsel %vm286, %v4996, -inf
    %5434 = vmax.xlane.f32.xlu0 %v5433
    %v5435 = vpop.xlane.xlu0 %5434
    %v5436 = vsel %vm286, %v5046, -inf
    %5437 = vmax.xlane.f32.xlu0 %v5436
    %v5438 = vpop.xlane.xlu0 %5437
    %v5439 = vsel %vm286, %v5049, -inf
    %5440 = vmax.xlane.f32.xlu0 %v5439
    %v5441 = vpop.xlane.xlu0 %5440
    %v5442 = vsel %vm286, %v5054, -inf
    %5443 = vmax.xlane.f32.xlu0 %v5442
    %v5444 = vpop.xlane.xlu0 %5443
    %v5445 = vsel %vm286, %v5057, -inf
    %5446 = vmax.xlane.f32.xlu0 %v5445
    %v5447 = vpop.xlane.xlu0 %5446
    %v5448 = vsel %vm286, %v5107, -inf
    %5449 = vmax.xlane.f32.xlu0 %v5448
    %v5450 = vpop.xlane.xlu0 %5449
    %v5451 = vsel %vm286, %v5110, -inf
    %5452 = vmax.xlane.f32.xlu0 %v5451
    %v5453 = vpop.xlane.xlu0 %5452
    %v5454 = vsel %vm286, %v5115, -inf
    %5455 = vmax.xlane.f32.xlu0 %v5454
    %v5456 = vpop.xlane.xlu0 %5455
    %v5457 = vsel %vm286, %v5118, -inf
    %5458 = vmax.xlane.f32.xlu0 %v5457
    %v5459 = vpop.xlane.xlu0 %5458
    %v5460 = vsel %vm286, %v5168, -inf
    %5461 = vmax.xlane.f32.xlu0 %v5460
    %v5462 = vpop.xlane.xlu0 %5461
    %v5463 = vsel %vm286, %v5171, -inf
    %5464 = vmax.xlane.f32.xlu0 %v5463
    %v5465 = vpop.xlane.xlu0 %5464
    %v5466 = vsel %vm286, %v5176, -inf
    %5467 = vmax.xlane.f32.xlu0 %v5466
    %v5468 = vpop.xlane.xlu0 %5467
    %v5469 = vsel %vm286, %v5179, -inf
    %5470 = vmax.xlane.f32.xlu0 %v5469
    %v5471 = vpop.xlane.xlu0 %5470
    %v5472 = vsel %vm286, %v5229, -inf
    %5473 = vmax.xlane.f32.xlu0 %v5472
    %v5474 = vpop.xlane.xlu0 %5473
    %v5475 = vsel %vm286, %v5232, -inf
    %5476 = vmax.xlane.f32.xlu0 %v5475
    %v5477 = vpop.xlane.xlu0 %5476
    %v5478 = vsel %vm286, %v5237, -inf
    %5479 = vmax.xlane.f32.xlu0 %v5478
    %v5480 = vpop.xlane.xlu0 %5479
    %v5481 = vsel %vm286, %v5240, -inf
    %5482 = vmax.xlane.f32.xlu0 %v5481
    %v5483 = vpop.xlane.xlu0 %5482
    %v5484 = vsel %vm286, %v5290, -inf
    %5485 = vmax.xlane.f32.xlu0 %v5484
    %v5486 = vpop.xlane.xlu0 %5485
    %v5487 = vsel %vm286, %v5293, -inf
    %5488 = vmax.xlane.f32.xlu0 %v5487
    %v5489 = vpop.xlane.xlu0 %5488
    %v5490 = vsel %vm286, %v5298, -inf
    %5491 = vmax.xlane.f32.xlu0 %v5490
    %v5492 = vpop.xlane.xlu0 %5491
    %v5493 = vsel %vm286, %v5301, -inf
    %5494 = vmax.xlane.f32.xlu0 %v5493
    %v5495 = vpop.xlane.xlu0 %5494
    %v5496 = vsub.f32 %v4375, %v5306
    %v5497 = vsub.f32 %v4378, %v5309
    %v5498 = vsub.f32 %v4383, %v5312
    %v5499 = vsub.f32 %v4386, %v5315
    %v5500 = vsub.f32 %v4436, %v5318
    %v5501 = vsub.f32 %v4439, %v5321
    %v5502 = vsub.f32 %v4444, %v5324
    %v5503 = vsub.f32 %v4447, %v5327
    %v5504 = vsub.f32 %v4497, %v5330
    %v5505 = vsub.f32 %v4500, %v5333
    %v5506 = vsub.f32 %v4505, %v5336
    %v5507 = vsub.f32 %v4508, %v5339
    %v5508 = vsub.f32 %v4558, %v5342
    %v5509 = vsub.f32 %v4561, %v5345
    %v5510 = vsub.f32 %v4566, %v5348
    %v5511 = vsub.f32 %v4569, %v5351
    %v5512 = vsub.f32 %v4619, %v5354
    %v5513 = vsub.f32 %v4622, %v5357
    %v5514 = vsub.f32 %v4627, %v5360
    %v5515 = vsub.f32 %v4630, %v5363
    %v5516 = vsub.f32 %v4680, %v5366
    %v5517 = vsub.f32 %v4683, %v5369
    %v5518 = vsub.f32 %v4688, %v5372
    %v5519 = vsub.f32 %v4691, %v5375
    %v5520 = vsub.f32 %v4741, %v5378
    %v5521 = vsub.f32 %v4744, %v5381
    %v5522 = vsub.f32 %v4749, %v5384
    %v5523 = vsub.f32 %v4752, %v5387
    %v5524 = vsub.f32 %v4802, %v5390
    %v5525 = vsub.f32 %v4805, %v5393
    %v5526 = vsub.f32 %v4810, %v5396
    %v5527 = vsub.f32 %v4813, %v5399
    %v5528 = vsub.f32 %v4863, %v5402
    %v5529 = vsub.f32 %v4866, %v5405
    %v5530 = vsub.f32 %v4871, %v5408
    %v5531 = vsub.f32 %v4874, %v5411
    %v5532 = vsub.f32 %v4924, %v5414
    %v5533 = vsub.f32 %v4927, %v5417
    %v5534 = vsub.f32 %v4932, %v5420
    %v5535 = vsub.f32 %v4935, %v5423
    %v5536 = vsub.f32 %v4985, %v5426
    %v5537 = vsub.f32 %v4988, %v5429
    %v5538 = vsub.f32 %v4993, %v5432
    %v5539 = vsub.f32 %v4996, %v5435
    %v5540 = vsub.f32 %v5046, %v5438
    %v5541 = vsub.f32 %v5049, %v5441
    %v5542 = vsub.f32 %v5054, %v5444
    %v5543 = vsub.f32 %v5057, %v5447
    %v5544 = vsub.f32 %v5107, %v5450
    %v5545 = vsub.f32 %v5110, %v5453
    %v5546 = vsub.f32 %v5115, %v5456
    %v5547 = vsub.f32 %v5118, %v5459
    %v5548 = vsub.f32 %v5168, %v5462
    %v5549 = vsub.f32 %v5171, %v5465
    %v5550 = vsub.f32 %v5176, %v5468
    %v5551 = vsub.f32 %v5179, %v5471
    %v5552 = vsub.f32 %v5229, %v5474
    %v5553 = vsub.f32 %v5232, %v5477
    %v5554 = vsub.f32 %v5237, %v5480
    %v5555 = vsub.f32 %v5240, %v5483
    %v5556 = vsub.f32 %v5290, %v5486
    %v5557 = vsub.f32 %v5293, %v5489
    %v5558 = vsub.f32 %v5298, %v5492
    %v5559 = vsub.f32 %v5301, %v5495
    %v5560 = vmul.f32 %v5496, 1.442695
    %v5561 = vpow.pop %v5560
    %v5562 = vmul.f32 %v5497, 1.442695
    %v5563 = vpow.pop %v5562
    %v5564 = vmul.f32 %v5498, 1.442695
    %v5565 = vpow.pop %v5564
    %v5566 = vmul.f32 %v5499, 1.442695
    %v5567 = vpow.pop %v5566
    %v5568 = vmul.f32 %v5500, 1.442695
    %v5569 = vpow.pop %v5568
    %v5570 = vmul.f32 %v5501, 1.442695
    %v5571 = vpow.pop %v5570
    %v5572 = vmul.f32 %v5502, 1.442695
    %v5573 = vpow.pop %v5572
    %v5574 = vmul.f32 %v5503, 1.442695
    %v5575 = vpow.pop %v5574
    %v5576 = vmul.f32 %v5504, 1.442695
    %v5577 = vpow.pop %v5576
    %v5578 = vmul.f32 %v5505, 1.442695
    %v5579 = vpow.pop %v5578
    %v5580 = vmul.f32 %v5506, 1.442695
    %v5581 = vpow.pop %v5580
    %v5582 = vmul.f32 %v5507, 1.442695
    %v5583 = vpow.pop %v5582
    %v5584 = vmul.f32 %v5508, 1.442695
    %v5585 = vpow.pop %v5584
    %v5586 = vmul.f32 %v5509, 1.442695
    %v5587 = vpow.pop %v5586
    %v5588 = vmul.f32 %v5510, 1.442695
    %v5589 = vpow.pop %v5588
    %v5590 = vmul.f32 %v5511, 1.442695
    %v5591 = vpow.pop %v5590
    %v5592 = vmul.f32 %v5512, 1.442695
    %v5593 = vpow.pop %v5592
    %v5594 = vmul.f32 %v5513, 1.442695
    %v5595 = vpow.pop %v5594
    %v5596 = vmul.f32 %v5514, 1.442695
    %v5597 = vpow.pop %v5596
    %v5598 = vmul.f32 %v5515, 1.442695
    %v5599 = vpow.pop %v5598
    %v5600 = vmul.f32 %v5516, 1.442695
    %v5601 = vpow.pop %v5600
    %v5602 = vmul.f32 %v5517, 1.442695
    %v5603 = vpow.pop %v5602
    %v5604 = vmul.f32 %v5518, 1.442695
    %v5605 = vpow.pop %v5604
    %v5606 = vmul.f32 %v5519, 1.442695
    %v5607 = vpow.pop %v5606
    %v5608 = vmul.f32 %v5520, 1.442695
    %v5609 = vpow.pop %v5608
    %v5610 = vmul.f32 %v5521, 1.442695
    %v5611 = vpow.pop %v5610
    %v5612 = vmul.f32 %v5522, 1.442695
    %v5613 = vpow.pop %v5612
    %v5614 = vmul.f32 %v5523, 1.442695
    %v5615 = vpow.pop %v5614
    %v5616 = vmul.f32 %v5524, 1.442695
    %v5617 = vpow.pop %v5616
    %v5618 = vmul.f32 %v5525, 1.442695
    %v5619 = vpow.pop %v5618
    %v5620 = vmul.f32 %v5526, 1.442695
    %v5621 = vpow.pop %v5620
    %v5622 = vmul.f32 %v5527, 1.442695
    %v5623 = vpow.pop %v5622
    %v5624 = vmul.f32 %v5528, 1.442695
    %v5625 = vpow.pop %v5624
    %v5626 = vmul.f32 %v5529, 1.442695
    %v5627 = vpow.pop %v5626
    %v5628 = vmul.f32 %v5530, 1.442695
    %v5629 = vpow.pop %v5628
    %v5630 = vmul.f32 %v5531, 1.442695
    %v5631 = vpow.pop %v5630
    %v5632 = vmul.f32 %v5532, 1.442695
    %v5633 = vpow.pop %v5632
    %v5634 = vmul.f32 %v5533, 1.442695
    %v5635 = vpow.pop %v5634
    %v5636 = vmul.f32 %v5534, 1.442695
    %v5637 = vpow.pop %v5636
    %v5638 = vmul.f32 %v5535, 1.442695
    %v5639 = vpow.pop %v5638
    %v5640 = vmul.f32 %v5536, 1.442695
    %v5641 = vpow.pop %v5640
    %v5642 = vmul.f32 %v5537, 1.442695
    %v5643 = vpow.pop %v5642
    %v5644 = vmul.f32 %v5538, 1.442695
    %v5645 = vpow.pop %v5644
    %v5646 = vmul.f32 %v5539, 1.442695
    %v5647 = vpow.pop %v5646
    %v5648 = vmul.f32 %v5540, 1.442695
    %v5649 = vpow.pop %v5648
    %v5650 = vmul.f32 %v5541, 1.442695
    %v5651 = vpow.pop %v5650
    %v5652 = vmul.f32 %v5542, 1.442695
    %v5653 = vpow.pop %v5652
    %v5654 = vmul.f32 %v5543, 1.442695
    %v5655 = vpow.pop %v5654
    %v5656 = vmul.f32 %v5544, 1.442695
    %v5657 = vpow.pop %v5656
    %v5658 = vmul.f32 %v5545, 1.442695
    %v5659 = vpow.pop %v5658
    %v5660 = vmul.f32 %v5546, 1.442695
    %v5661 = vpow.pop %v5660
    %v5662 = vmul.f32 %v5547, 1.442695
    %v5663 = vpow.pop %v5662
    %v5664 = vmul.f32 %v5548, 1.442695
    %v5665 = vpow.pop %v5664
    %v5666 = vmul.f32 %v5549, 1.442695
    %v5667 = vpow.pop %v5666
    %v5668 = vmul.f32 %v5550, 1.442695
    %v5669 = vpow.pop %v5668
    %v5670 = vmul.f32 %v5551, 1.442695
    %v5671 = vpow.pop %v5670
    %v5672 = vmul.f32 %v5552, 1.442695
    %v5673 = vpow.pop %v5672
    %v5674 = vmul.f32 %v5553, 1.442695
    %v5675 = vpow.pop %v5674
    %v5676 = vmul.f32 %v5554, 1.442695
    %v5677 = vpow.pop %v5676
    %v5678 = vmul.f32 %v5555, 1.442695
    %v5679 = vpow.pop %v5678
    %v5680 = vmul.f32 %v5556, 1.442695
    %v5681 = vpow.pop %v5680
    %v5682 = vmul.f32 %v5557, 1.442695
    %v5683 = vpow.pop %v5682
    %v5684 = vmul.f32 %v5558, 1.442695
    %v5685 = vpow.pop %v5684
    %v5686 = vmul.f32 %v5559, 1.442695
    %v5687 = vpow.pop %v5686
    %v5688 = vsel %vm286, %v5561, 0.0
    %5689 = vadd.xlane.f32.xlu0 %v5688
    %v5690 = vpop.xlane.xlu0 %5689
    %v5691 = vsel %vm286, %v5563, 0.0
    %5692 = vadd.xlane.f32.xlu0 %v5691
    %v5693 = vpop.xlane.xlu0 %5692
    %v5694 = vsel %vm286, %v5565, 0.0
    %5695 = vadd.xlane.f32.xlu0 %v5694
    %v5696 = vpop.xlane.xlu0 %5695
    %v5697 = vsel %vm286, %v5567, 0.0
    %5698 = vadd.xlane.f32.xlu0 %v5697
    %v5699 = vpop.xlane.xlu0 %5698
    %v5700 = vsel %vm286, %v5569, 0.0
    %5701 = vadd.xlane.f32.xlu0 %v5700
    %v5702 = vpop.xlane.xlu0 %5701
    %v5703 = vsel %vm286, %v5571, 0.0
    %5704 = vadd.xlane.f32.xlu0 %v5703
    %v5705 = vpop.xlane.xlu0 %5704
    %v5706 = vsel %vm286, %v5573, 0.0
    %5707 = vadd.xlane.f32.xlu0 %v5706
    %v5708 = vpop.xlane.xlu0 %5707
    %v5709 = vsel %vm286, %v5575, 0.0
    %5710 = vadd.xlane.f32.xlu0 %v5709
    %v5711 = vpop.xlane.xlu0 %5710
    %v5712 = vsel %vm286, %v5577, 0.0
    %5713 = vadd.xlane.f32.xlu0 %v5712
    %v5714 = vpop.xlane.xlu0 %5713
    %v5715 = vsel %vm286, %v5579, 0.0
    %5716 = vadd.xlane.f32.xlu0 %v5715
    %v5717 = vpop.xlane.xlu0 %5716
    %v5718 = vsel %vm286, %v5581, 0.0
    %5719 = vadd.xlane.f32.xlu0 %v5718
    %v5720 = vpop.xlane.xlu0 %5719
    %v5721 = vsel %vm286, %v5583, 0.0
    %5722 = vadd.xlane.f32.xlu0 %v5721
    %v5723 = vpop.xlane.xlu0 %5722
    %v5724 = vsel %vm286, %v5585, 0.0
    %5725 = vadd.xlane.f32.xlu0 %v5724
    %v5726 = vpop.xlane.xlu0 %5725
    %v5727 = vsel %vm286, %v5587, 0.0
    %5728 = vadd.xlane.f32.xlu0 %v5727
    %v5729 = vpop.xlane.xlu0 %5728
    %v5730 = vsel %vm286, %v5589, 0.0
    %5731 = vadd.xlane.f32.xlu0 %v5730
    %v5732 = vpop.xlane.xlu0 %5731
    %v5733 = vsel %vm286, %v5591, 0.0
    %5734 = vadd.xlane.f32.xlu0 %v5733
    %v5735 = vpop.xlane.xlu0 %5734
    %v5736 = vsel %vm286, %v5593, 0.0
    %5737 = vadd.xlane.f32.xlu0 %v5736
    %v5738 = vpop.xlane.xlu0 %5737
    %v5739 = vsel %vm286, %v5595, 0.0
    %5740 = vadd.xlane.f32.xlu0 %v5739
    %v5741 = vpop.xlane.xlu0 %5740
    %v5742 = vsel %vm286, %v5597, 0.0
    %5743 = vadd.xlane.f32.xlu0 %v5742
    %v5744 = vpop.xlane.xlu0 %5743
    %v5745 = vsel %vm286, %v5599, 0.0
    %5746 = vadd.xlane.f32.xlu0 %v5745
    %v5747 = vpop.xlane.xlu0 %5746
    %v5748 = vsel %vm286, %v5601, 0.0
    %5749 = vadd.xlane.f32.xlu0 %v5748
    %v5750 = vpop.xlane.xlu0 %5749
    %v5751 = vsel %vm286, %v5603, 0.0
    %5752 = vadd.xlane.f32.xlu0 %v5751
    %v5753 = vpop.xlane.xlu0 %5752
    %v5754 = vsel %vm286, %v5605, 0.0
    %5755 = vadd.xlane.f32.xlu0 %v5754
    %v5756 = vpop.xlane.xlu0 %5755
    %v5757 = vsel %vm286, %v5607, 0.0
    %5758 = vadd.xlane.f32.xlu0 %v5757
    %v5759 = vpop.xlane.xlu0 %5758
    %v5760 = vsel %vm286, %v5609, 0.0
    %5761 = vadd.xlane.f32.xlu0 %v5760
    %v5762 = vpop.xlane.xlu0 %5761
    %v5763 = vsel %vm286, %v5611, 0.0
    %5764 = vadd.xlane.f32.xlu0 %v5763
    %v5765 = vpop.xlane.xlu0 %5764
    %v5766 = vsel %vm286, %v5613, 0.0
    %5767 = vadd.xlane.f32.xlu0 %v5766
    %v5768 = vpop.xlane.xlu0 %5767
    %v5769 = vsel %vm286, %v5615, 0.0
    %5770 = vadd.xlane.f32.xlu0 %v5769
    %v5771 = vpop.xlane.xlu0 %5770
    %v5772 = vsel %vm286, %v5617, 0.0
    %5773 = vadd.xlane.f32.xlu0 %v5772
    %v5774 = vpop.xlane.xlu0 %5773
    %v5775 = vsel %vm286, %v5619, 0.0
    %5776 = vadd.xlane.f32.xlu0 %v5775
    %v5777 = vpop.xlane.xlu0 %5776
    %v5778 = vsel %vm286, %v5621, 0.0
    %5779 = vadd.xlane.f32.xlu0 %v5778
    %v5780 = vpop.xlane.xlu0 %5779
    %v5781 = vsel %vm286, %v5623, 0.0
    %5782 = vadd.xlane.f32.xlu0 %v5781
    %v5783 = vpop.xlane.xlu0 %5782
    %v5784 = vsel %vm286, %v5625, 0.0
    %5785 = vadd.xlane.f32.xlu0 %v5784
    %v5786 = vpop.xlane.xlu0 %5785
    %v5787 = vsel %vm286, %v5627, 0.0
    %5788 = vadd.xlane.f32.xlu0 %v5787
    %v5789 = vpop.xlane.xlu0 %5788
    %v5790 = vsel %vm286, %v5629, 0.0
    %5791 = vadd.xlane.f32.xlu0 %v5790
    %v5792 = vpop.xlane.xlu0 %5791
    %v5793 = vsel %vm286, %v5631, 0.0
    %5794 = vadd.xlane.f32.xlu0 %v5793
    %v5795 = vpop.xlane.xlu0 %5794
    %v5796 = vsel %vm286, %v5633, 0.0
    %5797 = vadd.xlane.f32.xlu0 %v5796
    %v5798 = vpop.xlane.xlu0 %5797
    %v5799 = vsel %vm286, %v5635, 0.0
    %5800 = vadd.xlane.f32.xlu0 %v5799
    %v5801 = vpop.xlane.xlu0 %5800
    %v5802 = vsel %vm286, %v5637, 0.0
    %5803 = vadd.xlane.f32.xlu0 %v5802
    %v5804 = vpop.xlane.xlu0 %5803
    %v5805 = vsel %vm286, %v5639, 0.0
    %5806 = vadd.xlane.f32.xlu0 %v5805
    %v5807 = vpop.xlane.xlu0 %5806
    %v5808 = vsel %vm286, %v5641, 0.0
    %5809 = vadd.xlane.f32.xlu0 %v5808
    %v5810 = vpop.xlane.xlu0 %5809
    %v5811 = vsel %vm286, %v5643, 0.0
    %5812 = vadd.xlane.f32.xlu0 %v5811
    %v5813 = vpop.xlane.xlu0 %5812
    %v5814 = vsel %vm286, %v5645, 0.0
    %5815 = vadd.xlane.f32.xlu0 %v5814
    %v5816 = vpop.xlane.xlu0 %5815
    %v5817 = vsel %vm286, %v5647, 0.0
    %5818 = vadd.xlane.f32.xlu0 %v5817
    %v5819 = vpop.xlane.xlu0 %5818
    %v5820 = vsel %vm286, %v5649, 0.0
    %5821 = vadd.xlane.f32.xlu0 %v5820
    %v5822 = vpop.xlane.xlu0 %5821
    %v5823 = vsel %vm286, %v5651, 0.0
    %5824 = vadd.xlane.f32.xlu0 %v5823
    %v5825 = vpop.xlane.xlu0 %5824
    %v5826 = vsel %vm286, %v5653, 0.0
    %5827 = vadd.xlane.f32.xlu0 %v5826
    %v5828 = vpop.xlane.xlu0 %5827
    %v5829 = vsel %vm286, %v5655, 0.0
    %5830 = vadd.xlane.f32.xlu0 %v5829
    %v5831 = vpop.xlane.xlu0 %5830
    %v5832 = vsel %vm286, %v5657, 0.0
    %5833 = vadd.xlane.f32.xlu0 %v5832
    %v5834 = vpop.xlane.xlu0 %5833
    %v5835 = vsel %vm286, %v5659, 0.0
    %5836 = vadd.xlane.f32.xlu0 %v5835
    %v5837 = vpop.xlane.xlu0 %5836
    %v5838 = vsel %vm286, %v5661, 0.0
    %5839 = vadd.xlane.f32.xlu0 %v5838
    %v5840 = vpop.xlane.xlu0 %5839
    %v5841 = vsel %vm286, %v5663, 0.0
    %5842 = vadd.xlane.f32.xlu0 %v5841
    %v5843 = vpop.xlane.xlu0 %5842
    %v5844 = vsel %vm286, %v5665, 0.0
    %5845 = vadd.xlane.f32.xlu0 %v5844
    %v5846 = vpop.xlane.xlu0 %5845
    %v5847 = vsel %vm286, %v5667, 0.0
    %5848 = vadd.xlane.f32.xlu0 %v5847
    %v5849 = vpop.xlane.xlu0 %5848
    %v5850 = vsel %vm286, %v5669, 0.0
    %5851 = vadd.xlane.f32.xlu0 %v5850
    %v5852 = vpop.xlane.xlu0 %5851
    %v5853 = vsel %vm286, %v5671, 0.0
    %5854 = vadd.xlane.f32.xlu0 %v5853
    %v5855 = vpop.xlane.xlu0 %5854
    %v5856 = vsel %vm286, %v5673, 0.0
    %5857 = vadd.xlane.f32.xlu0 %v5856
    %v5858 = vpop.xlane.xlu0 %5857
    %v5859 = vsel %vm286, %v5675, 0.0
    %5860 = vadd.xlane.f32.xlu0 %v5859
    %v5861 = vpop.xlane.xlu0 %5860
    %v5862 = vsel %vm286, %v5677, 0.0
    %5863 = vadd.xlane.f32.xlu0 %v5862
    %v5864 = vpop.xlane.xlu0 %5863
    %v5865 = vsel %vm286, %v5679, 0.0
    %5866 = vadd.xlane.f32.xlu0 %v5865
    %v5867 = vpop.xlane.xlu0 %5866
    %v5868 = vsel %vm286, %v5681, 0.0
    %5869 = vadd.xlane.f32.xlu0 %v5868
    %v5870 = vpop.xlane.xlu0 %5869
    %v5871 = vsel %vm286, %v5683, 0.0
    %5872 = vadd.xlane.f32.xlu0 %v5871
    %v5873 = vpop.xlane.xlu0 %5872
    %v5874 = vsel %vm286, %v5685, 0.0
    %5875 = vadd.xlane.f32.xlu0 %v5874
    %v5876 = vpop.xlane.xlu0 %5875
    %v5877 = vsel %vm286, %v5687, 0.0
    %5878 = vadd.xlane.f32.xlu0 %v5877
    %v5879 = vpop.xlane.xlu0 %5878
    %v5880 = vrcp.pop %v5690
    %v5881 = vrcp.pop %v5693
    %v5882 = vrcp.pop %v5696
    %v5883 = vrcp.pop %v5699
    %v5884 = vrcp.pop %v5702
    %v5885 = vrcp.pop %v5705
    %v5886 = vrcp.pop %v5708
    %v5887 = vrcp.pop %v5711
    %v5888 = vrcp.pop %v5714
    %v5889 = vrcp.pop %v5717
    %v5890 = vrcp.pop %v5720
    %v5891 = vrcp.pop %v5723
    %v5892 = vrcp.pop %v5726
    %v5893 = vrcp.pop %v5729
    %v5894 = vrcp.pop %v5732
    %v5895 = vrcp.pop %v5735
    %v5896 = vrcp.pop %v5738
    %v5897 = vrcp.pop %v5741
    %v5898 = vrcp.pop %v5744
    %v5899 = vrcp.pop %v5747
    %v5900 = vrcp.pop %v5750
    %v5901 = vrcp.pop %v5753
    %v5902 = vrcp.pop %v5756
    %v5903 = vrcp.pop %v5759
    %v5904 = vrcp.pop %v5762
    %v5905 = vrcp.pop %v5765
    %v5906 = vrcp.pop %v5768
    %v5907 = vrcp.pop %v5771
    %v5908 = vrcp.pop %v5774
    %v5909 = vrcp.pop %v5777
    %v5910 = vrcp.pop %v5780
    %v5911 = vrcp.pop %v5783
    %v5912 = vrcp.pop %v5786
    %v5913 = vrcp.pop %v5789
    %v5914 = vrcp.pop %v5792
    %v5915 = vrcp.pop %v5795
    %v5916 = vrcp.pop %v5798
    %v5917 = vrcp.pop %v5801
    %v5918 = vrcp.pop %v5804
    %v5919 = vrcp.pop %v5807
    %v5920 = vrcp.pop %v5810
    %v5921 = vrcp.pop %v5813
    %v5922 = vrcp.pop %v5816
    %v5923 = vrcp.pop %v5819
    %v5924 = vrcp.pop %v5822
    %v5925 = vrcp.pop %v5825
    %v5926 = vrcp.pop %v5828
    %v5927 = vrcp.pop %v5831
    %v5928 = vrcp.pop %v5834
    %v5929 = vrcp.pop %v5837
    %v5930 = vrcp.pop %v5840
    %v5931 = vrcp.pop %v5843
    %v5932 = vrcp.pop %v5846
    %v5933 = vrcp.pop %v5849
    %v5934 = vrcp.pop %v5852
    %v5935 = vrcp.pop %v5855
    %v5936 = vrcp.pop %v5858
    %v5937 = vrcp.pop %v5861
    %v5938 = vrcp.pop %v5864
    %v5939 = vrcp.pop %v5867
    %v5940 = vrcp.pop %v5870
    %v5941 = vrcp.pop %v5873
    %v5942 = vrcp.pop %v5876
    %v5943 = vrcp.pop %v5879
    %v5944 = vmul.f32 %v5561, %v5880
    %v5945 = vmul.f32 %v5563, %v5881
    %v5946 = vmul.f32 %v5565, %v5882
    %v5947 = vmul.f32 %v5567, %v5883
    %v5948 = vmul.f32 %v5569, %v5884
    %v5949 = vmul.f32 %v5571, %v5885
    %v5950 = vmul.f32 %v5573, %v5886
    %v5951 = vmul.f32 %v5575, %v5887
    %v5952 = vmul.f32 %v5577, %v5888
    %v5953 = vmul.f32 %v5579, %v5889
    %v5954 = vmul.f32 %v5581, %v5890
    %v5955 = vmul.f32 %v5583, %v5891
    %v5956 = vmul.f32 %v5585, %v5892
    %v5957 = vmul.f32 %v5587, %v5893
    %v5958 = vmul.f32 %v5589, %v5894
    %v5959 = vmul.f32 %v5591, %v5895
    %v5960 = vmul.f32 %v5593, %v5896
    %v5961 = vmul.f32 %v5595, %v5897
    %v5962 = vmul.f32 %v5597, %v5898
    %v5963 = vmul.f32 %v5599, %v5899
    %v5964 = vmul.f32 %v5601, %v5900
    %v5965 = vmul.f32 %v5603, %v5901
    %v5966 = vmul.f32 %v5605, %v5902
    %v5967 = vmul.f32 %v5607, %v5903
    %v5968 = vmul.f32 %v5609, %v5904
    %v5969 = vmul.f32 %v5611, %v5905
    %v5970 = vmul.f32 %v5613, %v5906
    %v5971 = vmul.f32 %v5615, %v5907
    %v5972 = vmul.f32 %v5617, %v5908
    %v5973 = vmul.f32 %v5619, %v5909
    %v5974 = vmul.f32 %v5621, %v5910
    %v5975 = vmul.f32 %v5623, %v5911
    %v5976 = vmul.f32 %v5625, %v5912
    %v5977 = vmul.f32 %v5627, %v5913
    %v5978 = vmul.f32 %v5629, %v5914
    %v5979 = vmul.f32 %v5631, %v5915
    %v5980 = vmul.f32 %v5633, %v5916
    %v5981 = vmul.f32 %v5635, %v5917
    %v5982 = vmul.f32 %v5637, %v5918
    %v5983 = vmul.f32 %v5639, %v5919
    %v5984 = vmul.f32 %v5641, %v5920
    %v5985 = vmul.f32 %v5643, %v5921
    %v5986 = vmul.f32 %v5645, %v5922
    %v5987 = vmul.f32 %v5647, %v5923
    %v5988 = vmul.f32 %v5649, %v5924
    %v5989 = vmul.f32 %v5651, %v5925
    %v5990 = vmul.f32 %v5653, %v5926
    %v5991 = vmul.f32 %v5655, %v5927
    %v5992 = vmul.f32 %v5657, %v5928
    %v5993 = vmul.f32 %v5659, %v5929
    %v5994 = vmul.f32 %v5661, %v5930
    %v5995 = vmul.f32 %v5663, %v5931
    %v5996 = vmul.f32 %v5665, %v5932
    %v5997 = vmul.f32 %v5667, %v5933
    %v5998 = vmul.f32 %v5669, %v5934
    %v5999 = vmul.f32 %v5671, %v5935
    %v6000 = vmul.f32 %v5673, %v5936
    %v6001 = vmul.f32 %v5675, %v5937
    %v6002 = vmul.f32 %v5677, %v5938
    %v6003 = vmul.f32 %v5679, %v5939
    %v6004 = vmul.f32 %v5681, %v5940
    %v6005 = vmul.f32 %v5683, %v5941
    %v6006 = vmul.f32 %v5685, %v5942
    %v6007 = vmul.f32 %v5687, %v5943
    %v6008 = vmul.f32 %v5944, %v4010
    %v6009 = vmul.f32 %v5945, %v4013
    %v6010 = vmul.f32 %v5946, %v4018
    %v6011 = vmul.f32 %v5947, %v4021
    %v6012 = vmul.f32 %v5948, %v4026
    %v6013 = vmul.f32 %v5949, %v4029
    %v6014 = vmul.f32 %v5950, %v4034
    %v6015 = vmul.f32 %v5951, %v4037
    %v6016 = vmul.f32 %v5952, %v4042
    %v6017 = vmul.f32 %v5953, %v4045
    %v6018 = vmul.f32 %v5954, %v4050
    %v6019 = vmul.f32 %v5955, %v4053
    %v6020 = vmul.f32 %v5956, %v4058
    %v6021 = vmul.f32 %v5957, %v4061
    %v6022 = vmul.f32 %v5958, %v4066
    %v6023 = vmul.f32 %v5959, %v4069
    %v6024 = vmul.f32 %v5960, %v4074
    %v6025 = vmul.f32 %v5961, %v4077
    %v6026 = vmul.f32 %v5962, %v4082
    %v6027 = vmul.f32 %v5963, %v4085
    %v6028 = vmul.f32 %v5964, %v4090
    %v6029 = vmul.f32 %v5965, %v4093
    %v6030 = vmul.f32 %v5966, %v4098
    %v6031 = vmul.f32 %v5967, %v4101
    %v6032 = vmul.f32 %v5968, %v4106
    %v6033 = vmul.f32 %v5969, %v4109
    %v6034 = vmul.f32 %v5970, %v4114
    %v6035 = vmul.f32 %v5971, %v4117
    %v6036 = vmul.f32 %v5972, %v4122
    %v6037 = vmul.f32 %v5973, %v4125
    %v6038 = vmul.f32 %v5974, %v4130
    %v6039 = vmul.f32 %v5975, %v4133
    %v6040 = vmul.f32 %v5976, %v4138
    %v6041 = vmul.f32 %v5977, %v4141
    %v6042 = vmul.f32 %v5978, %v4146
    %v6043 = vmul.f32 %v5979, %v4149
    %v6044 = vmul.f32 %v5980, %v4154
    %v6045 = vmul.f32 %v5981, %v4157
    %v6046 = vmul.f32 %v5982, %v4162
    %v6047 = vmul.f32 %v5983, %v4165
    %v6048 = vmul.f32 %v5984, %v4170
    %v6049 = vmul.f32 %v5985, %v4173
    %v6050 = vmul.f32 %v5986, %v4178
    %v6051 = vmul.f32 %v5987, %v4181
    %v6052 = vmul.f32 %v5988, %v4186
    %v6053 = vmul.f32 %v5989, %v4189
    %v6054 = vmul.f32 %v5990, %v4194
    %v6055 = vmul.f32 %v5991, %v4197
    %v6056 = vmul.f32 %v5992, %v4202
    %v6057 = vmul.f32 %v5993, %v4205
    %v6058 = vmul.f32 %v5994, %v4210
    %v6059 = vmul.f32 %v5995, %v4213
    %v6060 = vmul.f32 %v5996, %v4218
    %v6061 = vmul.f32 %v5997, %v4221
    %v6062 = vmul.f32 %v5998, %v4226
    %v6063 = vmul.f32 %v5999, %v4229
    %v6064 = vmul.f32 %v6000, %v4234
    %v6065 = vmul.f32 %v6001, %v4237
    %v6066 = vmul.f32 %v6002, %v4242
    %v6067 = vmul.f32 %v6003, %v4245
    %v6068 = vmul.f32 %v6004, %v4250
    %v6069 = vmul.f32 %v6005, %v4253
    %v6070 = vmul.f32 %v6006, %v4258
    %v6071 = vmul.f32 %v6007, %v4261
    %v6072 = vpack.c.bf16 %v6009, %v6008
    %v6073 = vpack.c.bf16 %v6011, %v6010
    %v6074 = vpack.c.bf16 %v6013, %v6012
    %v6075 = vpack.c.bf16 %v6015, %v6014
    %v6076 = vpack.c.bf16 %v6017, %v6016
    %v6077 = vpack.c.bf16 %v6019, %v6018
    %v6078 = vpack.c.bf16 %v6021, %v6020
    %v6079 = vpack.c.bf16 %v6023, %v6022
    %v6080 = vpack.c.bf16 %v6025, %v6024
    %v6081 = vpack.c.bf16 %v6027, %v6026
    %v6082 = vpack.c.bf16 %v6029, %v6028
    %v6083 = vpack.c.bf16 %v6031, %v6030
    %v6084 = vpack.c.bf16 %v6033, %v6032
    %v6085 = vpack.c.bf16 %v6035, %v6034
    %v6086 = vpack.c.bf16 %v6037, %v6036
    %v6087 = vpack.c.bf16 %v6039, %v6038
    %v6088 = vpack.c.bf16 %v6041, %v6040
    %v6089 = vpack.c.bf16 %v6043, %v6042
    %v6090 = vpack.c.bf16 %v6045, %v6044
    %v6091 = vpack.c.bf16 %v6047, %v6046
    %v6092 = vpack.c.bf16 %v6049, %v6048
    %v6093 = vpack.c.bf16 %v6051, %v6050
    %v6094 = vpack.c.bf16 %v6053, %v6052
    %v6095 = vpack.c.bf16 %v6055, %v6054
    %v6096 = vpack.c.bf16 %v6057, %v6056
    %v6097 = vpack.c.bf16 %v6059, %v6058
    %v6098 = vpack.c.bf16 %v6061, %v6060
    %v6099 = vpack.c.bf16 %v6063, %v6062
    %v6100 = vpack.c.bf16 %v6065, %v6064
    %v6101 = vpack.c.bf16 %v6067, %v6066
    %v6102 = vpack.c.bf16 %v6069, %v6068
    %v6103 = vpack.c.bf16 %v6071, %v6070
    %v6104 = vld [vmem:[#allocation6 + $0x18] sm:$0xf]
    %v6105 = vld [vmem:[#allocation6 + $0x34] sm:$0xf]
    %v6106 = vld [vmem:[#allocation6 + $0x50] sm:$0xf]
    %v6107 = vld [vmem:[#allocation6 + $0x6c] sm:$0xf]
    %v6108 = vld [vmem:[#allocation7 + $0x6] sm:$0x1]
    %v6110 = vlaneseq
    %v6111 = vshrl.u32 %v6110, 7
    %v6112 = vsub.s32 0, %v6111
    %v6113 = vrot.slane %v6108, %v6112
    %v6119 = vunpack.c.l.b16 %v6104
    %v6120 = vunpack.c.l.b16 %v6105
    %v6121 = vunpack.c.l.b16 %v6106
    %v6122 = vunpack.c.l.b16 %v6107
    %v6123 = vpack.c.b16 %v6120, %v6119
    %v6124 = vpack.c.b16 %v6122, %v6121
    %v6128 = vsel %vm286, %v6072, 0
    %v6131 = vsel %vm286, %v6073, 0
    %v6134 = vsel %vm286, %v6074, 0
    %v6137 = vsel %vm286, %v6075, 0
    %v6140 = vsel %vm286, %v6076, 0
    %v6143 = vsel %vm286, %v6077, 0
    %v6146 = vsel %vm286, %v6078, 0
    %v6149 = vsel %vm286, %v6079, 0
    %v6152 = vsel %vm286, %v6080, 0
    %v6155 = vsel %vm286, %v6081, 0
    %v6158 = vsel %vm286, %v6082, 0
    %v6161 = vsel %vm286, %v6083, 0
    %v6164 = vsel %vm286, %v6084, 0
    %v6167 = vsel %vm286, %v6085, 0
    %v6170 = vsel %vm286, %v6086, 0
    %v6173 = vsel %vm286, %v6087, 0
    %v6176 = vsel %vm286, %v6088, 0
    %v6179 = vsel %vm286, %v6089, 0
    %v6182 = vsel %vm286, %v6090, 0
    %v6185 = vsel %vm286, %v6091, 0
    %v6188 = vsel %vm286, %v6092, 0
    %v6191 = vsel %vm286, %v6093, 0
    %v6194 = vsel %vm286, %v6094, 0
    %v6197 = vsel %vm286, %v6095, 0
    %v6200 = vsel %vm286, %v6096, 0
    %v6203 = vsel %vm286, %v6097, 0
    %v6206 = vsel %vm286, %v6098, 0
    %v6209 = vsel %vm286, %v6099, 0
    %v6212 = vsel %vm286, %v6100, 0
    %v6215 = vsel %vm286, %v6101, 0
    %v6218 = vsel %vm286, %v6102, 0
    %v6221 = vsel %vm286, %v6103, 0
    %6223 = vmatprep.subr.bf16.mxu0 0
    %6224 = vmatpush1.bf16.msra.mxu0 0
    %6225 = vmatprep.subr.bf16.mxu0 0
    %6226 = vmatpush1.bf16.msra.mxu0 0
    %6227 = vmatprep.subr.bf16.mxu0 0
    %6228 = vmatpush1.bf16.msra.mxu0 0
    %6229 = vmatprep.subr.bf16.mxu0 0
    %6230 = vmatpush1.bf16.msra.mxu0 0
    %6231 = vmatprep.subr.bf16.mxu0 0
    %6232 = vmatpush1.bf16.msra.mxu0 0
    %6233 = vmatprep.subr.bf16.mxu0 0
    %6234 = vmatpush1.bf16.msra.mxu0 0
    %6235 = vmatprep.subr.bf16.mxu0 0
    %6236 = vmatpush1.bf16.msra.mxu0 %v6124
    %6237 = vmatprep.subr.bf16.mxu0 0
    %6238 = vmatpush1.bf16.msra.mxu0 %v6123
    %6239 = vmatprep.subr.bf16.mxu0 0
    %6240 = vmatpush2.bf16.msra.mxu0 0
    %6241 = vmatprep.subr.bf16.mxu0 0
    %6242 = vmatpush2.bf16.msra.mxu0 0
    %6243 = vmatprep.subr.bf16.mxu0 0
    %6244 = vmatpush2.bf16.msra.mxu0 0
    %6245 = vmatprep.subr.bf16.mxu0 0
    %6246 = vmatpush2.bf16.msra.mxu0 0
    %6247 = vmatprep.subr.bf16.mxu0 0
    %6248 = vmatpush2.bf16.msra.mxu0 0
    %6249 = vmatprep.subr.bf16.mxu0 0
    %6250 = vmatpush2.bf16.msra.mxu0 0
    %6251 = vmatprep.subr.bf16.mxu0 0
    %6252 = vmatpush2.bf16.msra.mxu0 0
    %6253 = vmatprep.subr.bf16.mxu0 0
    %6254 = vmatpush2.bf16.msra.mxu0 0
    %6255 = vmatprep.mubr.bf16.mxu0 0
    %6256 = vmatmul.mubr.bf16.gmra.mxu0 %v6128
    %v6257 = vpop.f32.mrf.mxu0
    %v6258 = vadd.f32 %v6113, %v6257
    %v6259 = vpop.f32.mrf.mxu0
    %v6260 = vpop.f32.mrf.mxu0
    %v6261 = vadd.f32 %v6113, %v6260
    %v6262 = vpop.f32.mrf.mxu0
    %6263 = vmatprep.mubr.bf16.mxu0 0
    %6264 = vmatmul.mubr.bf16.gmra.mxu0 %v6131
    %v6265 = vpop.f32.mrf.mxu0
    %v6266 = vadd.f32 %v6113, %v6265
    %v6267 = vpop.f32.mrf.mxu0
    %v6268 = vpop.f32.mrf.mxu0
    %v6269 = vadd.f32 %v6113, %v6268
    %v6270 = vpop.f32.mrf.mxu0
    %6271 = vmatprep.mubr.bf16.mxu0 0
    %6272 = vmatmul.mubr.bf16.gmra.mxu0 %v6134
    %v6273 = vpop.f32.mrf.mxu0
    %v6274 = vadd.f32 %v6113, %v6273
    %v6275 = vpop.f32.mrf.mxu0
    %v6276 = vpop.f32.mrf.mxu0
    %v6277 = vadd.f32 %v6113, %v6276
    %v6278 = vpop.f32.mrf.mxu0
    %6279 = vmatprep.mubr.bf16.mxu0 0
    %6280 = vmatmul.mubr.bf16.gmra.mxu0 %v6137
    %v6281 = vpop.f32.mrf.mxu0
    %v6282 = vadd.f32 %v6113, %v6281
    %v6283 = vpop.f32.mrf.mxu0
    %v6284 = vpop.f32.mrf.mxu0
    %v6285 = vadd.f32 %v6113, %v6284
    %v6286 = vpop.f32.mrf.mxu0
    %6287 = vmatprep.mubr.bf16.mxu0 0
    %6288 = vmatmul.mubr.bf16.gmra.mxu0 %v6140
    %v6289 = vpop.f32.mrf.mxu0
    %v6290 = vadd.f32 %v6113, %v6289
    %v6291 = vpop.f32.mrf.mxu0
    %v6292 = vpop.f32.mrf.mxu0
    %v6293 = vadd.f32 %v6113, %v6292
    %v6294 = vpop.f32.mrf.mxu0
    %6295 = vmatprep.mubr.bf16.mxu0 0
    %6296 = vmatmul.mubr.bf16.gmra.mxu0 %v6143
    %v6297 = vpop.f32.mrf.mxu0
    %v6298 = vadd.f32 %v6113, %v6297
    %v6299 = vpop.f32.mrf.mxu0
    %v6300 = vpop.f32.mrf.mxu0
    %v6301 = vadd.f32 %v6113, %v6300
    %v6302 = vpop.f32.mrf.mxu0
    %6303 = vmatprep.mubr.bf16.mxu0 0
    %6304 = vmatmul.mubr.bf16.gmra.mxu0 %v6146
    %v6305 = vpop.f32.mrf.mxu0
    %v6306 = vadd.f32 %v6113, %v6305
    %v6307 = vpop.f32.mrf.mxu0
    %v6308 = vpop.f32.mrf.mxu0
    %v6309 = vadd.f32 %v6113, %v6308
    %v6310 = vpop.f32.mrf.mxu0
    %6311 = vmatprep.mubr.bf16.mxu0 0
    %6312 = vmatmul.mubr.bf16.gmra.mxu0 %v6149
    %v6313 = vpop.f32.mrf.mxu0
    %v6314 = vadd.f32 %v6113, %v6313
    %v6315 = vpop.f32.mrf.mxu0
    %v6316 = vpop.f32.mrf.mxu0
    %v6317 = vadd.f32 %v6113, %v6316
    %v6318 = vpop.f32.mrf.mxu0
    %6319 = vmatprep.mubr.bf16.mxu0 0
    %6320 = vmatmul.mubr.bf16.gmra.mxu0 %v6152
    %v6321 = vpop.f32.mrf.mxu0
    %v6322 = vadd.f32 %v6113, %v6321
    %v6323 = vpop.f32.mrf.mxu0
    %v6324 = vpop.f32.mrf.mxu0
    %v6325 = vadd.f32 %v6113, %v6324
    %v6326 = vpop.f32.mrf.mxu0
    %6327 = vmatprep.mubr.bf16.mxu0 0
    %6328 = vmatmul.mubr.bf16.gmra.mxu0 %v6155
    %v6329 = vpop.f32.mrf.mxu0
    %v6330 = vadd.f32 %v6113, %v6329
    %v6331 = vpop.f32.mrf.mxu0
    %v6332 = vpop.f32.mrf.mxu0
    %v6333 = vadd.f32 %v6113, %v6332
    %v6334 = vpop.f32.mrf.mxu0
    %6335 = vmatprep.mubr.bf16.mxu0 0
    %6336 = vmatmul.mubr.bf16.gmra.mxu0 %v6158
    %v6337 = vpop.f32.mrf.mxu0
    %v6338 = vadd.f32 %v6113, %v6337
    %v6339 = vpop.f32.mrf.mxu0
    %v6340 = vpop.f32.mrf.mxu0
    %v6341 = vadd.f32 %v6113, %v6340
    %v6342 = vpop.f32.mrf.mxu0
    %6343 = vmatprep.mubr.bf16.mxu0 0
    %6344 = vmatmul.mubr.bf16.gmra.mxu0 %v6161
    %v6345 = vpop.f32.mrf.mxu0
    %v6346 = vadd.f32 %v6113, %v6345
    %v6347 = vpop.f32.mrf.mxu0
    %v6348 = vpop.f32.mrf.mxu0
    %v6349 = vadd.f32 %v6113, %v6348
    %v6350 = vpop.f32.mrf.mxu0
    %6351 = vmatprep.mubr.bf16.mxu0 0
    %6352 = vmatmul.mubr.bf16.gmra.mxu0 %v6164
    %v6353 = vpop.f32.mrf.mxu0
    %v6354 = vadd.f32 %v6113, %v6353
    %v6355 = vpop.f32.mrf.mxu0
    %v6356 = vpop.f32.mrf.mxu0
    %v6357 = vadd.f32 %v6113, %v6356
    %v6358 = vpop.f32.mrf.mxu0
    %6359 = vmatprep.mubr.bf16.mxu0 0
    %6360 = vmatmul.mubr.bf16.gmra.mxu0 %v6167
    %v6361 = vpop.f32.mrf.mxu0
    %v6362 = vadd.f32 %v6113, %v6361
    %v6363 = vpop.f32.mrf.mxu0
    %v6364 = vpop.f32.mrf.mxu0
    %v6365 = vadd.f32 %v6113, %v6364
    %v6366 = vpop.f32.mrf.mxu0
    %6367 = vmatprep.mubr.bf16.mxu0 0
    %6368 = vmatmul.mubr.bf16.gmra.mxu0 %v6170
    %v6369 = vpop.f32.mrf.mxu0
    %v6370 = vadd.f32 %v6113, %v6369
    %v6371 = vpop.f32.mrf.mxu0
    %v6372 = vpop.f32.mrf.mxu0
    %v6373 = vadd.f32 %v6113, %v6372
    %v6374 = vpop.f32.mrf.mxu0
    %6375 = vmatprep.mubr.bf16.mxu0 0
    %6376 = vmatmul.mubr.bf16.gmra.mxu0 %v6173
    %v6377 = vpop.f32.mrf.mxu0
    %v6378 = vadd.f32 %v6113, %v6377
    %v6379 = vpop.f32.mrf.mxu0
    %v6380 = vpop.f32.mrf.mxu0
    %v6381 = vadd.f32 %v6113, %v6380
    %v6382 = vpop.f32.mrf.mxu0
    %6383 = vmatprep.mubr.bf16.mxu0 0
    %6384 = vmatmul.mubr.bf16.gmra.mxu0 %v6176
    %v6385 = vpop.f32.mrf.mxu0
    %v6386 = vadd.f32 %v6113, %v6385
    %v6387 = vpop.f32.mrf.mxu0
    %v6388 = vpop.f32.mrf.mxu0
    %v6389 = vadd.f32 %v6113, %v6388
    %v6390 = vpop.f32.mrf.mxu0
    %6391 = vmatprep.mubr.bf16.mxu0 0
    %6392 = vmatmul.mubr.bf16.gmra.mxu0 %v6179
    %v6393 = vpop.f32.mrf.mxu0
    %v6394 = vadd.f32 %v6113, %v6393
    %v6395 = vpop.f32.mrf.mxu0
    %v6396 = vpop.f32.mrf.mxu0
    %v6397 = vadd.f32 %v6113, %v6396
    %v6398 = vpop.f32.mrf.mxu0
    %6399 = vmatprep.mubr.bf16.mxu0 0
    %6400 = vmatmul.mubr.bf16.gmra.mxu0 %v6182
    %v6401 = vpop.f32.mrf.mxu0
    %v6402 = vadd.f32 %v6113, %v6401
    %v6403 = vpop.f32.mrf.mxu0
    %v6404 = vpop.f32.mrf.mxu0
    %v6405 = vadd.f32 %v6113, %v6404
    %v6406 = vpop.f32.mrf.mxu0
    %6407 = vmatprep.mubr.bf16.mxu0 0
    %6408 = vmatmul.mubr.bf16.gmra.mxu0 %v6185
    %v6409 = vpop.f32.mrf.mxu0
    %v6410 = vadd.f32 %v6113, %v6409
    %v6411 = vpop.f32.mrf.mxu0
    %v6412 = vpop.f32.mrf.mxu0
    %v6413 = vadd.f32 %v6113, %v6412
    %v6414 = vpop.f32.mrf.mxu0
    %6415 = vmatprep.mubr.bf16.mxu0 0
    %6416 = vmatmul.mubr.bf16.gmra.mxu0 %v6188
    %v6417 = vpop.f32.mrf.mxu0
    %v6418 = vadd.f32 %v6113, %v6417
    %v6419 = vpop.f32.mrf.mxu0
    %v6420 = vpop.f32.mrf.mxu0
    %v6421 = vadd.f32 %v6113, %v6420
    %v6422 = vpop.f32.mrf.mxu0
    %6423 = vmatprep.mubr.bf16.mxu0 0
    %6424 = vmatmul.mubr.bf16.gmra.mxu0 %v6191
    %v6425 = vpop.f32.mrf.mxu0
    %v6426 = vadd.f32 %v6113, %v6425
    %v6427 = vpop.f32.mrf.mxu0
    %v6428 = vpop.f32.mrf.mxu0
    %v6429 = vadd.f32 %v6113, %v6428
    %v6430 = vpop.f32.mrf.mxu0
    %6431 = vmatprep.mubr.bf16.mxu0 0
    %6432 = vmatmul.mubr.bf16.gmra.mxu0 %v6194
    %v6433 = vpop.f32.mrf.mxu0
    %v6434 = vadd.f32 %v6113, %v6433
    %v6435 = vpop.f32.mrf.mxu0
    %v6436 = vpop.f32.mrf.mxu0
    %v6437 = vadd.f32 %v6113, %v6436
    %v6438 = vpop.f32.mrf.mxu0
    %6439 = vmatprep.mubr.bf16.mxu0 0
    %6440 = vmatmul.mubr.bf16.gmra.mxu0 %v6197
    %v6441 = vpop.f32.mrf.mxu0
    %v6442 = vadd.f32 %v6113, %v6441
    %v6443 = vpop.f32.mrf.mxu0
    %v6444 = vpop.f32.mrf.mxu0
    %v6445 = vadd.f32 %v6113, %v6444
    %v6446 = vpop.f32.mrf.mxu0
    %6447 = vmatprep.mubr.bf16.mxu0 0
    %6448 = vmatmul.mubr.bf16.gmra.mxu0 %v6200
    %v6449 = vpop.f32.mrf.mxu0
    %v6450 = vadd.f32 %v6113, %v6449
    %v6451 = vpop.f32.mrf.mxu0
    %v6452 = vpop.f32.mrf.mxu0
    %v6453 = vadd.f32 %v6113, %v6452
    %v6454 = vpop.f32.mrf.mxu0
    %6455 = vmatprep.mubr.bf16.mxu0 0
    %6456 = vmatmul.mubr.bf16.gmra.mxu0 %v6203
    %v6457 = vpop.f32.mrf.mxu0
    %v6458 = vadd.f32 %v6113, %v6457
    %v6459 = vpop.f32.mrf.mxu0
    %v6460 = vpop.f32.mrf.mxu0
    %v6461 = vadd.f32 %v6113, %v6460
    %v6462 = vpop.f32.mrf.mxu0
    %6463 = vmatprep.mubr.bf16.mxu0 0
    %6464 = vmatmul.mubr.bf16.gmra.mxu0 %v6206
    %v6465 = vpop.f32.mrf.mxu0
    %v6466 = vadd.f32 %v6113, %v6465
    %v6467 = vpop.f32.mrf.mxu0
    %v6468 = vpop.f32.mrf.mxu0
    %v6469 = vadd.f32 %v6113, %v6468
    %v6470 = vpop.f32.mrf.mxu0
    %6471 = vmatprep.mubr.bf16.mxu0 0
    %6472 = vmatmul.mubr.bf16.gmra.mxu0 %v6209
    %v6473 = vpop.f32.mrf.mxu0
    %v6474 = vadd.f32 %v6113, %v6473
    %v6475 = vpop.f32.mrf.mxu0
    %v6476 = vpop.f32.mrf.mxu0
    %v6477 = vadd.f32 %v6113, %v6476
    %v6478 = vpop.f32.mrf.mxu0
    %6479 = vmatprep.mubr.bf16.mxu0 0
    %6480 = vmatmul.mubr.bf16.gmra.mxu0 %v6212
    %v6481 = vpop.f32.mrf.mxu0
    %v6482 = vadd.f32 %v6113, %v6481
    %v6483 = vpop.f32.mrf.mxu0
    %v6484 = vpop.f32.mrf.mxu0
    %v6485 = vadd.f32 %v6113, %v6484
    %v6486 = vpop.f32.mrf.mxu0
    %6487 = vmatprep.mubr.bf16.mxu0 0
    %6488 = vmatmul.mubr.bf16.gmra.mxu0 %v6215
    %v6489 = vpop.f32.mrf.mxu0
    %v6490 = vadd.f32 %v6113, %v6489
    %v6491 = vpop.f32.mrf.mxu0
    %v6492 = vpop.f32.mrf.mxu0
    %v6493 = vadd.f32 %v6113, %v6492
    %v6494 = vpop.f32.mrf.mxu0
    %6495 = vmatprep.mubr.bf16.mxu0 0
    %6496 = vmatmul.mubr.bf16.gmra.mxu0 %v6218
    %v6497 = vpop.f32.mrf.mxu0
    %v6498 = vadd.f32 %v6113, %v6497
    %v6499 = vpop.f32.mrf.mxu0
    %v6500 = vpop.f32.mrf.mxu0
    %v6501 = vadd.f32 %v6113, %v6500
    %v6502 = vpop.f32.mrf.mxu0
    %6503 = vmatprep.mubr.bf16.mxu0 0
    %6504 = vmatmul.mubr.bf16.gmra.mxu0 %v6221
    %v6505 = vpop.f32.mrf.mxu0
    %v6506 = vadd.f32 %v6113, %v6505
    %v6507 = vpop.f32.mrf.mxu0
    %v6508 = vpop.f32.mrf.mxu0
    %v6509 = vadd.f32 %v6113, %v6508
    %v6510 = vpop.f32.mrf.mxu0
    %6511 = vdwg.mxu0
    %v6512 = vmax.f32 %v6258, 0.0
    %v6513 = vmax.f32 %v6261, 0.0
    %v6514 = vmax.f32 %v6266, 0.0
    %v6515 = vmax.f32 %v6269, 0.0
    %v6516 = vmax.f32 %v6274, 0.0
    %v6517 = vmax.f32 %v6277, 0.0
    %v6518 = vmax.f32 %v6282, 0.0
    %v6519 = vmax.f32 %v6285, 0.0
    %v6520 = vmax.f32 %v6290, 0.0
    %v6521 = vmax.f32 %v6293, 0.0
    %v6522 = vmax.f32 %v6298, 0.0
    %v6523 = vmax.f32 %v6301, 0.0
    %v6524 = vmax.f32 %v6306, 0.0
    %v6525 = vmax.f32 %v6309, 0.0
    %v6526 = vmax.f32 %v6314, 0.0
    %v6527 = vmax.f32 %v6317, 0.0
    %v6528 = vmax.f32 %v6322, 0.0
    %v6529 = vmax.f32 %v6325, 0.0
    %v6530 = vmax.f32 %v6330, 0.0
    %v6531 = vmax.f32 %v6333, 0.0
    %v6532 = vmax.f32 %v6338, 0.0
    %v6533 = vmax.f32 %v6341, 0.0
    %v6534 = vmax.f32 %v6346, 0.0
    %v6535 = vmax.f32 %v6349, 0.0
    %v6536 = vmax.f32 %v6354, 0.0
    %v6537 = vmax.f32 %v6357, 0.0
    %v6538 = vmax.f32 %v6362, 0.0
    %v6539 = vmax.f32 %v6365, 0.0
    %v6540 = vmax.f32 %v6370, 0.0
    %v6541 = vmax.f32 %v6373, 0.0
    %v6542 = vmax.f32 %v6378, 0.0
    %v6543 = vmax.f32 %v6381, 0.0
    %v6544 = vmax.f32 %v6386, 0.0
    %v6545 = vmax.f32 %v6389, 0.0
    %v6546 = vmax.f32 %v6394, 0.0
    %v6547 = vmax.f32 %v6397, 0.0
    %v6548 = vmax.f32 %v6402, 0.0
    %v6549 = vmax.f32 %v6405, 0.0
    %v6550 = vmax.f32 %v6410, 0.0
    %v6551 = vmax.f32 %v6413, 0.0
    %v6552 = vmax.f32 %v6418, 0.0
    %v6553 = vmax.f32 %v6421, 0.0
    %v6554 = vmax.f32 %v6426, 0.0
    %v6555 = vmax.f32 %v6429, 0.0
    %v6556 = vmax.f32 %v6434, 0.0
    %v6557 = vmax.f32 %v6437, 0.0
    %v6558 = vmax.f32 %v6442, 0.0
    %v6559 = vmax.f32 %v6445, 0.0
    %v6560 = vmax.f32 %v6450, 0.0
    %v6561 = vmax.f32 %v6453, 0.0
    %v6562 = vmax.f32 %v6458, 0.0
    %v6563 = vmax.f32 %v6461, 0.0
    %v6564 = vmax.f32 %v6466, 0.0
    %v6565 = vmax.f32 %v6469, 0.0
    %v6566 = vmax.f32 %v6474, 0.0
    %v6567 = vmax.f32 %v6477, 0.0
    %v6568 = vmax.f32 %v6482, 0.0
    %v6569 = vmax.f32 %v6485, 0.0
    %v6570 = vmax.f32 %v6490, 0.0
    %v6571 = vmax.f32 %v6493, 0.0
    %v6572 = vmax.f32 %v6498, 0.0
    %v6573 = vmax.f32 %v6501, 0.0
    %v6574 = vmax.f32 %v6506, 0.0
    %v6575 = vmax.f32 %v6509, 0.0
    %vm6576 = vcmask 130048
    %6577 = vst.msk [vmem:[%s4] sm:$0xff] %vm6576, %v6512
    %6578 = vst.msk [vmem:[%s4 + $0x8] sm:$0xff] %vm6576, %v6513
    %6579 = vst.msk [vmem:[%s4 + $0x10] sm:$0xff] %vm6576, %v6514
    %6580 = vst.msk [vmem:[%s4 + $0x18] sm:$0xff] %vm6576, %v6515
    %6581 = vst.msk [vmem:[%s4 + $0x20] sm:$0xff] %vm6576, %v6516
    %6582 = vst.msk [vmem:[%s4 + $0x28] sm:$0xff] %vm6576, %v6517
    %6583 = vst.msk [vmem:[%s4 + $0x30] sm:$0xff] %vm6576, %v6518
    %6584 = vst.msk [vmem:[%s4 + $0x38] sm:$0xff] %vm6576, %v6519
    %6585 = vst.msk [vmem:[%s4 + $0x40] sm:$0xff] %vm6576, %v6520
    %6586 = vst.msk [vmem:[%s4 + $0x48] sm:$0xff] %vm6576, %v6521
    %6587 = vst.msk [vmem:[%s4 + $0x50] sm:$0xff] %vm6576, %v6522
    %6588 = vst.msk [vmem:[%s4 + $0x58] sm:$0xff] %vm6576, %v6523
    %6589 = vst.msk [vmem:[%s4 + $0x60] sm:$0xff] %vm6576, %v6524
    %6590 = vst.msk [vmem:[%s4 + $0x68] sm:$0xff] %vm6576, %v6525
    %6591 = vst.msk [vmem:[%s4 + $0x70] sm:$0xff] %vm6576, %v6526
    %6592 = vst.msk [vmem:[%s4 + $0x78] sm:$0xff] %vm6576, %v6527
    %6593 = vst.msk [vmem:[%s4 + $0x80] sm:$0xff] %vm6576, %v6528
    %6594 = vst.msk [vmem:[%s4 + $0x88] sm:$0xff] %vm6576, %v6529
    %6595 = vst.msk [vmem:[%s4 + $0x90] sm:$0xff] %vm6576, %v6530
    %6596 = vst.msk [vmem:[%s4 + $0x98] sm:$0xff] %vm6576, %v6531
    %6597 = vst.msk [vmem:[%s4 + $0xa0] sm:$0xff] %vm6576, %v6532
    %6598 = vst.msk [vmem:[%s4 + $0xa8] sm:$0xff] %vm6576, %v6533
    %6599 = vst.msk [vmem:[%s4 + $0xb0] sm:$0xff] %vm6576, %v6534
    %6600 = vst.msk [vmem:[%s4 + $0xb8] sm:$0xff] %vm6576, %v6535
    %6601 = vst.msk [vmem:[%s4 + $0xc0] sm:$0xff] %vm6576, %v6536
    %6602 = vst.msk [vmem:[%s4 + $0xc8] sm:$0xff] %vm6576, %v6537
    %6603 = vst.msk [vmem:[%s4 + $0xd0] sm:$0xff] %vm6576, %v6538
    %6604 = vst.msk [vmem:[%s4 + $0xd8] sm:$0xff] %vm6576, %v6539
    %6605 = vst.msk [vmem:[%s4 + $0xe0] sm:$0xff] %vm6576, %v6540
    %6606 = vst.msk [vmem:[%s4 + $0xe8] sm:$0xff] %vm6576, %v6541
    %6607 = vst.msk [vmem:[%s4 + $0xf0] sm:$0xff] %vm6576, %v6542
    %6608 = vst.msk [vmem:[%s4 + $0xf8] sm:$0xff] %vm6576, %v6543
    %6609 = vst.msk [vmem:[%s4 + $0x100] sm:$0xff] %vm6576, %v6544
    %6610 = vst.msk [vmem:[%s4 + $0x108] sm:$0xff] %vm6576, %v6545
    %6611 = vst.msk [vmem:[%s4 + $0x110] sm:$0xff] %vm6576, %v6546
    %6612 = vst.msk [vmem:[%s4 + $0x118] sm:$0xff] %vm6576, %v6547
    %6613 = vst.msk [vmem:[%s4 + $0x120] sm:$0xff] %vm6576, %v6548
    %6614 = vst.msk [vmem:[%s4 + $0x128] sm:$0xff] %vm6576, %v6549
    %6615 = vst.msk [vmem:[%s4 + $0x130] sm:$0xff] %vm6576, %v6550
    %6616 = vst.msk [vmem:[%s4 + $0x138] sm:$0xff] %vm6576, %v6551
    %6617 = vst.msk [vmem:[%s4 + $0x140] sm:$0xff] %vm6576, %v6552
    %6618 = vst.msk [vmem:[%s4 + $0x148] sm:$0xff] %vm6576, %v6553
    %6619 = vst.msk [vmem:[%s4 + $0x150] sm:$0xff] %vm6576, %v6554
    %6620 = vst.msk [vmem:[%s4 + $0x158] sm:$0xff] %vm6576, %v6555
    %6621 = vst.msk [vmem:[%s4 + $0x160] sm:$0xff] %vm6576, %v6556
    %6622 = vst.msk [vmem:[%s4 + $0x168] sm:$0xff] %vm6576, %v6557
    %6623 = vst.msk [vmem:[%s4 + $0x170] sm:$0xff] %vm6576, %v6558
    %6624 = vst.msk [vmem:[%s4 + $0x178] sm:$0xff] %vm6576, %v6559
    %6625 = vst.msk [vmem:[%s4 + $0x180] sm:$0xff] %vm6576, %v6560
    %6626 = vst.msk [vmem:[%s4 + $0x188] sm:$0xff] %vm6576, %v6561
    %6627 = vst.msk [vmem:[%s4 + $0x190] sm:$0xff] %vm6576, %v6562
    %6628 = vst.msk [vmem:[%s4 + $0x198] sm:$0xff] %vm6576, %v6563
    %6629 = vst.msk [vmem:[%s4 + $0x1a0] sm:$0xff] %vm6576, %v6564
    %6630 = vst.msk [vmem:[%s4 + $0x1a8] sm:$0xff] %vm6576, %v6565
    %6631 = vst.msk [vmem:[%s4 + $0x1b0] sm:$0xff] %vm6576, %v6566
    %6632 = vst.msk [vmem:[%s4 + $0x1b8] sm:$0xff] %vm6576, %v6567
    %6633 = vst.msk [vmem:[%s4 + $0x1c0] sm:$0xff] %vm6576, %v6568
    %6634 = vst.msk [vmem:[%s4 + $0x1c8] sm:$0xff] %vm6576, %v6569
    %6635 = vst.msk [vmem:[%s4 + $0x1d0] sm:$0xff] %vm6576, %v6570
    %6636 = vst.msk [vmem:[%s4 + $0x1d8] sm:$0xff] %vm6576, %v6571
    %6637 = vst.msk [vmem:[%s4 + $0x1e0] sm:$0xff] %vm6576, %v6572
    %6638 = vst.msk [vmem:[%s4 + $0x1e8] sm:$0xff] %vm6576, %v6573
    %6639 = vst.msk [vmem:[%s4 + $0x1f0] sm:$0xff] %vm6576, %v6574
    %6640 = vst.msk [vmem:[%s4 + $0x1f8] sm:$0xff] %vm6576, %v6575
    // Predicated region
    $region34: #{tpu_custom_call.1} parent=1 // pred_check
      _
    $region35: #{tpu_custom_call.1} parent=1 // pred_check_branch
      %6642 = sbr.rel (0) target = $region37
    $region36: #{tpu_custom_call.1} parent=1 // pred_region
      _
    $region37: #{tpu_custom_call.1} parent=1 // pred_fallthru
      _
    // Predicated region
    $region38: #{tpu_custom_call.1} parent=1 // pred_check
      _
    $region39: #{tpu_custom_call.1} parent=1 // pred_check_branch
      %6644 = sbr.rel (0) target = $region41
    $region40: #{tpu_custom_call.1} parent=1 // pred_region
      _
    $region41: #{tpu_custom_call.1} parent=1 // pred_fallthru
      _
    %6645 = vsyncpa [#allocation3], 1
    %6646 = vsyncpa [#allocation5], 1
    %6647 = vsyncpa [#allocation8], 1

</llo_original>
